<compile_context>
chip_gen: v7x
topology: tpu7x:2x2x1
jax: 0.10.0
libtpu: 0.0.40
codegen_flags: <defaults>
</compile_context>

<pallas_src>
import jax
import jax.numpy as jnp
from jax import lax
from jax.experimental import pallas as pl
from jax.experimental.pallas import tpu as pltpu

EPS = 1e-5  # PyTorch nn.LayerNorm default


def _layer_norm(v, gamma, beta):
    mu = jnp.mean(v, axis=-1, keepdims=True)
    var = jnp.mean(jnp.square(v - mu), axis=-1, keepdims=True)
    return (v - mu) * lax.rsqrt(var + EPS) * gamma + beta


def _forward_math(x, enc, w_qkv, w_so, w_cq, w_ckv, w_co, w_m1, w_m2, vec, *, recip):
    """Kernel math. x: (bb,T,E) f32 decoder stream, enc: (bb,S,E) bf16 encoder outputs.

    Weight matrices are bf16 (MXU operands); `vec` is the packed (16,E) f32 slab:
      rows 0-2: self-attn QKV biases   row 3: self-attn out bias
      row 4:    cross-attn Q bias      rows 5-6: cross K/V biases   row 7: cross out bias
      rows 8-9: MLP biases             rows 10-12: LN gammas        rows 13-15: LN betas
    The 1/sqrt(E) attention scale is already folded into the Q weights/biases.
    Accumulation is f32 (preferred_element_type); LayerNorm / softmax math is f32.
    """
    bb, T, E = x.shape
    S = enc.shape[1]
    cd = w_qkv.dtype               # bf16 compute dtype for MXU operands
    f32 = jnp.float32

    def row(i):                    # (1, E) f32 slice of the packed parameter slab
        return vec[i:i + 1]

    x2 = x.astype(f32).reshape(bb * T, E)
    enc2 = enc.reshape(bb * S, E).astype(cd)

    def proj(a2d, w, bias):        # (N,E)@(E,M): bf16 operands, f32 accumulate
        return jnp.dot(a2d.astype(cd), w, preferred_element_type=f32) + bias

    def softmax(s):                # stable softmax; reciprocal on the EUP slot
        p = jnp.exp(s - jnp.max(s, axis=-1, keepdims=True))
        return p * recip(jnp.sum(p, axis=-1, keepdims=True))

    # Causal mask built in-kernel: iota + compare, no HBM traffic.
    rows = lax.broadcasted_iota(jnp.int32, (T, T), 0)
    cols = lax.broadcasted_iota(jnp.int32, (T, T), 1)
    causal = (cols <= rows)[None, :, :]

    # ---- decoder self-attention (causal, fused QKV, scale folded into Q) ----
    qkv = jnp.dot(x2.astype(cd), w_qkv, preferred_element_type=f32)       # (bb*T, 3E)
    q = (qkv[:, :E] + row(0)).reshape(bb, T, E)
    k = (qkv[:, E:2 * E] + row(1)).reshape(bb, T, E)
    v = (qkv[:, 2 * E:] + row(2)).reshape(bb, T, E)
    s = jnp.einsum("bqd,bkd->bqk", q.astype(cd), k.astype(cd),
                   preferred_element_type=f32)                            # (bb, T, T)
    s = jnp.where(causal, s, -1e30)
    p = softmax(s)
    o = jnp.einsum("bqk,bkd->bqd", p.astype(cd), v.astype(cd),
                   preferred_element_type=f32).reshape(bb * T, E)
    sa = proj(o, w_so, row(3))
    d = _layer_norm(x2 + sa, row(10), row(13))                            # (bb*T, E)
    # dropout after self-attention: identity in eval

    # ---- decoder-encoder cross-attention (fused KV, scale folded into Q) ----
    q = proj(d, w_cq, row(4)).reshape(bb, T, E)
    kv = jnp.dot(enc2, w_ckv, preferred_element_type=f32)                 # (bb*S, 2E)
    k = (kv[:, :E] + row(5)).reshape(bb, S, E)
    v = (kv[:, E:] + row(6)).reshape(bb, S, E)
    s = jnp.einsum("bqd,bkd->bqk", q.astype(cd), k.astype(cd),
                   preferred_element_type=f32)                            # (bb, T, S)
    p = softmax(s)
    o = jnp.einsum("bqk,bkd->bqd", p.astype(cd), v.astype(cd),
                   preferred_element_type=f32).reshape(bb * T, E)
    ca = proj(o, w_co, row(7))
    d = _layer_norm(ca + d, row(11), row(14))
    # dropout after cross-attention: identity in eval

    # ---- MLP (Linear -> ReLU -> Linear) + residual + LayerNorm ----
    h = jnp.maximum(proj(d, w_m1, row(8)), 0.0)
    m = proj(h, w_m2, row(9))
    d = _layer_norm(d + m, row(12), row(15))
    # dropout after MLP: identity in eval

    return d.reshape(bb, T, E)


def _layer_kernel(dec_ref, enc_ref, w_qkv_ref, w_so_ref, w_cq_ref, w_ckv_ref,
                  w_co_ref, w_m1_ref, w_m2_ref, vec_ref, out_ref):
    out = _forward_math(
        dec_ref[...], enc_ref[...],
        w_qkv_ref[...], w_so_ref[...], w_cq_ref[...], w_ckv_ref[...],
        w_co_ref[...], w_m1_ref[...], w_m2_ref[...], vec_ref[...],
        recip=lambda t: pl.reciprocal(t, approx=True))
    out_ref[...] = out.astype(out_ref.dtype)


def encoder_decoder_layer(dec, enc, params, *, batch_block=None):
    B, T, E = dec.shape
    S = enc.shape[1]

    if batch_block is None:
        # Fill the MXU M dimension: aim for >=256 rows (bb*T) per projection matmul,
        # keeping B % batch_block == 0. On v7x, pass batch_block explicitly so the
        # grid length stays a multiple of 2 (two TensorCores per chip).
        want = max(1, -(-256 // T))
        batch_block = 1
        for cand in range(min(B, want), 0, -1):
            if B % cand == 0:
                batch_block = cand
                break
    assert B % batch_block == 0
    grid = (B // batch_block,)

    # Encoder outputs are only ever MXU operands -> ship them as bf16 (half the DMA).
    enc = enc.astype(jnp.bfloat16)

    # VMEM budget: weights (single-buffered) + double-buffered activation blocks + a
    # generous allowance for intermediates; clamp well below the physical capacity.
    weight_bytes = sum(int(p.size) * p.dtype.itemsize for p in params)
    act_bytes = 2 * (batch_block * T * E * 4 * 2 + batch_block * S * E * 2)
    inter_bytes = 4 * batch_block * (T * (4 * E + max(T, S)) + S * 2 * E)
    footprint = weight_bytes + act_bytes + 4 * inter_bytes
    try:
        vmem_cap = int(getattr(pltpu.get_tpu_info(), "vmem_capacity_bytes",
                               128 * 1024 * 1024))
    except Exception:
        vmem_cap = 128 * 1024 * 1024
    vmem_limit = max(footprint + 8 * 1024 * 1024, 32 * 1024 * 1024)
    vmem_limit = int(min(vmem_limit, (vmem_cap * 3) // 4))

    def const_spec(a, single_buffer):
        nd = a.ndim
        idx = lambda b, _nd=nd: (0,) * _nd
        if single_buffer:
            try:
                # Constant blocks are fetched once: one VMEM buffer is enough.
                return pl.BlockSpec(a.shape, idx, pipeline_mode=pl.Buffered(1))
            except TypeError:
                pass
        return pl.BlockSpec(a.shape, idx)

    def build(single_buffer_weights):
        return pl.pallas_call(
            _layer_kernel,
            out_shape=jax.ShapeDtypeStruct((B, T, E), dec.dtype),
            grid=grid,
            in_specs=[
                pl.BlockSpec((batch_block, T, E), lambda b: (b, 0, 0)),
                pl.BlockSpec((batch_block, S, E), lambda b: (b, 0, 0)),
                *[const_spec(p, single_buffer_weights) for p in params],
            ],
            out_specs=pl.BlockSpec((batch_block, T, E), lambda b: (b, 0, 0)),
            compiler_params=pltpu.CompilerParams(
                dimension_semantics=("parallel",),
                vmem_limit_bytes=vmem_limit),
        )

    try:
        return build(True)(dec, enc, *params)
    except Exception:
        # Fallback for JAX versions that reject pipeline_mode=pl.Buffered(1) on
        # pallas_call BlockSpecs: rebuild with default (double) buffering.
        return build(False)(dec, enc, *params)


def reference(dec, enc, params):
    """Independent pure-JAX fp32 reference (exact softmax division, fp32 matmuls).

    Mirrors the PyTorch EncoderAndDecoderLayer forward in eval mode; the 1/sqrt(E)
    attention scale is already folded into the Q weights/biases carried by `params`.
    """
    w_qkv, w_so, w_cq, w_ckv, w_co, w_m1, w_m2, vec = [
        p.astype(jnp.float32) for p in params]
    B, T, E = dec.shape
    x = dec.astype(jnp.float32)
    e = enc.astype(jnp.float32)

    def ln(v, g, b):
        mu = v.mean(-1, keepdims=True)
        var = ((v - mu) ** 2).mean(-1, keepdims=True)
        return (v - mu) / jnp.sqrt(var + EPS) * g + b

    # decoder causal self-attention + residual + LN
    qkv = x @ w_qkv
    q, k, v = (qkv[..., :E] + vec[0], qkv[..., E:2 * E] + vec[1], qkv[..., 2 * E:] + vec[2])
    s = jnp.einsum("btd,bsd->bts", q, k)
    s = jnp.where(jnp.tril(jnp.ones((T, T), dtype=bool)), s, -jnp.inf)
    o = jnp.einsum("bts,bsd->btd", jax.nn.softmax(s, axis=-1), v)
    d = ln(x + (o @ w_so + vec[3]), vec[10], vec[13])

    # decoder-encoder cross-attention + residual + LN
    q = d @ w_cq + vec[4]
    kv = e @ w_ckv
    k, v = kv[..., :E] + vec[5], kv[..., E:] + vec[6]
    s = jnp.einsum("btd,bsd->bts", q, k)
    o = jnp.einsum("bts,bsd->btd", jax.nn.softmax(s, axis=-1), v)
    d = ln((o @ w_co + vec[7]) + d, vec[11], vec[14])

    # MLP + residual + LN
    h = jnp.maximum(d @ w_m1 + vec[8], 0.0)
    d = ln(d + (h @ w_m2 + vec[9]), vec[12], vec[15])
    return d.astype(dec.dtype)


def make_params(key, E, weight_dtype=jnp.bfloat16):
    """Build per-Linear weights like the PyTorch module would, fuse QKV / cross-KV on the
    host, fold the 1/sqrt(E) attention scale into the Q projections, cast weight matrices
    to bf16 for the MXU, and pack every bias / LN parameter into one (16, E) f32 slab."""
    std = 0.05
    ks = jax.random.split(key, 20)

    def w(i):
        return jax.random.normal(ks[i], (E, E), jnp.float32) * std

    def b(i):
        return jax.random.normal(ks[i], (E,), jnp.float32) * std

    wq_s, wk_s, wv_s, wo_s = w(0), w(1), w(2), w(3)        # decoder self-attention
    bq_s, bk_s, bv_s, bo_s = b(10), b(11), b(12), b(13)
    wq_c, wk_c, wv_c, wo_c = w(4), w(5), w(6), w(7)        # decoder-encoder attention
    bq_c, bk_c, bv_c, bo_c = b(14), b(15), b(16), b(17)
    w1, w2 = w(8), w(9)                                    # MLP
    b1, b2 = b(18), b(19)

    # Fold the 1/sqrt(E) attention scale into the Q projections (host side, free).
    scale = jnp.float32(1.0 / (E ** 0.5))
    wq_s, bq_s = wq_s * scale, bq_s * scale
    wq_c, bq_c = wq_c * scale, bq_c * scale

    gamma = jnp.ones((3, E), jnp.float32)
    beta = jnp.zeros((3, E), jnp.float32)

    vec = jnp.stack([bq_s, bk_s, bv_s, bo_s, bq_c, bk_c, bv_c, bo_c, b1, b2,
                     gamma[0], gamma[1], gamma[2], beta[0], beta[1], beta[2]],
                    axis=0)                                               # (16, E) f32

    return (
        jnp.concatenate([wq_s, wk_s, wv_s], axis=1).astype(weight_dtype),  # (E, 3E)
        wo_s.astype(weight_dtype),
        wq_c.astype(weight_dtype),
        jnp.concatenate([wk_c, wv_c], axis=1).astype(weight_dtype),        # (E, 2E)
        wo_c.astype(weight_dtype),
        w1.astype(weight_dtype),
        w2.astype(weight_dtype),
        vec,
    )


if __name__ == "__main__":
    # batch, target_seq, source_seq, embedding (E chosen 128-aligned -> lane-dense stores)
    B, T, S, E = 2, 8, 16, 128
    key = jax.random.PRNGKey(0)
    k_dec, k_enc, k_par = jax.random.split(key, 3)
    decoder_inputs = jax.random.normal(k_dec, (B, T, E), jnp.float32)
    encoder_outputs = jax.random.normal(k_enc, (B, S, E), jnp.float32)
    params = make_params(k_par, E)

    out = encoder_decoder_layer(decoder_inputs, encoder_outputs, params)
    out = jax.block_until_ready(out)

    ref = reference(decoder_inputs, encoder_outputs, params)
    assert out.shape == (B, T, E)
    max_err = float(jnp.max(jnp.abs(out - ref)))
    assert jnp.allclose(out, ref, rtol=3e-2, atol=3e-2), (
        f"mismatch vs fp32 reference (max abs err {max_err})")
    print("KERNEL_OK")
</pallas_src>

<mosaic_0001>
module attributes {stable_mosaic.version = 11 : i64} {
  func.func @_layer_kernel(%arg0: i32, %arg1: memref<2x8x128xf32, #tpu.memory_space<vmem>>, %arg2: memref<2x16x128xbf16, #tpu.memory_space<vmem>>, %arg3: memref<128x384xbf16, #tpu.memory_space<vmem>>, %arg4: memref<128x128xbf16, #tpu.memory_space<vmem>>, %arg5: memref<128x128xbf16, #tpu.memory_space<vmem>>, %arg6: memref<128x256xbf16, #tpu.memory_space<vmem>>, %arg7: memref<128x128xbf16, #tpu.memory_space<vmem>>, %arg8: memref<128x128xbf16, #tpu.memory_space<vmem>>, %arg9: memref<128x128xbf16, #tpu.memory_space<vmem>>, %arg10: memref<16x128xf32, #tpu.memory_space<vmem>>, %arg11: memref<2x8x128xf32, #tpu.memory_space<vmem>>) attributes {dimension_semantics = [#tpu.dimension_semantics<parallel>], iteration_bounds = array<i64: 1>, scalar_prefetch = 0 : i64, scratch_operands = 0 : i64, tpu.core_type = #tpu.core_type<tc>, window_params = [{transform_indices = @transform_0, window_bounds = array<i64: 2, 8, 128>}, {transform_indices = @transform_1, window_bounds = array<i64: 2, 16, 128>}, {pipeline_mode = #tpu.pipeline_mode<synchronous>, transform_indices = @transform_2, window_bounds = array<i64: 128, 384>}, {pipeline_mode = #tpu.pipeline_mode<synchronous>, transform_indices = @transform_3, window_bounds = array<i64: 128, 128>}, {pipeline_mode = #tpu.pipeline_mode<synchronous>, transform_indices = @transform_4, window_bounds = array<i64: 128, 128>}, {pipeline_mode = #tpu.pipeline_mode<synchronous>, transform_indices = @transform_5, window_bounds = array<i64: 128, 256>}, {pipeline_mode = #tpu.pipeline_mode<synchronous>, transform_indices = @transform_6, window_bounds = array<i64: 128, 128>}, {pipeline_mode = #tpu.pipeline_mode<synchronous>, transform_indices = @transform_7, window_bounds = array<i64: 128, 128>}, {pipeline_mode = #tpu.pipeline_mode<synchronous>, transform_indices = @transform_8, window_bounds = array<i64: 128, 128>}, {pipeline_mode = #tpu.pipeline_mode<synchronous>, transform_indices = @transform_9, window_bounds = array<i64: 16, 128>}, {transform_indices = @transform_10, window_bounds = array<i64: 2, 8, 128>}]} {
    %c0 = arith.constant 0 : index
    %c0_0 = arith.constant 0 : index
    %c0_1 = arith.constant 0 : index
    %0 = vector.load %arg1[%c0, %c0_0, %c0_1] : memref<2x8x128xf32, #tpu.memory_space<vmem>>, vector<2x8x128xf32>
    %c0_2 = arith.constant 0 : index
    %c0_3 = arith.constant 0 : index
    %c0_4 = arith.constant 0 : index
    %1 = vector.load %arg2[%c0_2, %c0_3, %c0_4] : memref<2x16x128xbf16, #tpu.memory_space<vmem>>, vector<2x16x128xbf16>
    %c0_5 = arith.constant 0 : index
    %c0_6 = arith.constant 0 : index
    %2 = vector.load %arg3[%c0_5, %c0_6] : memref<128x384xbf16, #tpu.memory_space<vmem>>, vector<128x384xbf16>
    %c0_7 = arith.constant 0 : index
    %c0_8 = arith.constant 0 : index
    %3 = vector.load %arg4[%c0_7, %c0_8] : memref<128x128xbf16, #tpu.memory_space<vmem>>, vector<128x128xbf16>
    %c0_9 = arith.constant 0 : index
    %c0_10 = arith.constant 0 : index
    %4 = vector.load %arg5[%c0_9, %c0_10] : memref<128x128xbf16, #tpu.memory_space<vmem>>, vector<128x128xbf16>
    %c0_11 = arith.constant 0 : index
    %c0_12 = arith.constant 0 : index
    %5 = vector.load %arg6[%c0_11, %c0_12] : memref<128x256xbf16, #tpu.memory_space<vmem>>, vector<128x256xbf16>
    %c0_13 = arith.constant 0 : index
    %c0_14 = arith.constant 0 : index
    %6 = vector.load %arg7[%c0_13, %c0_14] : memref<128x128xbf16, #tpu.memory_space<vmem>>, vector<128x128xbf16>
    %c0_15 = arith.constant 0 : index
    %c0_16 = arith.constant 0 : index
    %7 = vector.load %arg8[%c0_15, %c0_16] : memref<128x128xbf16, #tpu.memory_space<vmem>>, vector<128x128xbf16>
    %c0_17 = arith.constant 0 : index
    %c0_18 = arith.constant 0 : index
    %8 = vector.load %arg9[%c0_17, %c0_18] : memref<128x128xbf16, #tpu.memory_space<vmem>>, vector<128x128xbf16>
    %c0_19 = arith.constant 0 : index
    %c0_20 = arith.constant 0 : index
    %9 = vector.load %arg10[%c0_19, %c0_20] : memref<16x128xf32, #tpu.memory_space<vmem>>, vector<16x128xf32>
    %10 = vector.shape_cast %0 : vector<2x8x128xf32> to vector<16x128xf32>
    %11 = vector.shape_cast %1 : vector<2x16x128xbf16> to vector<32x128xbf16>
    %12 = tpu.iota {dimensions = array<i32: 0>} : vector<8x8xi32>
    %13 = tpu.iota {dimensions = array<i32: 1>} : vector<8x8xi32>
    %14 = arith.cmpi sle, %13, %12 : vector<8x8xi32>
    %15 = vector.shape_cast %14 : vector<8x8xi1> to vector<1x8x8xi1>
    %16 = arith.truncf %10 : vector<16x128xf32> to vector<16x128xbf16>
    %cst = arith.constant dense<0.000000e+00> : vector<16x384xf32>
    %17 = tpu.matmul %16, %2, %cst {dimension_numbers = #tpu.dot_dimension_numbers<[1], [0], [0], [1], [0, 0, 1, 1], [], []>} : vector<16x128xbf16>, vector<128x384xbf16>, vector<16x384xf32> -> vector<16x384xf32>
    %18 = vector.extract_strided_slice %17 {offsets = [0, 0], sizes = [16, 128], strides = [1, 1]} : vector<16x384xf32> to vector<16x128xf32>
    %19 = vector.extract_strided_slice %9 {offsets = [0, 0], sizes = [1, 128], strides = [1, 1]} : vector<16x128xf32> to vector<1x128xf32>
    %20 = vector.broadcast %19 : vector<1x128xf32> to vector<16x128xf32>
    %21 = arith.addf %18, %20 : vector<16x128xf32>
    %22 = vector.shape_cast %21 : vector<16x128xf32> to vector<2x8x128xf32>
    %23 = vector.extract_strided_slice %17 {offsets = [0, 128], sizes = [16, 128], strides = [1, 1]} : vector<16x384xf32> to vector<16x128xf32>
    %24 = vector.extract_strided_slice %9 {offsets = [1, 0], sizes = [1, 128], strides = [1, 1]} : vector<16x128xf32> to vector<1x128xf32>
    %25 = vector.broadcast %24 : vector<1x128xf32> to vector<16x128xf32>
    %26 = arith.addf %23, %25 : vector<16x128xf32>
    %27 = vector.shape_cast %26 : vector<16x128xf32> to vector<2x8x128xf32>
    %28 = vector.extract_strided_slice %17 {offsets = [0, 256], sizes = [16, 128], strides = [1, 1]} : vector<16x384xf32> to vector<16x128xf32>
    %29 = vector.extract_strided_slice %9 {offsets = [2, 0], sizes = [1, 128], strides = [1, 1]} : vector<16x128xf32> to vector<1x128xf32>
    %30 = vector.broadcast %29 : vector<1x128xf32> to vector<16x128xf32>
    %31 = arith.addf %28, %30 : vector<16x128xf32>
    %32 = vector.shape_cast %31 : vector<16x128xf32> to vector<2x8x128xf32>
    %33 = arith.truncf %22 : vector<2x8x128xf32> to vector<2x8x128xbf16>
    %34 = arith.truncf %27 : vector<2x8x128xf32> to vector<2x8x128xbf16>
    "tpu.trace_start"() <{level = 10 : i32, message = "bqd,bkd->bqk"}> : () -> ()
    %cst_21 = arith.constant dense<0.000000e+00> : vector<2x8x8xf32>
    %35 = tpu.matmul %33, %34, %cst_21 {dimension_numbers = #tpu.dot_dimension_numbers<[2], [2], [1], [1], [0, 0, 0, 1, 1, 1], [0], [0]>} : vector<2x8x128xbf16>, vector<2x8x128xbf16>, vector<2x8x8xf32> -> vector<2x8x8xf32>
    %cst_22 = arith.constant -1.000000e+30 : f32
    "tpu.trace_stop"() : () -> ()
    %36 = vector.shape_cast %15 : vector<1x8x8xi1> to vector<1x8x8xi1>
    %37 = vector.broadcast %36 : vector<1x8x8xi1> to vector<2x8x8xi1>
    %38 = vector.broadcast %cst_22 : f32 to vector<2x8x8xf32>
    %39 = arith.select %37, %35, %38 : vector<2x8x8xi1>, vector<2x8x8xf32>
    %cst_23 = arith.constant dense<0xFF800000> : vector<2x8xf32>
    %40 = vector.multi_reduction <maximumf>, %39, %cst_23 [2] : vector<2x8x8xf32> to vector<2x8xf32>
    %41 = vector.shape_cast %40 : vector<2x8xf32> to vector<2x8x1xf32>
    %42 = vector.broadcast %41 : vector<2x8x1xf32> to vector<2x8x8xf32>
    %43 = arith.subf %39, %42 : vector<2x8x8xf32>
    %44 = math.exp %43 : vector<2x8x8xf32>
    %cst_24 = arith.constant dense<0.000000e+00> : vector<2x8xf32>
    %45 = vector.multi_reduction <add>, %44, %cst_24 [2] : vector<2x8x8xf32> to vector<2x8xf32>
    %46 = vector.shape_cast %45 : vector<2x8xf32> to vector<2x8x1xf32>
    %47 = tpu.reciprocal %46 {approx = true} : vector<2x8x1xf32> -> vector<2x8x1xf32>
    %48 = vector.broadcast %47 : vector<2x8x1xf32> to vector<2x8x8xf32>
    %49 = arith.mulf %44, %48 : vector<2x8x8xf32>
    %50 = arith.truncf %49 : vector<2x8x8xf32> to vector<2x8x8xbf16>
    %51 = arith.truncf %32 : vector<2x8x128xf32> to vector<2x8x128xbf16>
    "tpu.trace_start"() <{level = 10 : i32, message = "bqk,bkd->bqd"}> : () -> ()
    %cst_25 = arith.constant dense<0.000000e+00> : vector<2x8x128xf32>
    %52 = tpu.matmul %50, %51, %cst_25 {dimension_numbers = #tpu.dot_dimension_numbers<[2], [1], [1], [2], [0, 0, 0, 1, 1, 2], [0], [0]>} : vector<2x8x8xbf16>, vector<2x8x128xbf16>, vector<2x8x128xf32> -> vector<2x8x128xf32>
    "tpu.trace_stop"() : () -> ()
    %53 = vector.shape_cast %52 : vector<2x8x128xf32> to vector<16x128xf32>
    %54 = vector.extract_strided_slice %9 {offsets = [3, 0], sizes = [1, 128], strides = [1, 1]} : vector<16x128xf32> to vector<1x128xf32>
    %55 = arith.truncf %53 : vector<16x128xf32> to vector<16x128xbf16>
    %cst_26 = arith.constant dense<0.000000e+00> : vector<16x128xf32>
    %56 = tpu.matmul %55, %3, %cst_26 {dimension_numbers = #tpu.dot_dimension_numbers<[1], [0], [0], [1], [0, 0, 1, 1], [], []>} : vector<16x128xbf16>, vector<128x128xbf16>, vector<16x128xf32> -> vector<16x128xf32>
    %57 = vector.broadcast %54 : vector<1x128xf32> to vector<16x128xf32>
    %58 = arith.addf %56, %57 : vector<16x128xf32>
    %59 = arith.addf %10, %58 : vector<16x128xf32>
    %60 = vector.extract_strided_slice %9 {offsets = [10, 0], sizes = [1, 128], strides = [1, 1]} : vector<16x128xf32> to vector<1x128xf32>
    %61 = vector.extract_strided_slice %9 {offsets = [13, 0], sizes = [1, 128], strides = [1, 1]} : vector<16x128xf32> to vector<1x128xf32>
    %cst_27 = arith.constant dense<0.000000e+00> : vector<16xf32>
    %62 = vector.multi_reduction <add>, %59, %cst_27 [1] : vector<16x128xf32> to vector<16xf32>
    %63 = vector.shape_cast %62 : vector<16xf32> to vector<16x1xf32>
    %cst_28 = arith.constant 1.280000e+02 : f32
    %64 = vector.broadcast %cst_28 : f32 to vector<16x1xf32>
    %65 = arith.divf %63, %64 : vector<16x1xf32>
    %66 = vector.broadcast %65 : vector<16x1xf32> to vector<16x128xf32>
    %67 = arith.subf %59, %66 : vector<16x128xf32>
    %68 = arith.mulf %67, %67 : vector<16x128xf32>
    %cst_29 = arith.constant dense<0.000000e+00> : vector<16xf32>
    %69 = vector.multi_reduction <add>, %68, %cst_29 [1] : vector<16x128xf32> to vector<16xf32>
    %70 = vector.shape_cast %69 : vector<16xf32> to vector<16x1xf32>
    %cst_30 = arith.constant 1.280000e+02 : f32
    %71 = vector.broadcast %cst_30 : f32 to vector<16x1xf32>
    %72 = arith.divf %70, %71 : vector<16x1xf32>
    %73 = vector.broadcast %65 : vector<16x1xf32> to vector<16x128xf32>
    %74 = arith.subf %59, %73 : vector<16x128xf32>
    %cst_31 = arith.constant 9.99999974E-6 : f32
    %75 = vector.broadcast %cst_31 : f32 to vector<16x1xf32>
    %76 = arith.addf %72, %75 : vector<16x1xf32>
    %77 = math.rsqrt %76 : vector<16x1xf32>
    %78 = vector.broadcast %77 : vector<16x1xf32> to vector<16x128xf32>
    %79 = arith.mulf %74, %78 : vector<16x128xf32>
    %80 = vector.broadcast %60 : vector<1x128xf32> to vector<16x128xf32>
    %81 = arith.mulf %79, %80 : vector<16x128xf32>
    %82 = vector.broadcast %61 : vector<1x128xf32> to vector<16x128xf32>
    %83 = arith.addf %81, %82 : vector<16x128xf32>
    %84 = vector.extract_strided_slice %9 {offsets = [4, 0], sizes = [1, 128], strides = [1, 1]} : vector<16x128xf32> to vector<1x128xf32>
    %85 = arith.truncf %83 : vector<16x128xf32> to vector<16x128xbf16>
    %cst_32 = arith.constant dense<0.000000e+00> : vector<16x128xf32>
    %86 = tpu.matmul %85, %4, %cst_32 {dimension_numbers = #tpu.dot_dimension_numbers<[1], [0], [0], [1], [0, 0, 1, 1], [], []>} : vector<16x128xbf16>, vector<128x128xbf16>, vector<16x128xf32> -> vector<16x128xf32>
    %87 = vector.broadcast %84 : vector<1x128xf32> to vector<16x128xf32>
    %88 = arith.addf %86, %87 : vector<16x128xf32>
    %89 = vector.shape_cast %88 : vector<16x128xf32> to vector<2x8x128xf32>
    %cst_33 = arith.constant dense<0.000000e+00> : vector<32x256xf32>
    %90 = tpu.matmul %11, %5, %cst_33 {dimension_numbers = #tpu.dot_dimension_numbers<[1], [0], [0], [1], [0, 0, 1, 1], [], []>} : vector<32x128xbf16>, vector<128x256xbf16>, vector<32x256xf32> -> vector<32x256xf32>
    %91 = vector.extract_strided_slice %90 {offsets = [0, 0], sizes = [32, 128], strides = [1, 1]} : vector<32x256xf32> to vector<32x128xf32>
    %92 = vector.extract_strided_slice %9 {offsets = [5, 0], sizes = [1, 128], strides = [1, 1]} : vector<16x128xf32> to vector<1x128xf32>
    %93 = vector.broadcast %92 : vector<1x128xf32> to vector<32x128xf32>
    %94 = arith.addf %91, %93 : vector<32x128xf32>
    %95 = vector.shape_cast %94 : vector<32x128xf32> to vector<2x16x128xf32>
    %96 = vector.extract_strided_slice %90 {offsets = [0, 128], sizes = [32, 128], strides = [1, 1]} : vector<32x256xf32> to vector<32x128xf32>
    %97 = vector.extract_strided_slice %9 {offsets = [6, 0], sizes = [1, 128], strides = [1, 1]} : vector<16x128xf32> to vector<1x128xf32>
    %98 = vector.broadcast %97 : vector<1x128xf32> to vector<32x128xf32>
    %99 = arith.addf %96, %98 : vector<32x128xf32>
    %100 = vector.shape_cast %99 : vector<32x128xf32> to vector<2x16x128xf32>
    %101 = arith.truncf %89 : vector<2x8x128xf32> to vector<2x8x128xbf16>
    %102 = arith.truncf %95 : vector<2x16x128xf32> to vector<2x16x128xbf16>
    "tpu.trace_start"() <{level = 10 : i32, message = "bqd,bkd->bqk"}> : () -> ()
    %cst_34 = arith.constant dense<0.000000e+00> : vector<2x8x16xf32>
    %103 = tpu.matmul %101, %102, %cst_34 {dimension_numbers = #tpu.dot_dimension_numbers<[2], [2], [1], [1], [0, 0, 0, 1, 1, 1], [0], [0]>} : vector<2x8x128xbf16>, vector<2x16x128xbf16>, vector<2x8x16xf32> -> vector<2x8x16xf32>
    "tpu.trace_stop"() : () -> ()
    %cst_35 = arith.constant dense<0xFF800000> : vector<2x8xf32>
    %104 = vector.multi_reduction <maximumf>, %103, %cst_35 [2] : vector<2x8x16xf32> to vector<2x8xf32>
    %105 = vector.shape_cast %104 : vector<2x8xf32> to vector<2x8x1xf32>
    %106 = vector.broadcast %105 : vector<2x8x1xf32> to vector<2x8x16xf32>
    %107 = arith.subf %103, %106 : vector<2x8x16xf32>
    %108 = math.exp %107 : vector<2x8x16xf32>
    %cst_36 = arith.constant dense<0.000000e+00> : vector<2x8xf32>
    %109 = vector.multi_reduction <add>, %108, %cst_36 [2] : vector<2x8x16xf32> to vector<2x8xf32>
    %110 = vector.shape_cast %109 : vector<2x8xf32> to vector<2x8x1xf32>
    %111 = tpu.reciprocal %110 {approx = true} : vector<2x8x1xf32> -> vector<2x8x1xf32>
    %112 = vector.broadcast %111 : vector<2x8x1xf32> to vector<2x8x16xf32>
    %113 = arith.mulf %108, %112 : vector<2x8x16xf32>
    %114 = arith.truncf %113 : vector<2x8x16xf32> to vector<2x8x16xbf16>
    %115 = arith.truncf %100 : vector<2x16x128xf32> to vector<2x16x128xbf16>
    "tpu.trace_start"() <{level = 10 : i32, message = "bqk,bkd->bqd"}> : () -> ()
    %cst_37 = arith.constant dense<0.000000e+00> : vector<2x8x128xf32>
    %116 = tpu.matmul %114, %115, %cst_37 {dimension_numbers = #tpu.dot_dimension_numbers<[2], [1], [1], [2], [0, 0, 0, 1, 1, 2], [0], [0]>} : vector<2x8x16xbf16>, vector<2x16x128xbf16>, vector<2x8x128xf32> -> vector<2x8x128xf32>
    "tpu.trace_stop"() : () -> ()
    %117 = vector.shape_cast %116 : vector<2x8x128xf32> to vector<16x128xf32>
    %118 = vector.extract_strided_slice %9 {offsets = [7, 0], sizes = [1, 128], strides = [1, 1]} : vector<16x128xf32> to vector<1x128xf32>
    %119 = arith.truncf %117 : vector<16x128xf32> to vector<16x128xbf16>
    %cst_38 = arith.constant dense<0.000000e+00> : vector<16x128xf32>
    %120 = tpu.matmul %119, %6, %cst_38 {dimension_numbers = #tpu.dot_dimension_numbers<[1], [0], [0], [1], [0, 0, 1, 1], [], []>} : vector<16x128xbf16>, vector<128x128xbf16>, vector<16x128xf32> -> vector<16x128xf32>
    %121 = vector.broadcast %118 : vector<1x128xf32> to vector<16x128xf32>
    %122 = arith.addf %120, %121 : vector<16x128xf32>
    %123 = arith.addf %122, %83 : vector<16x128xf32>
    %124 = vector.extract_strided_slice %9 {offsets = [11, 0], sizes = [1, 128], strides = [1, 1]} : vector<16x128xf32> to vector<1x128xf32>
    %125 = vector.extract_strided_slice %9 {offsets = [14, 0], sizes = [1, 128], strides = [1, 1]} : vector<16x128xf32> to vector<1x128xf32>
    %cst_39 = arith.constant dense<0.000000e+00> : vector<16xf32>
    %126 = vector.multi_reduction <add>, %123, %cst_39 [1] : vector<16x128xf32> to vector<16xf32>
    %127 = vector.shape_cast %126 : vector<16xf32> to vector<16x1xf32>
    %cst_40 = arith.constant 1.280000e+02 : f32
    %128 = vector.broadcast %cst_40 : f32 to vector<16x1xf32>
    %129 = arith.divf %127, %128 : vector<16x1xf32>
    %130 = vector.broadcast %129 : vector<16x1xf32> to vector<16x128xf32>
    %131 = arith.subf %123, %130 : vector<16x128xf32>
    %132 = arith.mulf %131, %131 : vector<16x128xf32>
    %cst_41 = arith.constant dense<0.000000e+00> : vector<16xf32>
    %133 = vector.multi_reduction <add>, %132, %cst_41 [1] : vector<16x128xf32> to vector<16xf32>
    %134 = vector.shape_cast %133 : vector<16xf32> to vector<16x1xf32>
    %cst_42 = arith.constant 1.280000e+02 : f32
    %135 = vector.broadcast %cst_42 : f32 to vector<16x1xf32>
    %136 = arith.divf %134, %135 : vector<16x1xf32>
    %137 = vector.broadcast %129 : vector<16x1xf32> to vector<16x128xf32>
    %138 = arith.subf %123, %137 : vector<16x128xf32>
    %cst_43 = arith.constant 9.99999974E-6 : f32
    %139 = vector.broadcast %cst_43 : f32 to vector<16x1xf32>
    %140 = arith.addf %136, %139 : vector<16x1xf32>
    %141 = math.rsqrt %140 : vector<16x1xf32>
    %142 = vector.broadcast %141 : vector<16x1xf32> to vector<16x128xf32>
    %143 = arith.mulf %138, %142 : vector<16x128xf32>
    %144 = vector.broadcast %124 : vector<1x128xf32> to vector<16x128xf32>
    %145 = arith.mulf %143, %144 : vector<16x128xf32>
    %146 = vector.broadcast %125 : vector<1x128xf32> to vector<16x128xf32>
    %147 = arith.addf %145, %146 : vector<16x128xf32>
    %148 = vector.extract_strided_slice %9 {offsets = [8, 0], sizes = [1, 128], strides = [1, 1]} : vector<16x128xf32> to vector<1x128xf32>
    %149 = arith.truncf %147 : vector<16x128xf32> to vector<16x128xbf16>
    %cst_44 = arith.constant dense<0.000000e+00> : vector<16x128xf32>
    %150 = tpu.matmul %149, %7, %cst_44 {dimension_numbers = #tpu.dot_dimension_numbers<[1], [0], [0], [1], [0, 0, 1, 1], [], []>} : vector<16x128xbf16>, vector<128x128xbf16>, vector<16x128xf32> -> vector<16x128xf32>
    %151 = vector.broadcast %148 : vector<1x128xf32> to vector<16x128xf32>
    %152 = arith.addf %150, %151 : vector<16x128xf32>
    %cst_45 = arith.constant 0.000000e+00 : f32
    %153 = vector.broadcast %cst_45 : f32 to vector<16x128xf32>
    %154 = arith.maximumf %152, %153 : vector<16x128xf32>
    %155 = vector.extract_strided_slice %9 {offsets = [9, 0], sizes = [1, 128], strides = [1, 1]} : vector<16x128xf32> to vector<1x128xf32>
    %156 = arith.truncf %154 : vector<16x128xf32> to vector<16x128xbf16>
    %cst_46 = arith.constant dense<0.000000e+00> : vector<16x128xf32>
    %157 = tpu.matmul %156, %8, %cst_46 {dimension_numbers = #tpu.dot_dimension_numbers<[1], [0], [0], [1], [0, 0, 1, 1], [], []>} : vector<16x128xbf16>, vector<128x128xbf16>, vector<16x128xf32> -> vector<16x128xf32>
    %158 = vector.broadcast %155 : vector<1x128xf32> to vector<16x128xf32>
    %159 = arith.addf %157, %158 : vector<16x128xf32>
    %160 = arith.addf %147, %159 : vector<16x128xf32>
    %161 = vector.extract_strided_slice %9 {offsets = [12, 0], sizes = [1, 128], strides = [1, 1]} : vector<16x128xf32> to vector<1x128xf32>
    %162 = vector.extract_strided_slice %9 {offsets = [15, 0], sizes = [1, 128], strides = [1, 1]} : vector<16x128xf32> to vector<1x128xf32>
    %cst_47 = arith.constant dense<0.000000e+00> : vector<16xf32>
    %163 = vector.multi_reduction <add>, %160, %cst_47 [1] : vector<16x128xf32> to vector<16xf32>
    %164 = vector.shape_cast %163 : vector<16xf32> to vector<16x1xf32>
    %cst_48 = arith.constant 1.280000e+02 : f32
    %165 = vector.broadcast %cst_48 : f32 to vector<16x1xf32>
    %166 = arith.divf %164, %165 : vector<16x1xf32>
    %167 = vector.broadcast %166 : vector<16x1xf32> to vector<16x128xf32>
    %168 = arith.subf %160, %167 : vector<16x128xf32>
    %169 = arith.mulf %168, %168 : vector<16x128xf32>
    %cst_49 = arith.constant dense<0.000000e+00> : vector<16xf32>
    %170 = vector.multi_reduction <add>, %169, %cst_49 [1] : vector<16x128xf32> to vector<16xf32>
    %171 = vector.shape_cast %170 : vector<16xf32> to vector<16x1xf32>
    %cst_50 = arith.constant 1.280000e+02 : f32
    %172 = vector.broadcast %cst_50 : f32 to vector<16x1xf32>
    %173 = arith.divf %171, %172 : vector<16x1xf32>
    %174 = vector.broadcast %166 : vector<16x1xf32> to vector<16x128xf32>
    %175 = arith.subf %160, %174 : vector<16x128xf32>
    %cst_51 = arith.constant 9.99999974E-6 : f32
    %176 = vector.broadcast %cst_51 : f32 to vector<16x1xf32>
    %177 = arith.addf %173, %176 : vector<16x1xf32>
    %178 = math.rsqrt %177 : vector<16x1xf32>
    %179 = vector.broadcast %178 : vector<16x1xf32> to vector<16x128xf32>
    %180 = arith.mulf %175, %179 : vector<16x128xf32>
    %181 = vector.broadcast %161 : vector<1x128xf32> to vector<16x128xf32>
    %182 = arith.mulf %180, %181 : vector<16x128xf32>
    %183 = vector.broadcast %162 : vector<1x128xf32> to vector<16x128xf32>
    %184 = arith.addf %182, %183 : vector<16x128xf32>
    %185 = vector.shape_cast %184 : vector<16x128xf32> to vector<2x8x128xf32>
    %c0_52 = arith.constant 0 : index
    %c0_53 = arith.constant 0 : index
    %c0_54 = arith.constant 0 : index
    %186 = vector.load %arg11[%c0_52, %c0_53, %c0_54] : memref<2x8x128xf32, #tpu.memory_space<vmem>>, vector<2x8x128xf32>
    tpu.vector_store %arg11[%c0_52, %c0_53, %c0_54], %185 {strides = array<i32>} : memref<2x8x128xf32, #tpu.memory_space<vmem>>, vector<2x8x128xf32>,
    return
  }
  func.func @transform_0(%arg0: i32) -> (i32, i32, i32) {
    %c0_i32 = arith.constant 0 : i32
    %c0_i32_0 = arith.constant 0 : i32
    %c0_i32_1 = arith.constant 0 : i32
    return %arg0, %c0_i32, %c0_i32_0 : i32, i32, i32
  }
  func.func @transform_1(%arg0: i32) -> (i32, i32, i32) {
    %c0_i32 = arith.constant 0 : i32
    %c0_i32_0 = arith.constant 0 : i32
    %c0_i32_1 = arith.constant 0 : i32
    return %arg0, %c0_i32, %c0_i32_0 : i32, i32, i32
  }
  func.func @transform_2(%arg0: i32) -> (i32, i32) {
    %c0_i32 = arith.constant 0 : i32
    %c0_i32_0 = arith.constant 0 : i32
    %c0_i32_1 = arith.constant 0 : i32
    return %c0_i32, %c0_i32_0 : i32, i32
  }
  func.func @transform_3(%arg0: i32) -> (i32, i32) {
    %c0_i32 = arith.constant 0 : i32
    %c0_i32_0 = arith.constant 0 : i32
    %c0_i32_1 = arith.constant 0 : i32
    return %c0_i32, %c0_i32_0 : i32, i32
  }
  func.func @transform_4(%arg0: i32) -> (i32, i32) {
    %c0_i32 = arith.constant 0 : i32
    %c0_i32_0 = arith.constant 0 : i32
    %c0_i32_1 = arith.constant 0 : i32
    return %c0_i32, %c0_i32_0 : i32, i32
  }
  func.func @transform_5(%arg0: i32) -> (i32, i32) {
    %c0_i32 = arith.constant 0 : i32
    %c0_i32_0 = arith.constant 0 : i32
    %c0_i32_1 = arith.constant 0 : i32
    return %c0_i32, %c0_i32_0 : i32, i32
  }
  func.func @transform_6(%arg0: i32) -> (i32, i32) {
    %c0_i32 = arith.constant 0 : i32
    %c0_i32_0 = arith.constant 0 : i32
    %c0_i32_1 = arith.constant 0 : i32
    return %c0_i32, %c0_i32_0 : i32, i32
  }
  func.func @transform_7(%arg0: i32) -> (i32, i32) {
    %c0_i32 = arith.constant 0 : i32
    %c0_i32_0 = arith.constant 0 : i32
    %c0_i32_1 = arith.constant 0 : i32
    return %c0_i32, %c0_i32_0 : i32, i32
  }
  func.func @transform_8(%arg0: i32) -> (i32, i32) {
    %c0_i32 = arith.constant 0 : i32
    %c0_i32_0 = arith.constant 0 : i32
    %c0_i32_1 = arith.constant 0 : i32
    return %c0_i32, %c0_i32_0 : i32, i32
  }
  func.func @transform_9(%arg0: i32) -> (i32, i32) {
    %c0_i32 = arith.constant 0 : i32
    %c0_i32_0 = arith.constant 0 : i32
    %c0_i32_1 = arith.constant 0 : i32
    return %c0_i32, %c0_i32_0 : i32, i32
  }
  func.func @transform_10(%arg0: i32) -> (i32, i32, i32) {
    %c0_i32 = arith.constant 0 : i32
    %c0_i32_0 = arith.constant 0 : i32
    %c0_i32_1 = arith.constant 0 : i32
    return %arg0, %c0_i32, %c0_i32_0 : i32, i32, i32
  }
}

module attributes {stable_mosaic.version = 11 : i64} {
  func.func @_layer_kernel(%arg0: i32, %arg1: memref<2x8x128xf32, #tpu.memory_space<vmem>>, %arg2: memref<2x16x128xbf16, #tpu.memory_space<vmem>>, %arg3: memref<128x384xbf16, #tpu.memory_space<vmem>>, %arg4: memref<128x128xbf16, #tpu.memory_space<vmem>>, %arg5: memref<128x128xbf16, #tpu.memory_space<vmem>>, %arg6: memref<128x256xbf16, #tpu.memory_space<vmem>>, %arg7: memref<128x128xbf16, #tpu.memory_space<vmem>>, %arg8: memref<128x128xbf16, #tpu.memory_space<vmem>>, %arg9: memref<128x128xbf16, #tpu.memory_space<vmem>>, %arg10: memref<16x128xf32, #tpu.memory_space<vmem>>, %arg11: memref<2x8x128xf32, #tpu.memory_space<vmem>>) attributes {dimension_semantics = [#tpu.dimension_semantics<parallel>], iteration_bounds = array<i64: 1>, scalar_prefetch = 0 : i64, scratch_operands = 0 : i64, tpu.core_type = #tpu.core_type<tc>, window_params = [{transform_indices = @transform_0, window_bounds = array<i64: 2, 8, 128>}, {transform_indices = @transform_1, window_bounds = array<i64: 2, 16, 128>}, {pipeline_mode = #tpu.pipeline_mode<synchronous>, transform_indices = @transform_2, window_bounds = array<i64: 128, 384>}, {pipeline_mode = #tpu.pipeline_mode<synchronous>, transform_indices = @transform_3, window_bounds = array<i64: 128, 128>}, {pipeline_mode = #tpu.pipeline_mode<synchronous>, transform_indices = @transform_4, window_bounds = array<i64: 128, 128>}, {pipeline_mode = #tpu.pipeline_mode<synchronous>, transform_indices = @transform_5, window_bounds = array<i64: 128, 256>}, {pipeline_mode = #tpu.pipeline_mode<synchronous>, transform_indices = @transform_6, window_bounds = array<i64: 128, 128>}, {pipeline_mode = #tpu.pipeline_mode<synchronous>, transform_indices = @transform_7, window_bounds = array<i64: 128, 128>}, {pipeline_mode = #tpu.pipeline_mode<synchronous>, transform_indices = @transform_8, window_bounds = array<i64: 128, 128>}, {pipeline_mode = #tpu.pipeline_mode<synchronous>, transform_indices = @transform_9, window_bounds = array<i64: 16, 128>}, {transform_indices = @transform_10, window_bounds = array<i64: 2, 8, 128>}]} {
    %c0 = arith.constant 0 : index
    %c0_0 = arith.constant 0 : index
    %c0_1 = arith.constant 0 : index
    %0 = vector.load %arg1[%c0, %c0_0, %c0_1] : memref<2x8x128xf32, #tpu.memory_space<vmem>>, vector<2x8x128xf32>
    %c0_2 = arith.constant 0 : index
    %c0_3 = arith.constant 0 : index
    %c0_4 = arith.constant 0 : index
    %1 = vector.load %arg2[%c0_2, %c0_3, %c0_4] : memref<2x16x128xbf16, #tpu.memory_space<vmem>>, vector<2x16x128xbf16>
    %c0_5 = arith.constant 0 : index
    %c0_6 = arith.constant 0 : index
    %2 = vector.load %arg3[%c0_5, %c0_6] : memref<128x384xbf16, #tpu.memory_space<vmem>>, vector<128x384xbf16>
    %c0_7 = arith.constant 0 : index
    %c0_8 = arith.constant 0 : index
    %3 = vector.load %arg4[%c0_7, %c0_8] : memref<128x128xbf16, #tpu.memory_space<vmem>>, vector<128x128xbf16>
    %c0_9 = arith.constant 0 : index
    %c0_10 = arith.constant 0 : index
    %4 = vector.load %arg5[%c0_9, %c0_10] : memref<128x128xbf16, #tpu.memory_space<vmem>>, vector<128x128xbf16>
    %c0_11 = arith.constant 0 : index
    %c0_12 = arith.constant 0 : index
    %5 = vector.load %arg6[%c0_11, %c0_12] : memref<128x256xbf16, #tpu.memory_space<vmem>>, vector<128x256xbf16>
    %c0_13 = arith.constant 0 : index
    %c0_14 = arith.constant 0 : index
    %6 = vector.load %arg7[%c0_13, %c0_14] : memref<128x128xbf16, #tpu.memory_space<vmem>>, vector<128x128xbf16>
    %c0_15 = arith.constant 0 : index
    %c0_16 = arith.constant 0 : index
    %7 = vector.load %arg8[%c0_15, %c0_16] : memref<128x128xbf16, #tpu.memory_space<vmem>>, vector<128x128xbf16>
    %c0_17 = arith.constant 0 : index
    %c0_18 = arith.constant 0 : index
    %8 = vector.load %arg9[%c0_17, %c0_18] : memref<128x128xbf16, #tpu.memory_space<vmem>>, vector<128x128xbf16>
    %c0_19 = arith.constant 0 : index
    %c0_20 = arith.constant 0 : index
    %9 = vector.load %arg10[%c0_19, %c0_20] : memref<16x128xf32, #tpu.memory_space<vmem>>, vector<16x128xf32>
    %10 = vector.shape_cast %0 : vector<2x8x128xf32> to vector<16x128xf32>
    %11 = vector.shape_cast %1 : vector<2x16x128xbf16> to vector<32x128xbf16>
    %12 = tpu.iota {dimensions = array<i32: 0>} : vector<8x8xi32>
    %13 = tpu.iota {dimensions = array<i32: 1>} : vector<8x8xi32>
    %14 = arith.cmpi sle, %13, %12 : vector<8x8xi32>
    %15 = vector.shape_cast %14 : vector<8x8xi1> to vector<1x8x8xi1>
    %16 = arith.truncf %10 : vector<16x128xf32> to vector<16x128xbf16>
    %cst = arith.constant dense<0.000000e+00> : vector<16x384xf32>
    %17 = tpu.matmul %16, %2, %cst {dimension_numbers = #tpu.dot_dimension_numbers<[1], [0], [0], [1], [0, 0, 1, 1], [], []>} : vector<16x128xbf16>, vector<128x384xbf16>, vector<16x384xf32> -> vector<16x384xf32>
    %18 = vector.extract_strided_slice %17 {offsets = [0, 0], sizes = [16, 128], strides = [1, 1]} : vector<16x384xf32> to vector<16x128xf32>
    %19 = vector.extract_strided_slice %9 {offsets = [0, 0], sizes = [1, 128], strides = [1, 1]} : vector<16x128xf32> to vector<1x128xf32>
    %20 = vector.broadcast %19 : vector<1x128xf32> to vector<16x128xf32>
    %21 = arith.addf %18, %20 : vector<16x128xf32>
    %22 = vector.shape_cast %21 : vector<16x128xf32> to vector<2x8x128xf32>
    %23 = vector.extract_strided_slice %17 {offsets = [0, 128], sizes = [16, 128], strides = [1, 1]} : vector<16x384xf32> to vector<16x128xf32>
    %24 = vector.extract_strided_slice %9 {offsets = [1, 0], sizes = [1, 128], strides = [1, 1]} : vector<16x128xf32> to vector<1x128xf32>
    %25 = vector.broadcast %24 : vector<1x128xf32> to vector<16x128xf32>
    %26 = arith.addf %23, %25 : vector<16x128xf32>
    %27 = vector.shape_cast %26 : vector<16x128xf32> to vector<2x8x128xf32>
    %28 = vector.extract_strided_slice %17 {offsets = [0, 256], sizes = [16, 128], strides = [1, 1]} : vector<16x384xf32> to vector<16x128xf32>
    %29 = vector.extract_strided_slice %9 {offsets = [2, 0], sizes = [1, 128], strides = [1, 1]} : vector<16x128xf32> to vector<1x128xf32>
    %30 = vector.broadcast %29 : vector<1x128xf32> to vector<16x128xf32>
    %31 = arith.addf %28, %30 : vector<16x128xf32>
    %32 = vector.shape_cast %31 : vector<16x128xf32> to vector<2x8x128xf32>
    %33 = arith.truncf %22 : vector<2x8x128xf32> to vector<2x8x128xbf16>
    %34 = arith.truncf %27 : vector<2x8x128xf32> to vector<2x8x128xbf16>
    "tpu.trace_start"() <{level = 10 : i32, message = "bqd,bkd->bqk"}> : () -> ()
    %cst_21 = arith.constant dense<0.000000e+00> : vector<2x8x8xf32>
    %35 = tpu.matmul %33, %34, %cst_21 {dimension_numbers = #tpu.dot_dimension_numbers<[2], [2], [1], [1], [0, 0, 0, 1, 1, 1], [0], [0]>} : vector<2x8x128xbf16>, vector<2x8x128xbf16>, vector<2x8x8xf32> -> vector<2x8x8xf32>
    %cst_22 = arith.constant -1.000000e+30 : f32
    "tpu.trace_stop"() : () -> ()
    %36 = vector.shape_cast %15 : vector<1x8x8xi1> to vector<1x8x8xi1>
    %37 = vector.broadcast %36 : vector<1x8x8xi1> to vector<2x8x8xi1>
    %38 = vector.broadcast %cst_22 : f32 to vector<2x8x8xf32>
    %39 = arith.select %37, %35, %38 : vector<2x8x8xi1>, vector<2x8x8xf32>
    %cst_23 = arith.constant dense<0xFF800000> : vector<2x8xf32>
    %40 = vector.multi_reduction <maximumf>, %39, %cst_23 [2] : vector<2x8x8xf32> to vector<2x8xf32>
    %41 = vector.shape_cast %40 : vector<2x8xf32> to vector<2x8x1xf32>
    %42 = vector.broadcast %41 : vector<2x8x1xf32> to vector<2x8x8xf32>
    %43 = arith.subf %39, %42 : vector<2x8x8xf32>
    %44 = math.exp %43 : vector<2x8x8xf32>
    %cst_24 = arith.constant dense<0.000000e+00> : vector<2x8xf32>
    %45 = vector.multi_reduction <add>, %44, %cst_24 [2] : vector<2x8x8xf32> to vector<2x8xf32>
    %46 = vector.shape_cast %45 : vector<2x8xf32> to vector<2x8x1xf32>
    %47 = tpu.reciprocal %46 {approx = true} : vector<2x8x1xf32> -> vector<2x8x1xf32>
    %48 = vector.broadcast %47 : vector<2x8x1xf32> to vector<2x8x8xf32>
    %49 = arith.mulf %44, %48 : vector<2x8x8xf32>
    %50 = arith.truncf %49 : vector<2x8x8xf32> to vector<2x8x8xbf16>
    %51 = arith.truncf %32 : vector<2x8x128xf32> to vector<2x8x128xbf16>
    "tpu.trace_start"() <{level = 10 : i32, message = "bqk,bkd->bqd"}> : () -> ()
    %cst_25 = arith.constant dense<0.000000e+00> : vector<2x8x128xf32>
    %52 = tpu.matmul %50, %51, %cst_25 {dimension_numbers = #tpu.dot_dimension_numbers<[2], [1], [1], [2], [0, 0, 0, 1, 1, 2], [0], [0]>} : vector<2x8x8xbf16>, vector<2x8x128xbf16>, vector<2x8x128xf32> -> vector<2x8x128xf32>
    "tpu.trace_stop"() : () -> ()
    %53 = vector.shape_cast %52 : vector<2x8x128xf32> to vector<16x128xf32>
    %54 = vector.extract_strided_slice %9 {offsets = [3, 0], sizes = [1, 128], strides = [1, 1]} : vector<16x128xf32> to vector<1x128xf32>
    %55 = arith.truncf %53 : vector<16x128xf32> to vector<16x128xbf16>
    %cst_26 = arith.constant dense<0.000000e+00> : vector<16x128xf32>
    %56 = tpu.matmul %55, %3, %cst_26 {dimension_numbers = #tpu.dot_dimension_numbers<[1], [0], [0], [1], [0, 0, 1, 1], [], []>} : vector<16x128xbf16>, vector<128x128xbf16>, vector<16x128xf32> -> vector<16x128xf32>
    %57 = vector.broadcast %54 : vector<1x128xf32> to vector<16x128xf32>
    %58 = arith.addf %56, %57 : vector<16x128xf32>
    %59 = arith.addf %10, %58 : vector<16x128xf32>
    %60 = vector.extract_strided_slice %9 {offsets = [10, 0], sizes = [1, 128], strides = [1, 1]} : vector<16x128xf32> to vector<1x128xf32>
    %61 = vector.extract_strided_slice %9 {offsets = [13, 0], sizes = [1, 128], strides = [1, 1]} : vector<16x128xf32> to vector<1x128xf32>
    %cst_27 = arith.constant dense<0.000000e+00> : vector<16xf32>
    %62 = vector.multi_reduction <add>, %59, %cst_27 [1] : vector<16x128xf32> to vector<16xf32>
    %63 = vector.shape_cast %62 : vector<16xf32> to vector<16x1xf32>
    %cst_28 = arith.constant 1.280000e+02 : f32
    %64 = vector.broadcast %cst_28 : f32 to vector<16x1xf32>
    %65 = arith.divf %63, %64 : vector<16x1xf32>
    %66 = vector.broadcast %65 : vector<16x1xf32> to vector<16x128xf32>
    %67 = arith.subf %59, %66 : vector<16x128xf32>
    %68 = arith.mulf %67, %67 : vector<16x128xf32>
    %cst_29 = arith.constant dense<0.000000e+00> : vector<16xf32>
    %69 = vector.multi_reduction <add>, %68, %cst_29 [1] : vector<16x128xf32> to vector<16xf32>
    %70 = vector.shape_cast %69 : vector<16xf32> to vector<16x1xf32>
    %cst_30 = arith.constant 1.280000e+02 : f32
    %71 = vector.broadcast %cst_30 : f32 to vector<16x1xf32>
    %72 = arith.divf %70, %71 : vector<16x1xf32>
    %73 = vector.broadcast %65 : vector<16x1xf32> to vector<16x128xf32>
    %74 = arith.subf %59, %73 : vector<16x128xf32>
    %cst_31 = arith.constant 9.99999974E-6 : f32
    %75 = vector.broadcast %cst_31 : f32 to vector<16x1xf32>
    %76 = arith.addf %72, %75 : vector<16x1xf32>
    %77 = math.rsqrt %76 : vector<16x1xf32>
    %78 = vector.broadcast %77 : vector<16x1xf32> to vector<16x128xf32>
    %79 = arith.mulf %74, %78 : vector<16x128xf32>
    %80 = vector.broadcast %60 : vector<1x128xf32> to vector<16x128xf32>
    %81 = arith.mulf %79, %80 : vector<16x128xf32>
    %82 = vector.broadcast %61 : vector<1x128xf32> to vector<16x128xf32>
    %83 = arith.addf %81, %82 : vector<16x128xf32>
    %84 = vector.extract_strided_slice %9 {offsets = [4, 0], sizes = [1, 128], strides = [1, 1]} : vector<16x128xf32> to vector<1x128xf32>
    %85 = arith.truncf %83 : vector<16x128xf32> to vector<16x128xbf16>
    %cst_32 = arith.constant dense<0.000000e+00> : vector<16x128xf32>
    %86 = tpu.matmul %85, %4, %cst_32 {dimension_numbers = #tpu.dot_dimension_numbers<[1], [0], [0], [1], [0, 0, 1, 1], [], []>} : vector<16x128xbf16>, vector<128x128xbf16>, vector<16x128xf32> -> vector<16x128xf32>
    %87 = vector.broadcast %84 : vector<1x128xf32> to vector<16x128xf32>
    %88 = arith.addf %86, %87 : vector<16x128xf32>
    %89 = vector.shape_cast %88 : vector<16x128xf32> to vector<2x8x128xf32>
    %cst_33 = arith.constant dense<0.000000e+00> : vector<32x256xf32>
    %90 = tpu.matmul %11, %5, %cst_33 {dimension_numbers = #tpu.dot_dimension_numbers<[1], [0], [0], [1], [0, 0, 1, 1], [], []>} : vector<32x128xbf16>, vector<128x256xbf16>, vector<32x256xf32> -> vector<32x256xf32>
    %91 = vector.extract_strided_slice %90 {offsets = [0, 0], sizes = [32, 128], strides = [1, 1]} : vector<32x256xf32> to vector<32x128xf32>
    %92 = vector.extract_strided_slice %9 {offsets = [5, 0], sizes = [1, 128], strides = [1, 1]} : vector<16x128xf32> to vector<1x128xf32>
    %93 = vector.broadcast %92 : vector<1x128xf32> to vector<32x128xf32>
    %94 = arith.addf %91, %93 : vector<32x128xf32>
    %95 = vector.shape_cast %94 : vector<32x128xf32> to vector<2x16x128xf32>
    %96 = vector.extract_strided_slice %90 {offsets = [0, 128], sizes = [32, 128], strides = [1, 1]} : vector<32x256xf32> to vector<32x128xf32>
    %97 = vector.extract_strided_slice %9 {offsets = [6, 0], sizes = [1, 128], strides = [1, 1]} : vector<16x128xf32> to vector<1x128xf32>
    %98 = vector.broadcast %97 : vector<1x128xf32> to vector<32x128xf32>
    %99 = arith.addf %96, %98 : vector<32x128xf32>
    %100 = vector.shape_cast %99 : vector<32x128xf32> to vector<2x16x128xf32>
    %101 = arith.truncf %89 : vector<2x8x128xf32> to vector<2x8x128xbf16>
    %102 = arith.truncf %95 : vector<2x16x128xf32> to vector<2x16x128xbf16>
    "tpu.trace_start"() <{level = 10 : i32, message = "bqd,bkd->bqk"}> : () -> ()
    %cst_34 = arith.constant dense<0.000000e+00> : vector<2x8x16xf32>
    %103 = tpu.matmul %101, %102, %cst_34 {dimension_numbers = #tpu.dot_dimension_numbers<[2], [2], [1], [1], [0, 0, 0, 1, 1, 1], [0], [0]>} : vector<2x8x128xbf16>, vector<2x16x128xbf16>, vector<2x8x16xf32> -> vector<2x8x16xf32>
    "tpu.trace_stop"() : () -> ()
    %cst_35 = arith.constant dense<0xFF800000> : vector<2x8xf32>
    %104 = vector.multi_reduction <maximumf>, %103, %cst_35 [2] : vector<2x8x16xf32> to vector<2x8xf32>
    %105 = vector.shape_cast %104 : vector<2x8xf32> to vector<2x8x1xf32>
    %106 = vector.broadcast %105 : vector<2x8x1xf32> to vector<2x8x16xf32>
    %107 = arith.subf %103, %106 : vector<2x8x16xf32>
    %108 = math.exp %107 : vector<2x8x16xf32>
    %cst_36 = arith.constant dense<0.000000e+00> : vector<2x8xf32>
    %109 = vector.multi_reduction <add>, %108, %cst_36 [2] : vector<2x8x16xf32> to vector<2x8xf32>
    %110 = vector.shape_cast %109 : vector<2x8xf32> to vector<2x8x1xf32>
    %111 = tpu.reciprocal %110 {approx = true} : vector<2x8x1xf32> -> vector<2x8x1xf32>
    %112 = vector.broadcast %111 : vector<2x8x1xf32> to vector<2x8x16xf32>
    %113 = arith.mulf %108, %112 : vector<2x8x16xf32>
    %114 = arith.truncf %113 : vector<2x8x16xf32> to vector<2x8x16xbf16>
    %115 = arith.truncf %100 : vector<2x16x128xf32> to vector<2x16x128xbf16>
    "tpu.trace_start"() <{level = 10 : i32, message = "bqk,bkd->bqd"}> : () -> ()
    %cst_37 = arith.constant dense<0.000000e+00> : vector<2x8x128xf32>
    %116 = tpu.matmul %114, %115, %cst_37 {dimension_numbers = #tpu.dot_dimension_numbers<[2], [1], [1], [2], [0, 0, 0, 1, 1, 2], [0], [0]>} : vector<2x8x16xbf16>, vector<2x16x128xbf16>, vector<2x8x128xf32> -> vector<2x8x128xf32>
    "tpu.trace_stop"() : () -> ()
    %117 = vector.shape_cast %116 : vector<2x8x128xf32> to vector<16x128xf32>
    %118 = vector.extract_strided_slice %9 {offsets = [7, 0], sizes = [1, 128], strides = [1, 1]} : vector<16x128xf32> to vector<1x128xf32>
    %119 = arith.truncf %117 : vector<16x128xf32> to vector<16x128xbf16>
    %cst_38 = arith.constant dense<0.000000e+00> : vector<16x128xf32>
    %120 = tpu.matmul %119, %6, %cst_38 {dimension_numbers = #tpu.dot_dimension_numbers<[1], [0], [0], [1], [0, 0, 1, 1], [], []>} : vector<16x128xbf16>, vector<128x128xbf16>, vector<16x128xf32> -> vector<16x128xf32>
    %121 = vector.broadcast %118 : vector<1x128xf32> to vector<16x128xf32>
    %122 = arith.addf %120, %121 : vector<16x128xf32>
    %123 = arith.addf %122, %83 : vector<16x128xf32>
    %124 = vector.extract_strided_slice %9 {offsets = [11, 0], sizes = [1, 128], strides = [1, 1]} : vector<16x128xf32> to vector<1x128xf32>
    %125 = vector.extract_strided_slice %9 {offsets = [14, 0], sizes = [1, 128], strides = [1, 1]} : vector<16x128xf32> to vector<1x128xf32>
    %cst_39 = arith.constant dense<0.000000e+00> : vector<16xf32>
    %126 = vector.multi_reduction <add>, %123, %cst_39 [1] : vector<16x128xf32> to vector<16xf32>
    %127 = vector.shape_cast %126 : vector<16xf32> to vector<16x1xf32>
    %cst_40 = arith.constant 1.280000e+02 : f32
    %128 = vector.broadcast %cst_40 : f32 to vector<16x1xf32>
    %129 = arith.divf %127, %128 : vector<16x1xf32>
    %130 = vector.broadcast %129 : vector<16x1xf32> to vector<16x128xf32>
    %131 = arith.subf %123, %130 : vector<16x128xf32>
    %132 = arith.mulf %131, %131 : vector<16x128xf32>
    %cst_41 = arith.constant dense<0.000000e+00> : vector<16xf32>
    %133 = vector.multi_reduction <add>, %132, %cst_41 [1] : vector<16x128xf32> to vector<16xf32>
    %134 = vector.shape_cast %133 : vector<16xf32> to vector<16x1xf32>
    %cst_42 = arith.constant 1.280000e+02 : f32
    %135 = vector.broadcast %cst_42 : f32 to vector<16x1xf32>
    %136 = arith.divf %134, %135 : vector<16x1xf32>
    %137 = vector.broadcast %129 : vector<16x1xf32> to vector<16x128xf32>
    %138 = arith.subf %123, %137 : vector<16x128xf32>
    %cst_43 = arith.constant 9.99999974E-6 : f32
    %139 = vector.broadcast %cst_43 : f32 to vector<16x1xf32>
    %140 = arith.addf %136, %139 : vector<16x1xf32>
    %141 = math.rsqrt %140 : vector<16x1xf32>
    %142 = vector.broadcast %141 : vector<16x1xf32> to vector<16x128xf32>
    %143 = arith.mulf %138, %142 : vector<16x128xf32>
    %144 = vector.broadcast %124 : vector<1x128xf32> to vector<16x128xf32>
    %145 = arith.mulf %143, %144 : vector<16x128xf32>
    %146 = vector.broadcast %125 : vector<1x128xf32> to vector<16x128xf32>
    %147 = arith.addf %145, %146 : vector<16x128xf32>
    %148 = vector.extract_strided_slice %9 {offsets = [8, 0], sizes = [1, 128], strides = [1, 1]} : vector<16x128xf32> to vector<1x128xf32>
    %149 = arith.truncf %147 : vector<16x128xf32> to vector<16x128xbf16>
    %cst_44 = arith.constant dense<0.000000e+00> : vector<16x128xf32>
    %150 = tpu.matmul %149, %7, %cst_44 {dimension_numbers = #tpu.dot_dimension_numbers<[1], [0], [0], [1], [0, 0, 1, 1], [], []>} : vector<16x128xbf16>, vector<128x128xbf16>, vector<16x128xf32> -> vector<16x128xf32>
    %151 = vector.broadcast %148 : vector<1x128xf32> to vector<16x128xf32>
    %152 = arith.addf %150, %151 : vector<16x128xf32>
    %cst_45 = arith.constant 0.000000e+00 : f32
    %153 = vector.broadcast %cst_45 : f32 to vector<16x128xf32>
    %154 = arith.maximumf %152, %153 : vector<16x128xf32>
    %155 = vector.extract_strided_slice %9 {offsets = [9, 0], sizes = [1, 128], strides = [1, 1]} : vector<16x128xf32> to vector<1x128xf32>
    %156 = arith.truncf %154 : vector<16x128xf32> to vector<16x128xbf16>
    %cst_46 = arith.constant dense<0.000000e+00> : vector<16x128xf32>
    %157 = tpu.matmul %156, %8, %cst_46 {dimension_numbers = #tpu.dot_dimension_numbers<[1], [0], [0], [1], [0, 0, 1, 1], [], []>} : vector<16x128xbf16>, vector<128x128xbf16>, vector<16x128xf32> -> vector<16x128xf32>
    %158 = vector.broadcast %155 : vector<1x128xf32> to vector<16x128xf32>
    %159 = arith.addf %157, %158 : vector<16x128xf32>
    %160 = arith.addf %147, %159 : vector<16x128xf32>
    %161 = vector.extract_strided_slice %9 {offsets = [12, 0], sizes = [1, 128], strides = [1, 1]} : vector<16x128xf32> to vector<1x128xf32>
    %162 = vector.extract_strided_slice %9 {offsets = [15, 0], sizes = [1, 128], strides = [1, 1]} : vector<16x128xf32> to vector<1x128xf32>
    %cst_47 = arith.constant dense<0.000000e+00> : vector<16xf32>
    %163 = vector.multi_reduction <add>, %160, %cst_47 [1] : vector<16x128xf32> to vector<16xf32>
    %164 = vector.shape_cast %163 : vector<16xf32> to vector<16x1xf32>
    %cst_48 = arith.constant 1.280000e+02 : f32
    %165 = vector.broadcast %cst_48 : f32 to vector<16x1xf32>
    %166 = arith.divf %164, %165 : vector<16x1xf32>
    %167 = vector.broadcast %166 : vector<16x1xf32> to vector<16x128xf32>
    %168 = arith.subf %160, %167 : vector<16x128xf32>
    %169 = arith.mulf %168, %168 : vector<16x128xf32>
    %cst_49 = arith.constant dense<0.000000e+00> : vector<16xf32>
    %170 = vector.multi_reduction <add>, %169, %cst_49 [1] : vector<16x128xf32> to vector<16xf32>
    %171 = vector.shape_cast %170 : vector<16xf32> to vector<16x1xf32>
    %cst_50 = arith.constant 1.280000e+02 : f32
    %172 = vector.broadcast %cst_50 : f32 to vector<16x1xf32>
    %173 = arith.divf %171, %172 : vector<16x1xf32>
    %174 = vector.broadcast %166 : vector<16x1xf32> to vector<16x128xf32>
    %175 = arith.subf %160, %174 : vector<16x128xf32>
    %cst_51 = arith.constant 9.99999974E-6 : f32
    %176 = vector.broadcast %cst_51 : f32 to vector<16x1xf32>
    %177 = arith.addf %173, %176 : vector<16x1xf32>
    %178 = math.rsqrt %177 : vector<16x1xf32>
    %179 = vector.broadcast %178 : vector<16x1xf32> to vector<16x128xf32>
    %180 = arith.mulf %175, %179 : vector<16x128xf32>
    %181 = vector.broadcast %161 : vector<1x128xf32> to vector<16x128xf32>
    %182 = arith.mulf %180, %181 : vector<16x128xf32>
    %183 = vector.broadcast %162 : vector<1x128xf32> to vector<16x128xf32>
    %184 = arith.addf %182, %183 : vector<16x128xf32>
    %185 = vector.shape_cast %184 : vector<16x128xf32> to vector<2x8x128xf32>
    %c0_52 = arith.constant 0 : index
    %c0_53 = arith.constant 0 : index
    %c0_54 = arith.constant 0 : index
    %186 = vector.load %arg11[%c0_52, %c0_53, %c0_54] : memref<2x8x128xf32, #tpu.memory_space<vmem>>, vector<2x8x128xf32>
    tpu.vector_store %arg11[%c0_52, %c0_53, %c0_54], %185 {strides = array<i32>} : memref<2x8x128xf32, #tpu.memory_space<vmem>>, vector<2x8x128xf32>,
    return
  }
  func.func @transform_0(%arg0: i32) -> (i32, i32, i32) {
    %c0_i32 = arith.constant 0 : i32
    %c0_i32_0 = arith.constant 0 : i32
    %c0_i32_1 = arith.constant 0 : i32
    return %arg0, %c0_i32, %c0_i32_0 : i32, i32, i32
  }
  func.func @transform_1(%arg0: i32) -> (i32, i32, i32) {
    %c0_i32 = arith.constant 0 : i32
    %c0_i32_0 = arith.constant 0 : i32
    %c0_i32_1 = arith.constant 0 : i32
    return %arg0, %c0_i32, %c0_i32_0 : i32, i32, i32
  }
  func.func @transform_2(%arg0: i32) -> (i32, i32) {
    %c0_i32 = arith.constant 0 : i32
    %c0_i32_0 = arith.constant 0 : i32
    %c0_i32_1 = arith.constant 0 : i32
    return %c0_i32, %c0_i32_0 : i32, i32
  }
  func.func @transform_3(%arg0: i32) -> (i32, i32) {
    %c0_i32 = arith.constant 0 : i32
    %c0_i32_0 = arith.constant 0 : i32
    %c0_i32_1 = arith.constant 0 : i32
    return %c0_i32, %c0_i32_0 : i32, i32
  }
  func.func @transform_4(%arg0: i32) -> (i32, i32) {
    %c0_i32 = arith.constant 0 : i32
    %c0_i32_0 = arith.constant 0 : i32
    %c0_i32_1 = arith.constant 0 : i32
    return %c0_i32, %c0_i32_0 : i32, i32
  }
  func.func @transform_5(%arg0: i32) -> (i32, i32) {
    %c0_i32 = arith.constant 0 : i32
    %c0_i32_0 = arith.constant 0 : i32
    %c0_i32_1 = arith.constant 0 : i32
    return %c0_i32, %c0_i32_0 : i32, i32
  }
  func.func @transform_6(%arg0: i32) -> (i32, i32) {
    %c0_i32 = arith.constant 0 : i32
    %c0_i32_0 = arith.constant 0 : i32
    %c0_i32_1 = arith.constant 0 : i32
    return %c0_i32, %c0_i32_0 : i32, i32
  }
  func.func @transform_7(%arg0: i32) -> (i32, i32) {
    %c0_i32 = arith.constant 0 : i32
    %c0_i32_0 = arith.constant 0 : i32
    %c0_i32_1 = arith.constant 0 : i32
    return %c0_i32, %c0_i32_0 : i32, i32
  }
  func.func @transform_8(%arg0: i32) -> (i32, i32) {
    %c0_i32 = arith.constant 0 : i32
    %c0_i32_0 = arith.constant 0 : i32
    %c0_i32_1 = arith.constant 0 : i32
    return %c0_i32, %c0_i32_0 : i32, i32
  }
  func.func @transform_9(%arg0: i32) -> (i32, i32) {
    %c0_i32 = arith.constant 0 : i32
    %c0_i32_0 = arith.constant 0 : i32
    %c0_i32_1 = arith.constant 0 : i32
    return %c0_i32, %c0_i32_0 : i32, i32
  }
  func.func @transform_10(%arg0: i32) -> (i32, i32, i32) {
    %c0_i32 = arith.constant 0 : i32
    %c0_i32_0 = arith.constant 0 : i32
    %c0_i32_1 = arith.constant 0 : i32
    return %arg0, %c0_i32, %c0_i32_0 : i32, i32, i32
  }
}

</mosaic_0001>

<llo_original>
// kernel: tpu_custom_call.1
$region0: #{tpu_custom_call.1}
  #allocation0 [shape = 'u32[]', space=smem, size = 0x4, offset = 0x4, fixed_abs, tag = 'smem constant byte address 0x4 - core index']
  #allocation1 [shape = 'u32[144,128]{1,0:T(1,128)}', space=vmem, size = 0x12000, scoped, tag = 'internal scratch']
  %s0 = inlined_call_operand.hbm [shape: f32[2,8,128], index: 0, kind: input, shape index: {}]
  %s1 = inlined_call_operand.hbm [shape: bf16[2,16,128], index: 1, kind: input, shape index: {}]
  %s2 = inlined_call_operand.hbm [shape: bf16[128,384], index: 2, kind: input, shape index: {}]
  %s3 = inlined_call_operand.hbm [shape: bf16[128,128], index: 3, kind: input, shape index: {}]
  %s4 = inlined_call_operand.hbm [shape: bf16[128,128], index: 4, kind: input, shape index: {}]
  %s5 = inlined_call_operand.hbm [shape: bf16[128,256], index: 5, kind: input, shape index: {}]
  %s6 = inlined_call_operand.hbm [shape: bf16[128,128], index: 6, kind: input, shape index: {}]
  %s7 = inlined_call_operand.hbm [shape: bf16[128,128], index: 7, kind: input, shape index: {}]
  %s8 = inlined_call_operand.hbm [shape: bf16[128,128], index: 8, kind: input, shape index: {}]
  %s9 = inlined_call_operand.vmem [shape: f32[16,128], index: 9, kind: input, shape index: {}]
  %s10 = inlined_call_operand.hbm [shape: f32[2,8,128], index: 10, kind: output, shape index: {}]
  %s11 = sld [smem:[#allocation0]]
  $region86: #{tpu_custom_call.1} parent=0
    _
  %s13 = ssub.s32 1, %s11
  %s14 = scalar_select 0, %s13, %s11
  $region1: #{tpu_custom_call.1} parent=0
    #allocation2 [shape = 'u8[8192]{0}', space=vmem, size = 0x2000, scoped, tag = 'input window, operand 0, single buffered']
    #allocation3 [shape = 's32[1]{0}', space=sflag, size = 0x4, scoped, tag = 'scoped memory for tpu_custom_call.1']
    #allocation4 [shape = 's32[1]{0}', space=sflag, size = 0x4, scoped, tag = 'scoped memory for tpu_custom_call.1']
    #allocation5 [shape = 'u8[8192]{0}', space=vmem, size = 0x2000, scoped, tag = 'input window, operand 1, single buffered']
    #allocation6 [shape = 's32[1]{0}', space=sflag, size = 0x4, scoped, tag = 'scoped memory for tpu_custom_call.1']
    #allocation7 [shape = 'u8[98304]{0}', space=vmem, size = 0x18000, scoped, tag = 'input window, operand 2, single buffered']
    #allocation8 [shape = 'u8[32768]{0}', space=vmem, size = 0x8000, scoped, tag = 'input window, operand 3, single buffered']
    #allocation9 [shape = 's32[1]{0}', space=sflag, size = 0x4, scoped, tag = 'scoped memory for tpu_custom_call.1']
    #allocation10 [shape = 'u8[32768]{0}', space=vmem, size = 0x8000, scoped, tag = 'input window, operand 4, single buffered']
    #allocation11 [shape = 'u8[65536]{0}', space=vmem, size = 0x10000, scoped, tag = 'input window, operand 5, single buffered']
    #allocation12 [shape = 's32[1]{0}', space=sflag, size = 0x4, scoped, tag = 'scoped memory for tpu_custom_call.1']
    #allocation13 [shape = 'u8[32768]{0}', space=vmem, size = 0x8000, scoped, tag = 'input window, operand 6, single buffered']
    #allocation14 [shape = 'u8[32768]{0}', space=vmem, size = 0x8000, scoped, tag = 'input window, operand 7, single buffered']
    #allocation15 [shape = 's32[1]{0}', space=sflag, size = 0x4, scoped, tag = 'scoped memory for tpu_custom_call.1']
    #allocation16 [shape = 'u8[32768]{0}', space=vmem, size = 0x8000, scoped, tag = 'input window, operand 8, single buffered']
    #allocation17 [shape = 'u8[8192]{0}', space=vmem, size = 0x2000, scoped, tag = 'output window, operand 0, single buffered']
    %15 = vsyncpa [#allocation3], 0
    %16 = vsyncpa [#allocation6], 0
    %17 = vsyncpa [#allocation9], 0
    %18 = vsyncpa [#allocation12], 0
    %19 = vsyncpa [#allocation15], 0
    %20 = vsyncpa [#allocation4], 0
    // Predicated region
    $region2: #{tpu_custom_call.1} parent=1 // pred_check
      _
    $region3: #{tpu_custom_call.1} parent=1 // pred_check_branch
      %22 = sbr.rel (0) target = $region5
    $region4: #{tpu_custom_call.1} parent=1 // pred_region
      %s24 = ssub.s32 256, 256
      %25 = vsyncadd [#allocation3], %s24
      %s26 = sshll.u32 [#allocation2], 4
      %s27 = int_to_ptr.vmem [resolvable:$true] %s26
      %32 = dma.hbm_to_vmem [thread:$0]  %s0, 256, %s27, [#allocation3], 128, 128, 8
    $region5: #{tpu_custom_call.1} parent=1 // pred_fallthru
      _
    // Predicated region
    $region6: #{tpu_custom_call.1} parent=1 // pred_check
      _
    $region7: #{tpu_custom_call.1} parent=1 // pred_check_branch
      %34 = sbr.rel (0) target = $region9
    $region8: #{tpu_custom_call.1} parent=1 // pred_region
      %s36 = ssub.s32 256, 256
      %37 = vsyncadd [#allocation6], %s36
      %s38 = sshll.u32 [#allocation5], 4
      %s39 = int_to_ptr.vmem [resolvable:$true] %s38
      %44 = dma.hbm_to_vmem [thread:$0]  %s1, 256, %s39, [#allocation6], 64, 64, 4
    $region9: #{tpu_custom_call.1} parent=1 // pred_fallthru
      _
    // Predicated region
    $region10: #{tpu_custom_call.1} parent=1 // pred_check
      _
    $region11: #{tpu_custom_call.1} parent=1 // pred_check_branch
      %46 = sbr.rel (0) target = $region13
    $region12: #{tpu_custom_call.1} parent=1 // pred_region
      %s48 = ssub.s32 3072, 3072
      %49 = vsyncadd [#allocation6], %s48
      %s50 = sshll.u32 [#allocation7], 4
      %s51 = int_to_ptr.vmem [resolvable:$true] %s50
      %56 = dma.hbm_to_vmem [thread:$0]  %s2, 3072, %s51, [#allocation6], 192, 192, 12
    $region13: #{tpu_custom_call.1} parent=1 // pred_fallthru
      _
    // Predicated region
    $region14: #{tpu_custom_call.1} parent=1 // pred_check
      _
    $region15: #{tpu_custom_call.1} parent=1 // pred_check_branch
      %58 = sbr.rel (0) target = $region17
    $region16: #{tpu_custom_call.1} parent=1 // pred_region
      %s60 = ssub.s32 1024, 1024
      %61 = vsyncadd [#allocation9], %s60
      %s62 = sshll.u32 [#allocation8], 4
      %s63 = int_to_ptr.vmem [resolvable:$true] %s62
      %68 = dma.hbm_to_vmem [thread:$0]  %s3, 1024, %s63, [#allocation9], 64, 64, 4
    $region17: #{tpu_custom_call.1} parent=1 // pred_fallthru
      _
    // Predicated region
    $region18: #{tpu_custom_call.1} parent=1 // pred_check
      _
    $region19: #{tpu_custom_call.1} parent=1 // pred_check_branch
      %70 = sbr.rel (0) target = $region21
    $region20: #{tpu_custom_call.1} parent=1 // pred_region
      %s72 = ssub.s32 1024, 1024
      %73 = vsyncadd [#allocation9], %s72
      %s74 = sshll.u32 [#allocation10], 4
      %s75 = int_to_ptr.vmem [resolvable:$true] %s74
      %80 = dma.hbm_to_vmem [thread:$0]  %s4, 1024, %s75, [#allocation9], 64, 64, 4
    $region21: #{tpu_custom_call.1} parent=1 // pred_fallthru
      _
    // Predicated region
    $region22: #{tpu_custom_call.1} parent=1 // pred_check
      _
    $region23: #{tpu_custom_call.1} parent=1 // pred_check_branch
      %82 = sbr.rel (0) target = $region25
    $region24: #{tpu_custom_call.1} parent=1 // pred_region
      %s84 = ssub.s32 2048, 2048
      %85 = vsyncadd [#allocation12], %s84
      %s86 = sshll.u32 [#allocation11], 4
      %s87 = int_to_ptr.vmem [resolvable:$true] %s86
      %92 = dma.hbm_to_vmem [thread:$0]  %s5, 2048, %s87, [#allocation12], 128, 128, 8
    $region25: #{tpu_custom_call.1} parent=1 // pred_fallthru
      _
    // Predicated region
    $region26: #{tpu_custom_call.1} parent=1 // pred_check
      _
    $region27: #{tpu_custom_call.1} parent=1 // pred_check_branch
      %94 = sbr.rel (0) target = $region29
    $region28: #{tpu_custom_call.1} parent=1 // pred_region
      %s96 = ssub.s32 1024, 1024
      %97 = vsyncadd [#allocation12], %s96
      %s98 = sshll.u32 [#allocation13], 4
      %s99 = int_to_ptr.vmem [resolvable:$true] %s98
      %104 = dma.hbm_to_vmem [thread:$0]  %s6, 1024, %s99, [#allocation12], 64, 64, 4
    $region29: #{tpu_custom_call.1} parent=1 // pred_fallthru
      _
    // Predicated region
    $region30: #{tpu_custom_call.1} parent=1 // pred_check
      _
    $region31: #{tpu_custom_call.1} parent=1 // pred_check_branch
      %106 = sbr.rel (0) target = $region33
    $region32: #{tpu_custom_call.1} parent=1 // pred_region
      %s108 = ssub.s32 1024, 1024
      %109 = vsyncadd [#allocation15], %s108
      %s110 = sshll.u32 [#allocation14], 4
      %s111 = int_to_ptr.vmem [resolvable:$true] %s110
      %116 = dma.hbm_to_vmem [thread:$0]  %s7, 1024, %s111, [#allocation15], 64, 64, 4
    $region33: #{tpu_custom_call.1} parent=1 // pred_fallthru
      _
    // Predicated region
    $region34: #{tpu_custom_call.1} parent=1 // pred_check
      _
    $region35: #{tpu_custom_call.1} parent=1 // pred_check_branch
      %118 = sbr.rel (0) target = $region37
    $region36: #{tpu_custom_call.1} parent=1 // pred_region
      %s120 = ssub.s32 1024, 1024
      %121 = vsyncadd [#allocation15], %s120
      %s122 = sshll.u32 [#allocation16], 4
      %s123 = int_to_ptr.vmem [resolvable:$true] %s122
      %128 = dma.hbm_to_vmem [thread:$0]  %s8, 1024, %s123, [#allocation15], 64, 64, 4
    $region37: #{tpu_custom_call.1} parent=1 // pred_fallthru
      _
    // Predicated region
    $region38: #{tpu_custom_call.1} parent=1 // pred_check
      _
    $region39: #{tpu_custom_call.1} parent=1 // pred_check_branch
      %130 = sbr.rel (0) target = $region41
    $region40: #{tpu_custom_call.1} parent=1 // pred_region
      _
    $region41: #{tpu_custom_call.1} parent=1 // pred_fallthru
      _
    // Predicated region
    $region42: #{tpu_custom_call.1} parent=1 // pred_check
      _
    $region43: #{tpu_custom_call.1} parent=1 // pred_check_branch
      %132 = sbr.rel (0) target = $region45
    $region44: #{tpu_custom_call.1} parent=1 // pred_region
      %133 = dma.done [#allocation3], 256
    $region45: #{tpu_custom_call.1} parent=1 // pred_fallthru
      _
    // Predicated region
    $region46: #{tpu_custom_call.1} parent=1 // pred_check
      _
    $region47: #{tpu_custom_call.1} parent=1 // pred_check_branch
      %135 = sbr.rel (0) target = $region49
    $region48: #{tpu_custom_call.1} parent=1 // pred_region
      %136 = dma.done [#allocation6], 256
    $region49: #{tpu_custom_call.1} parent=1 // pred_fallthru
      _
    // Predicated region
    $region50: #{tpu_custom_call.1} parent=1 // pred_check
      _
    $region51: #{tpu_custom_call.1} parent=1 // pred_check_branch
      %138 = sbr.rel (0) target = $region53
    $region52: #{tpu_custom_call.1} parent=1 // pred_region
      %139 = dma.done [#allocation6], 3072
    $region53: #{tpu_custom_call.1} parent=1 // pred_fallthru
      _
    // Predicated region
    $region54: #{tpu_custom_call.1} parent=1 // pred_check
      _
    $region55: #{tpu_custom_call.1} parent=1 // pred_check_branch
      %141 = sbr.rel (0) target = $region57
    $region56: #{tpu_custom_call.1} parent=1 // pred_region
      %142 = dma.done [#allocation9], 1024
    $region57: #{tpu_custom_call.1} parent=1 // pred_fallthru
      _
    // Predicated region
    $region58: #{tpu_custom_call.1} parent=1 // pred_check
      _
    $region59: #{tpu_custom_call.1} parent=1 // pred_check_branch
      %144 = sbr.rel (0) target = $region61
    $region60: #{tpu_custom_call.1} parent=1 // pred_region
      %145 = dma.done [#allocation9], 1024
    $region61: #{tpu_custom_call.1} parent=1 // pred_fallthru
      _
    // Predicated region
    $region62: #{tpu_custom_call.1} parent=1 // pred_check
      _
    $region63: #{tpu_custom_call.1} parent=1 // pred_check_branch
      %147 = sbr.rel (0) target = $region65
    $region64: #{tpu_custom_call.1} parent=1 // pred_region
      %148 = dma.done [#allocation12], 2048
    $region65: #{tpu_custom_call.1} parent=1 // pred_fallthru
      _
    // Predicated region
    $region66: #{tpu_custom_call.1} parent=1 // pred_check
      _
    $region67: #{tpu_custom_call.1} parent=1 // pred_check_branch
      %150 = sbr.rel (0) target = $region69
    $region68: #{tpu_custom_call.1} parent=1 // pred_region
      %151 = dma.done [#allocation12], 1024
    $region69: #{tpu_custom_call.1} parent=1 // pred_fallthru
      _
    // Predicated region
    $region70: #{tpu_custom_call.1} parent=1 // pred_check
      _
    $region71: #{tpu_custom_call.1} parent=1 // pred_check_branch
      %153 = sbr.rel (0) target = $region73
    $region72: #{tpu_custom_call.1} parent=1 // pred_region
      %154 = dma.done [#allocation15], 1024
    $region73: #{tpu_custom_call.1} parent=1 // pred_fallthru
      _
    // Predicated region
    $region74: #{tpu_custom_call.1} parent=1 // pred_check
      _
    $region75: #{tpu_custom_call.1} parent=1 // pred_check_branch
      %156 = sbr.rel (0) target = $region77
    $region76: #{tpu_custom_call.1} parent=1 // pred_region
      %157 = dma.done [#allocation15], 1024
    $region77: #{tpu_custom_call.1} parent=1 // pred_fallthru
      _
    %v159 = vld [vmem:[#allocation2] sm:$0xff]
    %v160 = vld [vmem:[#allocation2 + $0x8] sm:$0xff]
    %v161 = vld [vmem:[#allocation5] sm:$0xf]
    %v162 = vld [vmem:[#allocation5 + $0x4] sm:$0xf]
    %v163 = vld [vmem:[#allocation5 + $0x8] sm:$0xf]
    %v164 = vld [vmem:[#allocation5 + $0xc] sm:$0xf]
    %v165 = vld [vmem:[#allocation7] sm:$0xff]
    %v166 = vld [vmem:[#allocation7 + $0x8] sm:$0xf]
    %v167 = vld [vmem:[#allocation7 + $0xc] sm:$0xff]
    %v168 = vld [vmem:[#allocation7 + $0x14] sm:$0xf]
    %v169 = vld [vmem:[#allocation7 + $0x18] sm:$0xff]
    %v170 = vld [vmem:[#allocation7 + $0x20] sm:$0xf]
    %v171 = vld [vmem:[#allocation7 + $0x24] sm:$0xff]
    %v172 = vld [vmem:[#allocation7 + $0x2c] sm:$0xf]
    %v173 = vld [vmem:[#allocation7 + $0x30] sm:$0xff]
    %v174 = vld [vmem:[#allocation7 + $0x38] sm:$0xf]
    %v175 = vld [vmem:[#allocation7 + $0x3c] sm:$0xff]
    %v176 = vld [vmem:[#allocation7 + $0x44] sm:$0xf]
    %v177 = vld [vmem:[#allocation7 + $0x48] sm:$0xff]
    %v178 = vld [vmem:[#allocation7 + $0x50] sm:$0xf]
    %v179 = vld [vmem:[#allocation7 + $0x54] sm:$0xff]
    %v180 = vld [vmem:[#allocation7 + $0x5c] sm:$0xf]
    %v181 = vld [vmem:[#allocation7 + $0x60] sm:$0xff]
    %v182 = vld [vmem:[#allocation7 + $0x68] sm:$0xf]
    %v183 = vld [vmem:[#allocation7 + $0x6c] sm:$0xff]
    %v184 = vld [vmem:[#allocation7 + $0x74] sm:$0xf]
    %v185 = vld [vmem:[#allocation7 + $0x78] sm:$0xff]
    %v186 = vld [vmem:[#allocation7 + $0x80] sm:$0xf]
    %v187 = vld [vmem:[#allocation7 + $0x84] sm:$0xff]
    %v188 = vld [vmem:[#allocation7 + $0x8c] sm:$0xf]
    %v189 = vld [vmem:[#allocation7 + $0x90] sm:$0xff]
    %v190 = vld [vmem:[#allocation7 + $0x98] sm:$0xf]
    %v191 = vld [vmem:[#allocation7 + $0x9c] sm:$0xff]
    %v192 = vld [vmem:[#allocation7 + $0xa4] sm:$0xf]
    %v193 = vld [vmem:[#allocation7 + $0xa8] sm:$0xff]
    %v194 = vld [vmem:[#allocation7 + $0xb0] sm:$0xf]
    %v195 = vld [vmem:[#allocation7 + $0xb4] sm:$0xff]
    %v196 = vld [vmem:[#allocation7 + $0xbc] sm:$0xf]
    %v197 = vld [vmem:[#allocation8] sm:$0xf]
    %v198 = vld [vmem:[#allocation8 + $0x4] sm:$0xf]
    %v199 = vld [vmem:[#allocation8 + $0x8] sm:$0xf]
    %v200 = vld [vmem:[#allocation8 + $0xc] sm:$0xf]
    %v201 = vld [vmem:[#allocation8 + $0x10] sm:$0xf]
    %v202 = vld [vmem:[#allocation8 + $0x14] sm:$0xf]
    %v203 = vld [vmem:[#allocation8 + $0x18] sm:$0xf]
    %v204 = vld [vmem:[#allocation8 + $0x1c] sm:$0xf]
    %v205 = vld [vmem:[#allocation8 + $0x20] sm:$0xf]
    %v206 = vld [vmem:[#allocation8 + $0x24] sm:$0xf]
    %v207 = vld [vmem:[#allocation8 + $0x28] sm:$0xf]
    %v208 = vld [vmem:[#allocation8 + $0x2c] sm:$0xf]
    %v209 = vld [vmem:[#allocation8 + $0x30] sm:$0xf]
    %v210 = vld [vmem:[#allocation8 + $0x34] sm:$0xf]
    %v211 = vld [vmem:[#allocation8 + $0x38] sm:$0xf]
    %v212 = vld [vmem:[#allocation8 + $0x3c] sm:$0xf]
    %v213 = vld [vmem:[#allocation10] sm:$0xf]
    %v214 = vld [vmem:[#allocation10 + $0x4] sm:$0xf]
    %v215 = vld [vmem:[#allocation10 + $0x8] sm:$0xf]
    %v216 = vld [vmem:[#allocation10 + $0xc] sm:$0xf]
    %v217 = vld [vmem:[#allocation10 + $0x10] sm:$0xf]
    %v218 = vld [vmem:[#allocation10 + $0x14] sm:$0xf]
    %v219 = vld [vmem:[#allocation10 + $0x18] sm:$0xf]
    %v220 = vld [vmem:[#allocation10 + $0x1c] sm:$0xf]
    %v221 = vld [vmem:[#allocation10 + $0x20] sm:$0xf]
    %v222 = vld [vmem:[#allocation10 + $0x24] sm:$0xf]
    %v223 = vld [vmem:[#allocation10 + $0x28] sm:$0xf]
    %v224 = vld [vmem:[#allocation10 + $0x2c] sm:$0xf]
    %v225 = vld [vmem:[#allocation10 + $0x30] sm:$0xf]
    %v226 = vld [vmem:[#allocation10 + $0x34] sm:$0xf]
    %v227 = vld [vmem:[#allocation10 + $0x38] sm:$0xf]
    %v228 = vld [vmem:[#allocation10 + $0x3c] sm:$0xf]
    %v229 = vld [vmem:[#allocation11] sm:$0xff]
    %v230 = vld [vmem:[#allocation11 + $0x8] sm:$0xff]
    %v231 = vld [vmem:[#allocation11 + $0x10] sm:$0xff]
    %v232 = vld [vmem:[#allocation11 + $0x18] sm:$0xff]
    %v233 = vld [vmem:[#allocation11 + $0x20] sm:$0xff]
    %v234 = vld [vmem:[#allocation11 + $0x28] sm:$0xff]
    %v235 = vld [vmem:[#allocation11 + $0x30] sm:$0xff]
    %v236 = vld [vmem:[#allocation11 + $0x38] sm:$0xff]
    %v237 = vld [vmem:[#allocation11 + $0x40] sm:$0xff]
    %v238 = vld [vmem:[#allocation11 + $0x48] sm:$0xff]
    %v239 = vld [vmem:[#allocation11 + $0x50] sm:$0xff]
    %v240 = vld [vmem:[#allocation11 + $0x58] sm:$0xff]
    %v241 = vld [vmem:[#allocation11 + $0x60] sm:$0xff]
    %v242 = vld [vmem:[#allocation11 + $0x68] sm:$0xff]
    %v243 = vld [vmem:[#allocation11 + $0x70] sm:$0xff]
    %v244 = vld [vmem:[#allocation11 + $0x78] sm:$0xff]
    %v245 = vld [vmem:[#allocation13] sm:$0xf]
    %v246 = vld [vmem:[#allocation13 + $0x4] sm:$0xf]
    %v247 = vld [vmem:[#allocation13 + $0x8] sm:$0xf]
    %v248 = vld [vmem:[#allocation13 + $0xc] sm:$0xf]
    %v249 = vld [vmem:[#allocation13 + $0x10] sm:$0xf]
    %v250 = vld [vmem:[#allocation13 + $0x14] sm:$0xf]
    %v251 = vld [vmem:[#allocation13 + $0x18] sm:$0xf]
    %v252 = vld [vmem:[#allocation13 + $0x1c] sm:$0xf]
    %v253 = vld [vmem:[#allocation13 + $0x20] sm:$0xf]
    %v254 = vld [vmem:[#allocation13 + $0x24] sm:$0xf]
    %v255 = vld [vmem:[#allocation13 + $0x28] sm:$0xf]
    %v256 = vld [vmem:[#allocation13 + $0x2c] sm:$0xf]
    %v257 = vld [vmem:[#allocation13 + $0x30] sm:$0xf]
    %v258 = vld [vmem:[#allocation13 + $0x34] sm:$0xf]
    %v259 = vld [vmem:[#allocation13 + $0x38] sm:$0xf]
    %v260 = vld [vmem:[#allocation13 + $0x3c] sm:$0xf]
    %v261 = vld [vmem:[#allocation14] sm:$0xf]
    %v262 = vld [vmem:[#allocation14 + $0x4] sm:$0xf]
    %v263 = vld [vmem:[#allocation14 + $0x8] sm:$0xf]
    %v264 = vld [vmem:[#allocation14 + $0xc] sm:$0xf]
    %v265 = vld [vmem:[#allocation14 + $0x10] sm:$0xf]
    %v266 = vld [vmem:[#allocation14 + $0x14] sm:$0xf]
    %v267 = vld [vmem:[#allocation14 + $0x18] sm:$0xf]
    %v268 = vld [vmem:[#allocation14 + $0x1c] sm:$0xf]
    %v269 = vld [vmem:[#allocation14 + $0x20] sm:$0xf]
    %v270 = vld [vmem:[#allocation14 + $0x24] sm:$0xf]
    %v271 = vld [vmem:[#allocation14 + $0x28] sm:$0xf]
    %v272 = vld [vmem:[#allocation14 + $0x2c] sm:$0xf]
    %v273 = vld [vmem:[#allocation14 + $0x30] sm:$0xf]
    %v274 = vld [vmem:[#allocation14 + $0x34] sm:$0xf]
    %v275 = vld [vmem:[#allocation14 + $0x38] sm:$0xf]
    %v276 = vld [vmem:[#allocation14 + $0x3c] sm:$0xf]
    %v277 = vld [vmem:[#allocation16] sm:$0xf]
    %v278 = vld [vmem:[#allocation16 + $0x4] sm:$0xf]
    %v279 = vld [vmem:[#allocation16 + $0x8] sm:$0xf]
    %v280 = vld [vmem:[#allocation16 + $0xc] sm:$0xf]
    %v281 = vld [vmem:[#allocation16 + $0x10] sm:$0xf]
    %v282 = vld [vmem:[#allocation16 + $0x14] sm:$0xf]
    %v283 = vld [vmem:[#allocation16 + $0x18] sm:$0xf]
    %v284 = vld [vmem:[#allocation16 + $0x1c] sm:$0xf]
    %v285 = vld [vmem:[#allocation16 + $0x20] sm:$0xf]
    %v286 = vld [vmem:[#allocation16 + $0x24] sm:$0xf]
    %v287 = vld [vmem:[#allocation16 + $0x28] sm:$0xf]
    %v288 = vld [vmem:[#allocation16 + $0x2c] sm:$0xf]
    %v289 = vld [vmem:[#allocation16 + $0x30] sm:$0xf]
    %v290 = vld [vmem:[#allocation16 + $0x34] sm:$0xf]
    %v291 = vld [vmem:[#allocation16 + $0x38] sm:$0xf]
    %v292 = vld [vmem:[#allocation16 + $0x3c] sm:$0xf]
    %v293 = vld [vmem:[%s9] sm:$0xff]
    %v294 = vld [vmem:[%s9 + $0x8] sm:$0xff]
    %v295 = vlaneseq
    %v296 = vshrl.u32 %v295, 7
    %v297 = vlaneseq
    %v298 = vand.u32 %v297, 127
    %vm299 = vcmp.le.s32.totalorder %v298, %v296
    %v300 = vpack.c.bf16 %v160, %v159
    %v333 = vunpack.c.l.b16 %v165
    %v334 = vunpack.c.h.b16 %v165
    %v335 = vunpack.c.l.b16 %v166
    %v336 = vunpack.c.l.b16 %v167
    %v337 = vunpack.c.h.b16 %v167
    %v338 = vunpack.c.l.b16 %v168
    %v339 = vunpack.c.l.b16 %v169
    %v340 = vunpack.c.h.b16 %v169
    %v341 = vunpack.c.l.b16 %v170
    %v342 = vunpack.c.l.b16 %v171
    %v343 = vunpack.c.h.b16 %v171
    %v344 = vunpack.c.l.b16 %v172
    %v345 = vunpack.c.l.b16 %v173
    %v346 = vunpack.c.h.b16 %v173
    %v347 = vunpack.c.l.b16 %v174
    %v348 = vunpack.c.l.b16 %v175
    %v349 = vunpack.c.h.b16 %v175
    %v350 = vunpack.c.l.b16 %v176
    %v351 = vunpack.c.l.b16 %v177
    %v352 = vunpack.c.h.b16 %v177
    %v353 = vunpack.c.l.b16 %v178
    %v354 = vunpack.c.l.b16 %v179
    %v355 = vunpack.c.h.b16 %v179
    %v356 = vunpack.c.l.b16 %v180
    %v357 = vunpack.c.l.b16 %v181
    %v358 = vunpack.c.h.b16 %v181
    %v359 = vunpack.c.l.b16 %v182
    %v360 = vunpack.c.l.b16 %v183
    %v361 = vunpack.c.h.b16 %v183
    %v362 = vunpack.c.l.b16 %v184
    %v363 = vunpack.c.l.b16 %v185
    %v364 = vunpack.c.h.b16 %v185
    %v365 = vunpack.c.l.b16 %v186
    %v366 = vunpack.c.l.b16 %v187
    %v367 = vunpack.c.h.b16 %v187
    %v368 = vunpack.c.l.b16 %v188
    %v369 = vunpack.c.l.b16 %v189
    %v370 = vunpack.c.h.b16 %v189
    %v371 = vunpack.c.l.b16 %v190
    %v372 = vunpack.c.l.b16 %v191
    %v373 = vunpack.c.h.b16 %v191
    %v374 = vunpack.c.l.b16 %v192
    %v375 = vunpack.c.l.b16 %v193
    %v376 = vunpack.c.h.b16 %v193
    %v377 = vunpack.c.l.b16 %v194
    %v378 = vunpack.c.l.b16 %v195
    %v379 = vunpack.c.h.b16 %v195
    %v380 = vunpack.c.l.b16 %v196
    %v381 = vpack.c.b16 %v336, %v333
    %v382 = vpack.c.b16 %v337, %v334
    %v383 = vpack.c.b16 %v338, %v335
    %v384 = vpack.c.b16 %v342, %v339
    %v385 = vpack.c.b16 %v343, %v340
    %v386 = vpack.c.b16 %v344, %v341
    %v387 = vpack.c.b16 %v348, %v345
    %v388 = vpack.c.b16 %v349, %v346
    %v389 = vpack.c.b16 %v350, %v347
    %v390 = vpack.c.b16 %v354, %v351
    %v391 = vpack.c.b16 %v355, %v352
    %v392 = vpack.c.b16 %v356, %v353
    %v393 = vpack.c.b16 %v360, %v357
    %v394 = vpack.c.b16 %v361, %v358
    %v395 = vpack.c.b16 %v362, %v359
    %v396 = vpack.c.b16 %v366, %v363
    %v397 = vpack.c.b16 %v367, %v364
    %v398 = vpack.c.b16 %v368, %v365
    %v399 = vpack.c.b16 %v372, %v369
    %v400 = vpack.c.b16 %v373, %v370
    %v401 = vpack.c.b16 %v374, %v371
    %v402 = vpack.c.b16 %v378, %v375
    %v403 = vpack.c.b16 %v379, %v376
    %v404 = vpack.c.b16 %v380, %v377
    %429 = vmatprep.subr.bf16.mxu0 %v382
    %430 = vmatpush1.bf16.msra.mxu0 %v381
    %431 = vmatprep.subr.bf16.mxu0 %v385
    %432 = vmatpush1.bf16.msra.mxu0 %v384
    %433 = vmatprep.subr.bf16.mxu0 %v388
    %434 = vmatpush1.bf16.msra.mxu0 %v387
    %435 = vmatprep.subr.bf16.mxu0 %v391
    %436 = vmatpush1.bf16.msra.mxu0 %v390
    %437 = vmatprep.subr.bf16.mxu0 %v394
    %438 = vmatpush1.bf16.msra.mxu0 %v393
    %439 = vmatprep.subr.bf16.mxu0 %v397
    %440 = vmatpush1.bf16.msra.mxu0 %v396
    %441 = vmatprep.subr.bf16.mxu0 %v400
    %442 = vmatpush1.bf16.msra.mxu0 %v399
    %443 = vmatprep.subr.bf16.mxu0 %v403
    %444 = vmatpush1.bf16.msra.mxu0 %v402
    %445 = vmatprep.subr.bf16.mxu0 0
    %446 = vmatpush1.bf16.msra.mxu0 0
    %447 = vmatprep.subr.bf16.mxu0 0
    %448 = vmatpush1.bf16.msra.mxu0 0
    %449 = vmatprep.subr.bf16.mxu0 0
    %450 = vmatpush1.bf16.msra.mxu0 0
    %451 = vmatprep.subr.bf16.mxu0 0
    %452 = vmatpush1.bf16.msra.mxu0 0
    %453 = vmatprep.subr.bf16.mxu0 0
    %454 = vmatpush1.bf16.msra.mxu0 0
    %455 = vmatprep.subr.bf16.mxu0 0
    %456 = vmatpush1.bf16.msra.mxu0 0
    %457 = vmatprep.subr.bf16.mxu0 0
    %458 = vmatpush1.bf16.msra.mxu0 0
    %459 = vmatprep.subr.bf16.mxu0 0
    %460 = vmatpush1.bf16.msra.mxu0 0
    %461 = vmatprep.mubr.bf16.mxu0 0
    %462 = vmatmul.mubr.bf16.gmra.mrb[0].mxu0 %v300
    %v463 = vpop.f32.mrb[0].mxu0
    %v464 = vadd.f32 0.0, %v463
    %v465 = vpop.f32.mrb[0].mxu0
    %v466 = vadd.f32 0.0, %v465
    %v467 = vpop.f32.mrb[0].mxu0
    %v468 = vadd.f32 0.0, %v467
    %v469 = vpop.f32.mrb[0].mxu0
    %v470 = vadd.f32 0.0, %v469
    %471 = vdwg.mxu0
    %472 = vmatprep.subr.bf16.mxu0 0
    %473 = vmatpush1.bf16.msra.mxu0 %v383
    %474 = vmatprep.subr.bf16.mxu0 0
    %475 = vmatpush1.bf16.msra.mxu0 %v386
    %476 = vmatprep.subr.bf16.mxu0 0
    %477 = vmatpush1.bf16.msra.mxu0 %v389
    %478 = vmatprep.subr.bf16.mxu0 0
    %479 = vmatpush1.bf16.msra.mxu0 %v392
    %480 = vmatprep.subr.bf16.mxu0 0
    %481 = vmatpush1.bf16.msra.mxu0 %v395
    %482 = vmatprep.subr.bf16.mxu0 0
    %483 = vmatpush1.bf16.msra.mxu0 %v398
    %484 = vmatprep.subr.bf16.mxu0 0
    %485 = vmatpush1.bf16.msra.mxu0 %v401
    %486 = vmatprep.subr.bf16.mxu0 0
    %487 = vmatpush1.bf16.msra.mxu0 %v404
    %488 = vmatprep.subr.bf16.mxu0 0
    %489 = vmatpush1.bf16.msra.mxu0 0
    %490 = vmatprep.subr.bf16.mxu0 0
    %491 = vmatpush1.bf16.msra.mxu0 0
    %492 = vmatprep.subr.bf16.mxu0 0
    %493 = vmatpush1.bf16.msra.mxu0 0
    %494 = vmatprep.subr.bf16.mxu0 0
    %495 = vmatpush1.bf16.msra.mxu0 0
    %496 = vmatprep.subr.bf16.mxu0 0
    %497 = vmatpush1.bf16.msra.mxu0 0
    %498 = vmatprep.subr.bf16.mxu0 0
    %499 = vmatpush1.bf16.msra.mxu0 0
    %500 = vmatprep.subr.bf16.mxu0 0
    %501 = vmatpush1.bf16.msra.mxu0 0
    %502 = vmatprep.subr.bf16.mxu0 0
    %503 = vmatpush1.bf16.msra.mxu0 0
    %504 = vmatprep.mubr.bf16.mxu0 0
    %505 = vmatmul.mubr.bf16.gmra.mrb[0].mxu0 %v300
    %v506 = vpop.f32.mrb[0].mxu0
    %v507 = vadd.f32 0.0, %v506
    %v508 = vpop.f32.mrb[0].mxu0
    %v509 = vpop.f32.mrb[0].mxu0
    %v510 = vadd.f32 0.0, %v509
    %v511 = vpop.f32.mrb[0].mxu0
    %512 = vdwg.mxu0
    %v513 = vlaneseq
    %v514 = vshrl.u32 %v513, 7
    %v515 = vsub.s32 0, %v514
    %v516 = vrot.slane %v293, %v515
    %v517 = vadd.f32 %v464, %v516
    %v518 = vadd.f32 %v468, %v516
    %v519 = vlaneseq
    %v520 = vshrl.u32 %v519, 7
    %v521 = vsub.s32 1, %v520
    %v522 = vrot.slane %v293, %v521
    %v523 = vadd.f32 %v466, %v522
    %v524 = vadd.f32 %v470, %v522
    %v525 = vlaneseq
    %v526 = vshrl.u32 %v525, 7
    %v527 = vsub.s32 2, %v526
    %v528 = vrot.slane %v293, %v527
    %v529 = vadd.f32 %v507, %v528
    %v530 = vadd.f32 %v510, %v528
    %v531 = vpack.c.bf16 %v517, %v517
    %v532 = vpack.c.bf16 %v518, %v518
    %v533 = vpack.c.bf16 %v523, %v523
    %v534 = vpack.c.bf16 %v524, %v524
    %535 = vmatprep.subr.bf16.mxu0 0
    %536 = vmatpush1.bf16.xpose.msra.mxu0 %v533
    %537 = vmatprep.subr.bf16.mxu0 0
    %538 = vmatpush1.bf16.xpose.msra.mxu0 0
    %539 = vmatprep.subr.bf16.mxu0 0
    %540 = vmatpush1.bf16.xpose.msra.mxu0 0
    %541 = vmatprep.subr.bf16.mxu0 0
    %542 = vmatpush1.bf16.xpose.msra.mxu0 0
    %543 = vmatprep.subr.bf16.mxu0 0
    %544 = vmatpush1.bf16.xpose.msra.mxu0 0
    %545 = vmatprep.subr.bf16.mxu0 0
    %546 = vmatpush1.bf16.xpose.msra.mxu0 0
    %547 = vmatprep.subr.bf16.mxu0 0
    %548 = vmatpush1.bf16.xpose.msra.mxu0 0
    %549 = vmatprep.subr.bf16.mxu0 0
    %550 = vmatpush1.bf16.xpose.msra.mxu0 0
    %551 = vmatprep.subr.bf16.mxu0 0
    %552 = vmatpush1.bf16.xpose.msra.mxu0 0
    %553 = vmatprep.subr.bf16.mxu0 0
    %554 = vmatpush1.bf16.xpose.msra.mxu0 0
    %555 = vmatprep.subr.bf16.mxu0 0
    %556 = vmatpush1.bf16.xpose.msra.mxu0 0
    %557 = vmatprep.subr.bf16.mxu0 0
    %558 = vmatpush1.bf16.xpose.msra.mxu0 0
    %559 = vmatprep.subr.bf16.mxu0 0
    %560 = vmatpush1.bf16.xpose.msra.mxu0 0
    %561 = vmatprep.subr.bf16.mxu0 0
    %562 = vmatpush1.bf16.xpose.msra.mxu0 0
    %563 = vmatprep.subr.bf16.mxu0 0
    %564 = vmatpush1.bf16.xpose.msra.mxu0 0
    %565 = vmatprep.subr.bf16.mxu0 0
    %566 = vmatpush1.bf16.xpose.msra.mxu0 0
    %567 = vmatprep.mubr.bf16.mxu0 0
    %568 = vmatmul.mubr.bf16.gmra.mrb[0].mxu0 %v531
    %v569 = vpop.f32.mrb[0].mxu0
    %v570 = vadd.f32 0.0, %v569
    %v571 = vpop.f32.mrb[0].mxu0
    %v572 = vpop.f32.mrb[0].mxu0
    %v573 = vpop.f32.mrb[0].mxu0
    %574 = vdwg.mxu0
    %575 = vmatprep.subr.bf16.mxu0 0
    %576 = vmatpush1.bf16.xpose.msra.mxu0 %v534
    %577 = vmatprep.subr.bf16.mxu0 0
    %578 = vmatpush1.bf16.xpose.msra.mxu0 0
    %579 = vmatprep.subr.bf16.mxu0 0
    %580 = vmatpush1.bf16.xpose.msra.mxu0 0
    %581 = vmatprep.subr.bf16.mxu0 0
    %582 = vmatpush1.bf16.xpose.msra.mxu0 0
    %583 = vmatprep.subr.bf16.mxu0 0
    %584 = vmatpush1.bf16.xpose.msra.mxu0 0
    %585 = vmatprep.subr.bf16.mxu0 0
    %586 = vmatpush1.bf16.xpose.msra.mxu0 0
    %587 = vmatprep.subr.bf16.mxu0 0
    %588 = vmatpush1.bf16.xpose.msra.mxu0 0
    %589 = vmatprep.subr.bf16.mxu0 0
    %590 = vmatpush1.bf16.xpose.msra.mxu0 0
    %591 = vmatprep.subr.bf16.mxu0 0
    %592 = vmatpush1.bf16.xpose.msra.mxu0 0
    %593 = vmatprep.subr.bf16.mxu0 0
    %594 = vmatpush1.bf16.xpose.msra.mxu0 0
    %595 = vmatprep.subr.bf16.mxu0 0
    %596 = vmatpush1.bf16.xpose.msra.mxu0 0
    %597 = vmatprep.subr.bf16.mxu0 0
    %598 = vmatpush1.bf16.xpose.msra.mxu0 0
    %599 = vmatprep.subr.bf16.mxu0 0
    %600 = vmatpush1.bf16.xpose.msra.mxu0 0
    %601 = vmatprep.subr.bf16.mxu0 0
    %602 = vmatpush1.bf16.xpose.msra.mxu0 0
    %603 = vmatprep.subr.bf16.mxu0 0
    %604 = vmatpush1.bf16.xpose.msra.mxu0 0
    %605 = vmatprep.subr.bf16.mxu0 0
    %606 = vmatpush1.bf16.xpose.msra.mxu0 0
    %607 = vmatprep.mubr.bf16.mxu0 0
    %608 = vmatmul.mubr.bf16.gmra.mrb[0].mxu0 %v532
    %v609 = vpop.f32.mrb[0].mxu0
    %v610 = vadd.f32 0.0, %v609
    %v611 = vpop.f32.mrb[0].mxu0
    %v612 = vpop.f32.mrb[0].mxu0
    %v613 = vpop.f32.mrb[0].mxu0
    %614 = vdwg.mxu0
    %v615 = vsel %vm299, 1, 0
    %vm616 = vcmp.eq.s32.totalorder %v615, 1
    %v617 = vsel %vm616, %v570, -1e+30
    %v618 = vsel %vm616, %v610, -1e+30
    %vm619 = vcmask 64512
    %v620 = vsel %vm619, %v617, -inf
    %621 = vmax.xlane.f32.xlu0 %v620
    %v622 = vpop.xlane.xlu0 %621
    %v623 = vsel %vm619, %v618, -inf
    %624 = vmax.xlane.f32.xlu0 %v623
    %v625 = vpop.xlane.xlu0 %624
    %v626 = vsub.f32 %v617, %v622
    %v627 = vsub.f32 %v618, %v625
    %v628 = vmul.f32 %v626, 1.442695
    %v629 = vpow.pop %v628
    %v630 = vmul.f32 %v627, 1.442695
    %v631 = vpow.pop %v630
    %v632 = vsel %vm619, %v629, 0.0
    %633 = vadd.xlane.f32.xlu0 %v632
    %v634 = vpop.xlane.xlu0 %633
    %v635 = vsel %vm619, %v631, 0.0
    %636 = vadd.xlane.f32.xlu0 %v635
    %v637 = vpop.xlane.xlu0 %636
    %v638 = vrcp.pop %v634
    %v639 = vrcp.pop %v637
    %v640 = vmul.f32 %v629, %v638
    %v641 = vmul.f32 %v631, %v639
    %v642 = vpack.c.bf16 %v640, %v640
    %v643 = vpack.c.bf16 %v641, %v641
    %v644 = vpack.c.bf16 %v529, %v529
    %v645 = vpack.c.bf16 %v530, %v530
    %v647 = vsel %vm619, %v642, 0
    %vm649 = vcmask 1043456
    %v651 = vsel %vm649, %v644, 0
    %653 = vmatprep.subr.bf16.mxu0 0
    %654 = vmatpush1.bf16.msra.mxu0 %v651
    %655 = vmatprep.subr.bf16.mxu0 0
    %656 = vmatpush1.bf16.msra.mxu0 0
    %657 = vmatprep.subr.bf16.mxu0 0
    %658 = vmatpush1.bf16.msra.mxu0 0
    %659 = vmatprep.subr.bf16.mxu0 0
    %660 = vmatpush1.bf16.msra.mxu0 0
    %661 = vmatprep.subr.bf16.mxu0 0
    %662 = vmatpush1.bf16.msra.mxu0 0
    %663 = vmatprep.subr.bf16.mxu0 0
    %664 = vmatpush1.bf16.msra.mxu0 0
    %665 = vmatprep.subr.bf16.mxu0 0
    %666 = vmatpush1.bf16.msra.mxu0 0
    %667 = vmatprep.subr.bf16.mxu0 0
    %668 = vmatpush1.bf16.msra.mxu0 0
    %669 = vmatprep.subr.bf16.mxu0 0
    %670 = vmatpush1.bf16.msra.mxu0 0
    %671 = vmatprep.subr.bf16.mxu0 0
    %672 = vmatpush1.bf16.msra.mxu0 0
    %673 = vmatprep.subr.bf16.mxu0 0
    %674 = vmatpush1.bf16.msra.mxu0 0
    %675 = vmatprep.subr.bf16.mxu0 0
    %676 = vmatpush1.bf16.msra.mxu0 0
    %677 = vmatprep.subr.bf16.mxu0 0
    %678 = vmatpush1.bf16.msra.mxu0 0
    %679 = vmatprep.subr.bf16.mxu0 0
    %680 = vmatpush1.bf16.msra.mxu0 0
    %681 = vmatprep.subr.bf16.mxu0 0
    %682 = vmatpush1.bf16.msra.mxu0 0
    %683 = vmatprep.subr.bf16.mxu0 0
    %684 = vmatpush1.bf16.msra.mxu0 0
    %685 = vmatprep.mubr.bf16.mxu0 0
    %686 = vmatmul.mubr.bf16.gmra.mrb[0].mxu0 %v647
    %v687 = vpop.f32.mrb[0].mxu0
    %v688 = vadd.f32 0.0, %v687
    %v689 = vpop.f32.mrb[0].mxu0
    %v690 = vpop.f32.mrb[0].mxu0
    %v691 = vpop.f32.mrb[0].mxu0
    %692 = vdwg.mxu0
    %v694 = vsel %vm619, %v643, 0
    %v697 = vsel %vm649, %v645, 0
    %699 = vmatprep.subr.bf16.mxu0 0
    %700 = vmatpush1.bf16.msra.mxu0 %v697
    %701 = vmatprep.subr.bf16.mxu0 0
    %702 = vmatpush1.bf16.msra.mxu0 0
    %703 = vmatprep.subr.bf16.mxu0 0
    %704 = vmatpush1.bf16.msra.mxu0 0
    %705 = vmatprep.subr.bf16.mxu0 0
    %706 = vmatpush1.bf16.msra.mxu0 0
    %707 = vmatprep.subr.bf16.mxu0 0
    %708 = vmatpush1.bf16.msra.mxu0 0
    %709 = vmatprep.subr.bf16.mxu0 0
    %710 = vmatpush1.bf16.msra.mxu0 0
    %711 = vmatprep.subr.bf16.mxu0 0
    %712 = vmatpush1.bf16.msra.mxu0 0
    %713 = vmatprep.subr.bf16.mxu0 0
    %714 = vmatpush1.bf16.msra.mxu0 0
    %715 = vmatprep.subr.bf16.mxu0 0
    %716 = vmatpush1.bf16.msra.mxu0 0
    %717 = vmatprep.subr.bf16.mxu0 0
    %718 = vmatpush1.bf16.msra.mxu0 0
    %719 = vmatprep.subr.bf16.mxu0 0
    %720 = vmatpush1.bf16.msra.mxu0 0
    %721 = vmatprep.subr.bf16.mxu0 0
    %722 = vmatpush1.bf16.msra.mxu0 0
    %723 = vmatprep.subr.bf16.mxu0 0
    %724 = vmatpush1.bf16.msra.mxu0 0
    %725 = vmatprep.subr.bf16.mxu0 0
    %726 = vmatpush1.bf16.msra.mxu0 0
    %727 = vmatprep.subr.bf16.mxu0 0
    %728 = vmatpush1.bf16.msra.mxu0 0
    %729 = vmatprep.subr.bf16.mxu0 0
    %730 = vmatpush1.bf16.msra.mxu0 0
    %731 = vmatprep.mubr.bf16.mxu0 0
    %732 = vmatmul.mubr.bf16.gmra.mrb[0].mxu0 %v694
    %v733 = vpop.f32.mrb[0].mxu0
    %v734 = vadd.f32 0.0, %v733
    %v735 = vpop.f32.mrb[0].mxu0
    %v736 = vpop.f32.mrb[0].mxu0
    %v737 = vpop.f32.mrb[0].mxu0
    %738 = vdwg.mxu0
    %v739 = vpack.c.bf16 %v734, %v688
    %v740 = vlaneseq
    %v741 = vshrl.u32 %v740, 7
    %v742 = vsub.s32 3, %v741
    %v743 = vrot.slane %v293, %v742
    %v760 = vunpack.c.l.b16 %v197
    %v761 = vunpack.c.l.b16 %v198
    %v762 = vunpack.c.l.b16 %v199
    %v763 = vunpack.c.l.b16 %v200
    %v764 = vunpack.c.l.b16 %v201
    %v765 = vunpack.c.l.b16 %v202
    %v766 = vunpack.c.l.b16 %v203
    %v767 = vunpack.c.l.b16 %v204
    %v768 = vunpack.c.l.b16 %v205
    %v769 = vunpack.c.l.b16 %v206
    %v770 = vunpack.c.l.b16 %v207
    %v771 = vunpack.c.l.b16 %v208
    %v772 = vunpack.c.l.b16 %v209
    %v773 = vunpack.c.l.b16 %v210
    %v774 = vunpack.c.l.b16 %v211
    %v775 = vunpack.c.l.b16 %v212
    %v776 = vpack.c.b16 %v761, %v760
    %v777 = vpack.c.b16 %v763, %v762
    %v778 = vpack.c.b16 %v765, %v764
    %v779 = vpack.c.b16 %v767, %v766
    %v780 = vpack.c.b16 %v769, %v768
    %v781 = vpack.c.b16 %v771, %v770
    %v782 = vpack.c.b16 %v773, %v772
    %v783 = vpack.c.b16 %v775, %v774
    %792 = vmatprep.subr.bf16.mxu0 0
    %793 = vmatpush1.bf16.msra.mxu0 %v776
    %794 = vmatprep.subr.bf16.mxu0 0
    %795 = vmatpush1.bf16.msra.mxu0 %v777
    %796 = vmatprep.subr.bf16.mxu0 0
    %797 = vmatpush1.bf16.msra.mxu0 %v778
    %798 = vmatprep.subr.bf16.mxu0 0
    %799 = vmatpush1.bf16.msra.mxu0 %v779
    %800 = vmatprep.subr.bf16.mxu0 0
    %801 = vmatpush1.bf16.msra.mxu0 %v780
    %802 = vmatprep.subr.bf16.mxu0 0
    %803 = vmatpush1.bf16.msra.mxu0 %v781
    %804 = vmatprep.subr.bf16.mxu0 0
    %805 = vmatpush1.bf16.msra.mxu0 %v782
    %806 = vmatprep.subr.bf16.mxu0 0
    %807 = vmatpush1.bf16.msra.mxu0 %v783
    %808 = vmatprep.subr.bf16.mxu0 0
    %809 = vmatpush1.bf16.msra.mxu0 0
    %810 = vmatprep.subr.bf16.mxu0 0
    %811 = vmatpush1.bf16.msra.mxu0 0
    %812 = vmatprep.subr.bf16.mxu0 0
    %813 = vmatpush1.bf16.msra.mxu0 0
    %814 = vmatprep.subr.bf16.mxu0 0
    %815 = vmatpush1.bf16.msra.mxu0 0
    %816 = vmatprep.subr.bf16.mxu0 0
    %817 = vmatpush1.bf16.msra.mxu0 0
    %818 = vmatprep.subr.bf16.mxu0 0
    %819 = vmatpush1.bf16.msra.mxu0 0
    %820 = vmatprep.subr.bf16.mxu0 0
    %821 = vmatpush1.bf16.msra.mxu0 0
    %822 = vmatprep.subr.bf16.mxu0 0
    %823 = vmatpush1.bf16.msra.mxu0 0
    %824 = vmatprep.mubr.bf16.mxu0 0
    %825 = vmatmul.mubr.bf16.gmra.mrb[0].mxu0 %v739
    %v826 = vpop.f32.mrb[0].mxu0
    %v827 = vadd.f32 %v743, %v826
    %v828 = vpop.f32.mrb[0].mxu0
    %v829 = vpop.f32.mrb[0].mxu0
    %v830 = vadd.f32 %v743, %v829
    %v831 = vpop.f32.mrb[0].mxu0
    %832 = vdwg.mxu0
    %v833 = vadd.f32 %v159, %v827
    %v834 = vadd.f32 %v160, %v830
    %835 = vadd.xlane.f32.xlu0 %v833
    %v836 = vpop.xlane.xlu0 %835
    %837 = vadd.xlane.f32.xlu0 %v834
    %v838 = vpop.xlane.xlu0 %837
    %v839 = vrcp.pop 128.0
    %v840 = vmul.f32 %v836, %v839
    %v841 = vmul.f32 %v838, %v839
    %v842 = vsub.f32 %v833, %v840
    %v843 = vsub.f32 %v834, %v841
    %v844 = vmul.f32 %v842, %v842
    %v845 = vmul.f32 %v843, %v843
    %846 = vadd.xlane.f32.xlu0 %v844
    %v847 = vpop.xlane.xlu0 %846
    %848 = vadd.xlane.f32.xlu0 %v845
    %v849 = vpop.xlane.xlu0 %848
    %v850 = vmul.f32 %v847, %v839
    %v851 = vmul.f32 %v849, %v839
    %v852 = vadd.f32 %v850, 1e-05
    %v853 = vadd.f32 %v851, 1e-05
    %v854 = vrsqrt.pop %v852
    %v855 = vrsqrt.pop %v853
    %v856 = vmul.f32 %v842, %v854
    %v857 = vmul.f32 %v843, %v855
    %v858 = vlaneseq
    %v859 = vshrl.u32 %v858, 7
    %v860 = vsub.s32 2, %v859
    %v861 = vrot.slane %v294, %v860
    %v862 = vmul.f32 %v856, %v861
    %v863 = vmul.f32 %v857, %v861
    %v864 = vlaneseq
    %v865 = vshrl.u32 %v864, 7
    %v866 = vsub.s32 5, %v865
    %v867 = vrot.slane %v294, %v866
    %v868 = vadd.f32 %v862, %v867
    %v869 = vadd.f32 %v863, %v867
    %v870 = vpack.c.bf16 %v869, %v868
    %v871 = vlaneseq
    %v872 = vshrl.u32 %v871, 7
    %v873 = vsub.s32 4, %v872
    %v874 = vrot.slane %v293, %v873
    %v891 = vunpack.c.l.b16 %v213
    %v892 = vunpack.c.l.b16 %v214
    %v893 = vunpack.c.l.b16 %v215
    %v894 = vunpack.c.l.b16 %v216
    %v895 = vunpack.c.l.b16 %v217
    %v896 = vunpack.c.l.b16 %v218
    %v897 = vunpack.c.l.b16 %v219
    %v898 = vunpack.c.l.b16 %v220
    %v899 = vunpack.c.l.b16 %v221
    %v900 = vunpack.c.l.b16 %v222
    %v901 = vunpack.c.l.b16 %v223
    %v902 = vunpack.c.l.b16 %v224
    %v903 = vunpack.c.l.b16 %v225
    %v904 = vunpack.c.l.b16 %v226
    %v905 = vunpack.c.l.b16 %v227
    %v906 = vunpack.c.l.b16 %v228
    %v907 = vpack.c.b16 %v892, %v891
    %v908 = vpack.c.b16 %v894, %v893
    %v909 = vpack.c.b16 %v896, %v895
    %v910 = vpack.c.b16 %v898, %v897
    %v911 = vpack.c.b16 %v900, %v899
    %v912 = vpack.c.b16 %v902, %v901
    %v913 = vpack.c.b16 %v904, %v903
    %v914 = vpack.c.b16 %v906, %v905
    %923 = vmatprep.subr.bf16.mxu0 0
    %924 = vmatpush1.bf16.msra.mxu0 %v907
    %925 = vmatprep.subr.bf16.mxu0 0
    %926 = vmatpush1.bf16.msra.mxu0 %v908
    %927 = vmatprep.subr.bf16.mxu0 0
    %928 = vmatpush1.bf16.msra.mxu0 %v909
    %929 = vmatprep.subr.bf16.mxu0 0
    %930 = vmatpush1.bf16.msra.mxu0 %v910
    %931 = vmatprep.subr.bf16.mxu0 0
    %932 = vmatpush1.bf16.msra.mxu0 %v911
    %933 = vmatprep.subr.bf16.mxu0 0
    %934 = vmatpush1.bf16.msra.mxu0 %v912
    %935 = vmatprep.subr.bf16.mxu0 0
    %936 = vmatpush1.bf16.msra.mxu0 %v913
    %937 = vmatprep.subr.bf16.mxu0 0
    %938 = vmatpush1.bf16.msra.mxu0 %v914
    %939 = vmatprep.subr.bf16.mxu0 0
    %940 = vmatpush1.bf16.msra.mxu0 0
    %941 = vmatprep.subr.bf16.mxu0 0
    %942 = vmatpush1.bf16.msra.mxu0 0
    %943 = vmatprep.subr.bf16.mxu0 0
    %944 = vmatpush1.bf16.msra.mxu0 0
    %945 = vmatprep.subr.bf16.mxu0 0
    %946 = vmatpush1.bf16.msra.mxu0 0
    %947 = vmatprep.subr.bf16.mxu0 0
    %948 = vmatpush1.bf16.msra.mxu0 0
    %949 = vmatprep.subr.bf16.mxu0 0
    %950 = vmatpush1.bf16.msra.mxu0 0
    %951 = vmatprep.subr.bf16.mxu0 0
    %952 = vmatpush1.bf16.msra.mxu0 0
    %953 = vmatprep.subr.bf16.mxu0 0
    %954 = vmatpush1.bf16.msra.mxu0 0
    %955 = vmatprep.mubr.bf16.mxu0 0
    %956 = vmatmul.mubr.bf16.gmra.mrb[0].mxu0 %v870
    %v957 = vpop.f32.mrb[0].mxu0
    %v958 = vadd.f32 %v874, %v957
    %v959 = vpop.f32.mrb[0].mxu0
    %v960 = vpop.f32.mrb[0].mxu0
    %v961 = vadd.f32 %v874, %v960
    %v962 = vpop.f32.mrb[0].mxu0
    %963 = vdwg.mxu0
    %v968 = vunpack.c.l.b16 %v161
    %v969 = vunpack.c.l.b16 %v162
    %v970 = vunpack.c.l.b16 %v163
    %v971 = vunpack.c.l.b16 %v164
    %v972 = vpack.c.b16 %v969, %v968
    %v973 = vpack.c.b16 %v971, %v970
    %v992 = vunpack.c.l.b16 %v229
    %v993 = vunpack.c.h.b16 %v229
    %v994 = vunpack.c.l.b16 %v230
    %v995 = vunpack.c.h.b16 %v230
    %v996 = vunpack.c.l.b16 %v231
    %v997 = vunpack.c.h.b16 %v231
    %v998 = vunpack.c.l.b16 %v232
    %v999 = vunpack.c.h.b16 %v232
    %v1000 = vunpack.c.l.b16 %v233
    %v1001 = vunpack.c.h.b16 %v233
    %v1002 = vunpack.c.l.b16 %v234
    %v1003 = vunpack.c.h.b16 %v234
    %v1004 = vunpack.c.l.b16 %v235
    %v1005 = vunpack.c.h.b16 %v235
    %v1006 = vunpack.c.l.b16 %v236
    %v1007 = vunpack.c.h.b16 %v236
    %v1008 = vunpack.c.l.b16 %v237
    %v1009 = vunpack.c.h.b16 %v237
    %v1010 = vunpack.c.l.b16 %v238
    %v1011 = vunpack.c.h.b16 %v238
    %v1012 = vunpack.c.l.b16 %v239
    %v1013 = vunpack.c.h.b16 %v239
    %v1014 = vunpack.c.l.b16 %v240
    %v1015 = vunpack.c.h.b16 %v240
    %v1016 = vunpack.c.l.b16 %v241
    %v1017 = vunpack.c.h.b16 %v241
    %v1018 = vunpack.c.l.b16 %v242
    %v1019 = vunpack.c.h.b16 %v242
    %v1020 = vunpack.c.l.b16 %v243
    %v1021 = vunpack.c.h.b16 %v243
    %v1022 = vunpack.c.l.b16 %v244
    %v1023 = vunpack.c.h.b16 %v244
    %v1024 = vpack.c.b16 %v994, %v992
    %v1025 = vpack.c.b16 %v995, %v993
    %v1026 = vpack.c.b16 %v998, %v996
    %v1027 = vpack.c.b16 %v999, %v997
    %v1028 = vpack.c.b16 %v1002, %v1000
    %v1029 = vpack.c.b16 %v1003, %v1001
    %v1030 = vpack.c.b16 %v1006, %v1004
    %v1031 = vpack.c.b16 %v1007, %v1005
    %v1032 = vpack.c.b16 %v1010, %v1008
    %v1033 = vpack.c.b16 %v1011, %v1009
    %v1034 = vpack.c.b16 %v1014, %v1012
    %v1035 = vpack.c.b16 %v1015, %v1013
    %v1036 = vpack.c.b16 %v1018, %v1016
    %v1037 = vpack.c.b16 %v1019, %v1017
    %v1038 = vpack.c.b16 %v1022, %v1020
    %v1039 = vpack.c.b16 %v1023, %v1021
    %1056 = vmatprep.subr.bf16.mxu0 %v1025
    %1057 = vmatpush1.bf16.msra.mxu0 %v1024
    %1058 = vmatprep.subr.bf16.mxu0 %v1027
    %1059 = vmatpush1.bf16.msra.mxu0 %v1026
    %1060 = vmatprep.subr.bf16.mxu0 %v1029
    %1061 = vmatpush1.bf16.msra.mxu0 %v1028
    %1062 = vmatprep.subr.bf16.mxu0 %v1031
    %1063 = vmatpush1.bf16.msra.mxu0 %v1030
    %1064 = vmatprep.subr.bf16.mxu0 %v1033
    %1065 = vmatpush1.bf16.msra.mxu0 %v1032
    %1066 = vmatprep.subr.bf16.mxu0 %v1035
    %1067 = vmatpush1.bf16.msra.mxu0 %v1034
    %1068 = vmatprep.subr.bf16.mxu0 %v1037
    %1069 = vmatpush1.bf16.msra.mxu0 %v1036
    %1070 = vmatprep.subr.bf16.mxu0 %v1039
    %1071 = vmatpush1.bf16.msra.mxu0 %v1038
    %1072 = vmatprep.subr.bf16.mxu0 0
    %1073 = vmatpush1.bf16.msra.mxu0 0
    %1074 = vmatprep.subr.bf16.mxu0 0
    %1075 = vmatpush1.bf16.msra.mxu0 0
    %1076 = vmatprep.subr.bf16.mxu0 0
    %1077 = vmatpush1.bf16.msra.mxu0 0
    %1078 = vmatprep.subr.bf16.mxu0 0
    %1079 = vmatpush1.bf16.msra.mxu0 0
    %1080 = vmatprep.subr.bf16.mxu0 0
    %1081 = vmatpush1.bf16.msra.mxu0 0
    %1082 = vmatprep.subr.bf16.mxu0 0
    %1083 = vmatpush1.bf16.msra.mxu0 0
    %1084 = vmatprep.subr.bf16.mxu0 0
    %1085 = vmatpush1.bf16.msra.mxu0 0
    %1086 = vmatprep.subr.bf16.mxu0 0
    %1087 = vmatpush1.bf16.msra.mxu0 0
    %1088 = vmatprep.mubr.bf16.mxu0 0
    %1089 = vmatmul.mubr.bf16.gmra.mrb[0].mxu0 %v972
    %v1090 = vpop.f32.mrb[0].mxu0
    %v1091 = vadd.f32 0.0, %v1090
    %v1092 = vpop.f32.mrb[0].mxu0
    %v1093 = vadd.f32 0.0, %v1092
    %v1094 = vpop.f32.mrb[0].mxu0
    %v1095 = vadd.f32 0.0, %v1094
    %v1096 = vpop.f32.mrb[0].mxu0
    %v1097 = vadd.f32 0.0, %v1096
    %1098 = vmatprep.mubr.bf16.mxu0 0
    %1099 = vmatmul.mubr.bf16.gmra.mrb[0].mxu0 %v973
    %v1100 = vpop.f32.mrb[0].mxu0
    %v1101 = vadd.f32 0.0, %v1100
    %v1102 = vpop.f32.mrb[0].mxu0
    %v1103 = vadd.f32 0.0, %v1102
    %v1104 = vpop.f32.mrb[0].mxu0
    %v1105 = vadd.f32 0.0, %v1104
    %v1106 = vpop.f32.mrb[0].mxu0
    %v1107 = vadd.f32 0.0, %v1106
    %1108 = vdwg.mxu0
    %v1109 = vlaneseq
    %v1110 = vshrl.u32 %v1109, 7
    %v1111 = vsub.s32 5, %v1110
    %v1112 = vrot.slane %v293, %v1111
    %v1113 = vadd.f32 %v1091, %v1112
    %v1114 = vadd.f32 %v1095, %v1112
    %v1115 = vadd.f32 %v1101, %v1112
    %v1116 = vadd.f32 %v1105, %v1112
    %v1117 = vlaneseq
    %v1118 = vshrl.u32 %v1117, 7
    %v1119 = vsub.s32 6, %v1118
    %v1120 = vrot.slane %v293, %v1119
    %v1121 = vadd.f32 %v1093, %v1120
    %v1122 = vadd.f32 %v1097, %v1120
    %v1123 = vadd.f32 %v1103, %v1120
    %v1124 = vadd.f32 %v1107, %v1120
    %v1125 = vpack.c.bf16 %v958, %v958
    %v1126 = vpack.c.bf16 %v961, %v961
    %v1127 = vpack.c.bf16 %v1114, %v1113
    %v1128 = vpack.c.bf16 %v1116, %v1115
    %1129 = vmatprep.subr.bf16.mxu0 0
    %1130 = vmatpush1.bf16.xpose.msra.mxu0 %v1127
    %1131 = vmatprep.subr.bf16.mxu0 0
    %1132 = vmatpush1.bf16.xpose.msra.mxu0 0
    %1133 = vmatprep.subr.bf16.mxu0 0
    %1134 = vmatpush1.bf16.xpose.msra.mxu0 0
    %1135 = vmatprep.subr.bf16.mxu0 0
    %1136 = vmatpush1.bf16.xpose.msra.mxu0 0
    %1137 = vmatprep.subr.bf16.mxu0 0
    %1138 = vmatpush1.bf16.xpose.msra.mxu0 0
    %1139 = vmatprep.subr.bf16.mxu0 0
    %1140 = vmatpush1.bf16.xpose.msra.mxu0 0
    %1141 = vmatprep.subr.bf16.mxu0 0
    %1142 = vmatpush1.bf16.xpose.msra.mxu0 0
    %1143 = vmatprep.subr.bf16.mxu0 0
    %1144 = vmatpush1.bf16.xpose.msra.mxu0 0
    %1145 = vmatprep.subr.bf16.mxu0 0
    %1146 = vmatpush1.bf16.xpose.msra.mxu0 0
    %1147 = vmatprep.subr.bf16.mxu0 0
    %1148 = vmatpush1.bf16.xpose.msra.mxu0 0
    %1149 = vmatprep.subr.bf16.mxu0 0
    %1150 = vmatpush1.bf16.xpose.msra.mxu0 0
    %1151 = vmatprep.subr.bf16.mxu0 0
    %1152 = vmatpush1.bf16.xpose.msra.mxu0 0
    %1153 = vmatprep.subr.bf16.mxu0 0
    %1154 = vmatpush1.bf16.xpose.msra.mxu0 0
    %1155 = vmatprep.subr.bf16.mxu0 0
    %1156 = vmatpush1.bf16.xpose.msra.mxu0 0
    %1157 = vmatprep.subr.bf16.mxu0 0
    %1158 = vmatpush1.bf16.xpose.msra.mxu0 0
    %1159 = vmatprep.subr.bf16.mxu0 0
    %1160 = vmatpush1.bf16.xpose.msra.mxu0 0
    %1161 = vmatprep.mubr.bf16.mxu0 0
    %1162 = vmatmul.mubr.bf16.gmra.mrb[0].mxu0 %v1125
    %v1163 = vpop.f32.mrb[0].mxu0
    %v1164 = vadd.f32 0.0, %v1163
    %v1165 = vpop.f32.mrb[0].mxu0
    %v1166 = vpop.f32.mrb[0].mxu0
    %v1167 = vpop.f32.mrb[0].mxu0
    %1168 = vdwg.mxu0
    %1169 = vmatprep.subr.bf16.mxu0 0
    %1170 = vmatpush1.bf16.xpose.msra.mxu0 %v1128
    %1171 = vmatprep.subr.bf16.mxu0 0
    %1172 = vmatpush1.bf16.xpose.msra.mxu0 0
    %1173 = vmatprep.subr.bf16.mxu0 0
    %1174 = vmatpush1.bf16.xpose.msra.mxu0 0
    %1175 = vmatprep.subr.bf16.mxu0 0
    %1176 = vmatpush1.bf16.xpose.msra.mxu0 0
    %1177 = vmatprep.subr.bf16.mxu0 0
    %1178 = vmatpush1.bf16.xpose.msra.mxu0 0
    %1179 = vmatprep.subr.bf16.mxu0 0
    %1180 = vmatpush1.bf16.xpose.msra.mxu0 0
    %1181 = vmatprep.subr.bf16.mxu0 0
    %1182 = vmatpush1.bf16.xpose.msra.mxu0 0
    %1183 = vmatprep.subr.bf16.mxu0 0
    %1184 = vmatpush1.bf16.xpose.msra.mxu0 0
    %1185 = vmatprep.subr.bf16.mxu0 0
    %1186 = vmatpush1.bf16.xpose.msra.mxu0 0
    %1187 = vmatprep.subr.bf16.mxu0 0
    %1188 = vmatpush1.bf16.xpose.msra.mxu0 0
    %1189 = vmatprep.subr.bf16.mxu0 0
    %1190 = vmatpush1.bf16.xpose.msra.mxu0 0
    %1191 = vmatprep.subr.bf16.mxu0 0
    %1192 = vmatpush1.bf16.xpose.msra.mxu0 0
    %1193 = vmatprep.subr.bf16.mxu0 0
    %1194 = vmatpush1.bf16.xpose.msra.mxu0 0
    %1195 = vmatprep.subr.bf16.mxu0 0
    %1196 = vmatpush1.bf16.xpose.msra.mxu0 0
    %1197 = vmatprep.subr.bf16.mxu0 0
    %1198 = vmatpush1.bf16.xpose.msra.mxu0 0
    %1199 = vmatprep.subr.bf16.mxu0 0
    %1200 = vmatpush1.bf16.xpose.msra.mxu0 0
    %1201 = vmatprep.mubr.bf16.mxu0 0
    %1202 = vmatmul.mubr.bf16.gmra.mrb[0].mxu0 %v1126
    %v1203 = vpop.f32.mrb[0].mxu0
    %v1204 = vadd.f32 0.0, %v1203
    %v1205 = vpop.f32.mrb[0].mxu0
    %v1206 = vpop.f32.mrb[0].mxu0
    %v1207 = vpop.f32.mrb[0].mxu0
    %1208 = vdwg.mxu0
    %vm1209 = vcmask 130048
    %v1210 = vsel %vm1209, %v1164, -inf
    %1211 = vmax.xlane.f32.xlu0 %v1210
    %v1212 = vpop.xlane.xlu0 %1211
    %v1213 = vsel %vm1209, %v1204, -inf
    %1214 = vmax.xlane.f32.xlu0 %v1213
    %v1215 = vpop.xlane.xlu0 %1214
    %v1216 = vsub.f32 %v1164, %v1212
    %v1217 = vsub.f32 %v1204, %v1215
    %v1218 = vmul.f32 %v1216, 1.442695
    %v1219 = vpow.pop %v1218
    %v1220 = vmul.f32 %v1217, 1.442695
    %v1221 = vpow.pop %v1220
    %v1222 = vsel %vm1209, %v1219, 0.0
    %1223 = vadd.xlane.f32.xlu0 %v1222
    %v1224 = vpop.xlane.xlu0 %1223
    %v1225 = vsel %vm1209, %v1221, 0.0
    %1226 = vadd.xlane.f32.xlu0 %v1225
    %v1227 = vpop.xlane.xlu0 %1226
    %v1228 = vrcp.pop %v1224
    %v1229 = vrcp.pop %v1227
    %v1230 = vmul.f32 %v1219, %v1228
    %v1231 = vmul.f32 %v1221, %v1229
    %v1232 = vpack.c.bf16 %v1230, %v1230
    %v1233 = vpack.c.bf16 %v1231, %v1231
    %v1234 = vpack.c.bf16 %v1122, %v1121
    %v1235 = vpack.c.bf16 %v1124, %v1123
    %v1237 = vsel %vm1209, %v1232, 0
    %1239 = vmatprep.subr.bf16.mxu0 0
    %1240 = vmatpush1.bf16.msra.mxu0 %v1234
    %1241 = vmatprep.subr.bf16.mxu0 0
    %1242 = vmatpush1.bf16.msra.mxu0 0
    %1243 = vmatprep.subr.bf16.mxu0 0
    %1244 = vmatpush1.bf16.msra.mxu0 0
    %1245 = vmatprep.subr.bf16.mxu0 0
    %1246 = vmatpush1.bf16.msra.mxu0 0
    %1247 = vmatprep.subr.bf16.mxu0 0
    %1248 = vmatpush1.bf16.msra.mxu0 0
    %1249 = vmatprep.subr.bf16.mxu0 0
    %1250 = vmatpush1.bf16.msra.mxu0 0
    %1251 = vmatprep.subr.bf16.mxu0 0
    %1252 = vmatpush1.bf16.msra.mxu0 0
    %1253 = vmatprep.subr.bf16.mxu0 0
    %1254 = vmatpush1.bf16.msra.mxu0 0
    %1255 = vmatprep.subr.bf16.mxu0 0
    %1256 = vmatpush1.bf16.msra.mxu0 0
    %1257 = vmatprep.subr.bf16.mxu0 0
    %1258 = vmatpush1.bf16.msra.mxu0 0
    %1259 = vmatprep.subr.bf16.mxu0 0
    %1260 = vmatpush1.bf16.msra.mxu0 0
    %1261 = vmatprep.subr.bf16.mxu0 0
    %1262 = vmatpush1.bf16.msra.mxu0 0
    %1263 = vmatprep.subr.bf16.mxu0 0
    %1264 = vmatpush1.bf16.msra.mxu0 0
    %1265 = vmatprep.subr.bf16.mxu0 0
    %1266 = vmatpush1.bf16.msra.mxu0 0
    %1267 = vmatprep.subr.bf16.mxu0 0
    %1268 = vmatpush1.bf16.msra.mxu0 0
    %1269 = vmatprep.subr.bf16.mxu0 0
    %1270 = vmatpush1.bf16.msra.mxu0 0
    %1271 = vmatprep.mubr.bf16.mxu0 0
    %1272 = vmatmul.mubr.bf16.gmra.mrb[0].mxu0 %v1237
    %v1273 = vpop.f32.mrb[0].mxu0
    %v1274 = vadd.f32 0.0, %v1273
    %v1275 = vpop.f32.mrb[0].mxu0
    %v1276 = vpop.f32.mrb[0].mxu0
    %v1277 = vpop.f32.mrb[0].mxu0
    %1278 = vdwg.mxu0
    %v1280 = vsel %vm1209, %v1233, 0
    %1282 = vmatprep.subr.bf16.mxu0 0
    %1283 = vmatpush1.bf16.msra.mxu0 %v1235
    %1284 = vmatprep.subr.bf16.mxu0 0
    %1285 = vmatpush1.bf16.msra.mxu0 0
    %1286 = vmatprep.subr.bf16.mxu0 0
    %1287 = vmatpush1.bf16.msra.mxu0 0
    %1288 = vmatprep.subr.bf16.mxu0 0
    %1289 = vmatpush1.bf16.msra.mxu0 0
    %1290 = vmatprep.subr.bf16.mxu0 0
    %1291 = vmatpush1.bf16.msra.mxu0 0
    %1292 = vmatprep.subr.bf16.mxu0 0
    %1293 = vmatpush1.bf16.msra.mxu0 0
    %1294 = vmatprep.subr.bf16.mxu0 0
    %1295 = vmatpush1.bf16.msra.mxu0 0
    %1296 = vmatprep.subr.bf16.mxu0 0
    %1297 = vmatpush1.bf16.msra.mxu0 0
    %1298 = vmatprep.subr.bf16.mxu0 0
    %1299 = vmatpush1.bf16.msra.mxu0 0
    %1300 = vmatprep.subr.bf16.mxu0 0
    %1301 = vmatpush1.bf16.msra.mxu0 0
    %1302 = vmatprep.subr.bf16.mxu0 0
    %1303 = vmatpush1.bf16.msra.mxu0 0
    %1304 = vmatprep.subr.bf16.mxu0 0
    %1305 = vmatpush1.bf16.msra.mxu0 0
    %1306 = vmatprep.subr.bf16.mxu0 0
    %1307 = vmatpush1.bf16.msra.mxu0 0
    %1308 = vmatprep.subr.bf16.mxu0 0
    %1309 = vmatpush1.bf16.msra.mxu0 0
    %1310 = vmatprep.subr.bf16.mxu0 0
    %1311 = vmatpush1.bf16.msra.mxu0 0
    %1312 = vmatprep.subr.bf16.mxu0 0
    %1313 = vmatpush1.bf16.msra.mxu0 0
    %1314 = vmatprep.mubr.bf16.mxu0 0
    %1315 = vmatmul.mubr.bf16.gmra.mrb[0].mxu0 %v1280
    %v1316 = vpop.f32.mrb[0].mxu0
    %v1317 = vadd.f32 0.0, %v1316
    %v1318 = vpop.f32.mrb[0].mxu0
    %v1319 = vpop.f32.mrb[0].mxu0
    %v1320 = vpop.f32.mrb[0].mxu0
    %1321 = vdwg.mxu0
    %v1322 = vpack.c.bf16 %v1317, %v1274
    %v1323 = vlaneseq
    %v1324 = vshrl.u32 %v1323, 7
    %v1325 = vsub.s32 7, %v1324
    %v1326 = vrot.slane %v293, %v1325
    %v1343 = vunpack.c.l.b16 %v245
    %v1344 = vunpack.c.l.b16 %v246
    %v1345 = vunpack.c.l.b16 %v247
    %v1346 = vunpack.c.l.b16 %v248
    %v1347 = vunpack.c.l.b16 %v249
    %v1348 = vunpack.c.l.b16 %v250
    %v1349 = vunpack.c.l.b16 %v251
    %v1350 = vunpack.c.l.b16 %v252
    %v1351 = vunpack.c.l.b16 %v253
    %v1352 = vunpack.c.l.b16 %v254
    %v1353 = vunpack.c.l.b16 %v255
    %v1354 = vunpack.c.l.b16 %v256
    %v1355 = vunpack.c.l.b16 %v257
    %v1356 = vunpack.c.l.b16 %v258
    %v1357 = vunpack.c.l.b16 %v259
    %v1358 = vunpack.c.l.b16 %v260
    %v1359 = vpack.c.b16 %v1344, %v1343
    %v1360 = vpack.c.b16 %v1346, %v1345
    %v1361 = vpack.c.b16 %v1348, %v1347
    %v1362 = vpack.c.b16 %v1350, %v1349
    %v1363 = vpack.c.b16 %v1352, %v1351
    %v1364 = vpack.c.b16 %v1354, %v1353
    %v1365 = vpack.c.b16 %v1356, %v1355
    %v1366 = vpack.c.b16 %v1358, %v1357
    %1375 = vmatprep.subr.bf16.mxu0 0
    %1376 = vmatpush1.bf16.msra.mxu0 %v1359
    %1377 = vmatprep.subr.bf16.mxu0 0
    %1378 = vmatpush1.bf16.msra.mxu0 %v1360
    %1379 = vmatprep.subr.bf16.mxu0 0
    %1380 = vmatpush1.bf16.msra.mxu0 %v1361
    %1381 = vmatprep.subr.bf16.mxu0 0
    %1382 = vmatpush1.bf16.msra.mxu0 %v1362
    %1383 = vmatprep.subr.bf16.mxu0 0
    %1384 = vmatpush1.bf16.msra.mxu0 %v1363
    %1385 = vmatprep.subr.bf16.mxu0 0
    %1386 = vmatpush1.bf16.msra.mxu0 %v1364
    %1387 = vmatprep.subr.bf16.mxu0 0
    %1388 = vmatpush1.bf16.msra.mxu0 %v1365
    %1389 = vmatprep.subr.bf16.mxu0 0
    %1390 = vmatpush1.bf16.msra.mxu0 %v1366
    %1391 = vmatprep.subr.bf16.mxu0 0
    %1392 = vmatpush1.bf16.msra.mxu0 0
    %1393 = vmatprep.subr.bf16.mxu0 0
    %1394 = vmatpush1.bf16.msra.mxu0 0
    %1395 = vmatprep.subr.bf16.mxu0 0
    %1396 = vmatpush1.bf16.msra.mxu0 0
    %1397 = vmatprep.subr.bf16.mxu0 0
    %1398 = vmatpush1.bf16.msra.mxu0 0
    %1399 = vmatprep.subr.bf16.mxu0 0
    %1400 = vmatpush1.bf16.msra.mxu0 0
    %1401 = vmatprep.subr.bf16.mxu0 0
    %1402 = vmatpush1.bf16.msra.mxu0 0
    %1403 = vmatprep.subr.bf16.mxu0 0
    %1404 = vmatpush1.bf16.msra.mxu0 0
    %1405 = vmatprep.subr.bf16.mxu0 0
    %1406 = vmatpush1.bf16.msra.mxu0 0
    %1407 = vmatprep.mubr.bf16.mxu0 0
    %1408 = vmatmul.mubr.bf16.gmra.mrb[0].mxu0 %v1322
    %v1409 = vpop.f32.mrb[0].mxu0
    %v1410 = vadd.f32 %v1326, %v1409
    %v1411 = vpop.f32.mrb[0].mxu0
    %v1412 = vpop.f32.mrb[0].mxu0
    %v1413 = vadd.f32 %v1326, %v1412
    %v1414 = vpop.f32.mrb[0].mxu0
    %1415 = vdwg.mxu0
    %v1416 = vadd.f32 %v1410, %v868
    %v1417 = vadd.f32 %v1413, %v869
    %1418 = vadd.xlane.f32.xlu0 %v1416
    %v1419 = vpop.xlane.xlu0 %1418
    %1420 = vadd.xlane.f32.xlu0 %v1417
    %v1421 = vpop.xlane.xlu0 %1420
    %v1422 = vmul.f32 %v1419, %v839
    %v1423 = vmul.f32 %v1421, %v839
    %v1424 = vsub.f32 %v1416, %v1422
    %v1425 = vsub.f32 %v1417, %v1423
    %v1426 = vmul.f32 %v1424, %v1424
    %v1427 = vmul.f32 %v1425, %v1425
    %1428 = vadd.xlane.f32.xlu0 %v1426
    %v1429 = vpop.xlane.xlu0 %1428
    %1430 = vadd.xlane.f32.xlu0 %v1427
    %v1431 = vpop.xlane.xlu0 %1430
    %v1432 = vmul.f32 %v1429, %v839
    %v1433 = vmul.f32 %v1431, %v839
    %v1434 = vadd.f32 %v1432, 1e-05
    %v1435 = vadd.f32 %v1433, 1e-05
    %v1436 = vrsqrt.pop %v1434
    %v1437 = vrsqrt.pop %v1435
    %v1438 = vmul.f32 %v1424, %v1436
    %v1439 = vmul.f32 %v1425, %v1437
    %v1440 = vlaneseq
    %v1441 = vshrl.u32 %v1440, 7
    %v1442 = vsub.s32 3, %v1441
    %v1443 = vrot.slane %v294, %v1442
    %v1444 = vmul.f32 %v1438, %v1443
    %v1445 = vmul.f32 %v1439, %v1443
    %v1446 = vlaneseq
    %v1447 = vshrl.u32 %v1446, 7
    %v1448 = vsub.s32 6, %v1447
    %v1449 = vrot.slane %v294, %v1448
    %v1450 = vadd.f32 %v1444, %v1449
    %v1451 = vadd.f32 %v1445, %v1449
    %v1452 = vpack.c.bf16 %v1451, %v1450
    %v1453 = vlaneseq
    %v1454 = vshrl.u32 %v1453, 7
    %v1455 = vsub.s32 0, %v1454
    %v1456 = vrot.slane %v294, %v1455
    %v1473 = vunpack.c.l.b16 %v261
    %v1474 = vunpack.c.l.b16 %v262
    %v1475 = vunpack.c.l.b16 %v263
    %v1476 = vunpack.c.l.b16 %v264
    %v1477 = vunpack.c.l.b16 %v265
    %v1478 = vunpack.c.l.b16 %v266
    %v1479 = vunpack.c.l.b16 %v267
    %v1480 = vunpack.c.l.b16 %v268
    %v1481 = vunpack.c.l.b16 %v269
    %v1482 = vunpack.c.l.b16 %v270
    %v1483 = vunpack.c.l.b16 %v271
    %v1484 = vunpack.c.l.b16 %v272
    %v1485 = vunpack.c.l.b16 %v273
    %v1486 = vunpack.c.l.b16 %v274
    %v1487 = vunpack.c.l.b16 %v275
    %v1488 = vunpack.c.l.b16 %v276
    %v1489 = vpack.c.b16 %v1474, %v1473
    %v1490 = vpack.c.b16 %v1476, %v1475
    %v1491 = vpack.c.b16 %v1478, %v1477
    %v1492 = vpack.c.b16 %v1480, %v1479
    %v1493 = vpack.c.b16 %v1482, %v1481
    %v1494 = vpack.c.b16 %v1484, %v1483
    %v1495 = vpack.c.b16 %v1486, %v1485
    %v1496 = vpack.c.b16 %v1488, %v1487
    %1505 = vmatprep.subr.bf16.mxu0 0
    %1506 = vmatpush1.bf16.msra.mxu0 %v1489
    %1507 = vmatprep.subr.bf16.mxu0 0
    %1508 = vmatpush1.bf16.msra.mxu0 %v1490
    %1509 = vmatprep.subr.bf16.mxu0 0
    %1510 = vmatpush1.bf16.msra.mxu0 %v1491
    %1511 = vmatprep.subr.bf16.mxu0 0
    %1512 = vmatpush1.bf16.msra.mxu0 %v1492
    %1513 = vmatprep.subr.bf16.mxu0 0
    %1514 = vmatpush1.bf16.msra.mxu0 %v1493
    %1515 = vmatprep.subr.bf16.mxu0 0
    %1516 = vmatpush1.bf16.msra.mxu0 %v1494
    %1517 = vmatprep.subr.bf16.mxu0 0
    %1518 = vmatpush1.bf16.msra.mxu0 %v1495
    %1519 = vmatprep.subr.bf16.mxu0 0
    %1520 = vmatpush1.bf16.msra.mxu0 %v1496
    %1521 = vmatprep.subr.bf16.mxu0 0
    %1522 = vmatpush1.bf16.msra.mxu0 0
    %1523 = vmatprep.subr.bf16.mxu0 0
    %1524 = vmatpush1.bf16.msra.mxu0 0
    %1525 = vmatprep.subr.bf16.mxu0 0
    %1526 = vmatpush1.bf16.msra.mxu0 0
    %1527 = vmatprep.subr.bf16.mxu0 0
    %1528 = vmatpush1.bf16.msra.mxu0 0
    %1529 = vmatprep.subr.bf16.mxu0 0
    %1530 = vmatpush1.bf16.msra.mxu0 0
    %1531 = vmatprep.subr.bf16.mxu0 0
    %1532 = vmatpush1.bf16.msra.mxu0 0
    %1533 = vmatprep.subr.bf16.mxu0 0
    %1534 = vmatpush1.bf16.msra.mxu0 0
    %1535 = vmatprep.subr.bf16.mxu0 0
    %1536 = vmatpush1.bf16.msra.mxu0 0
    %1537 = vmatprep.mubr.bf16.mxu0 0
    %1538 = vmatmul.mubr.bf16.gmra.mrb[0].mxu0 %v1452
    %v1539 = vpop.f32.mrb[0].mxu0
    %v1540 = vadd.f32 %v1456, %v1539
    %v1541 = vpop.f32.mrb[0].mxu0
    %v1542 = vpop.f32.mrb[0].mxu0
    %v1543 = vadd.f32 %v1456, %v1542
    %v1544 = vpop.f32.mrb[0].mxu0
    %1545 = vdwg.mxu0
    %v1546 = vmax.f32 %v1540, 0.0
    %v1547 = vmax.f32 %v1543, 0.0
    %v1548 = vpack.c.bf16 %v1547, %v1546
    %v1549 = vlaneseq
    %v1550 = vshrl.u32 %v1549, 7
    %v1551 = vsub.s32 1, %v1550
    %v1552 = vrot.slane %v294, %v1551
    %v1569 = vunpack.c.l.b16 %v277
    %v1570 = vunpack.c.l.b16 %v278
    %v1571 = vunpack.c.l.b16 %v279
    %v1572 = vunpack.c.l.b16 %v280
    %v1573 = vunpack.c.l.b16 %v281
    %v1574 = vunpack.c.l.b16 %v282
    %v1575 = vunpack.c.l.b16 %v283
    %v1576 = vunpack.c.l.b16 %v284
    %v1577 = vunpack.c.l.b16 %v285
    %v1578 = vunpack.c.l.b16 %v286
    %v1579 = vunpack.c.l.b16 %v287
    %v1580 = vunpack.c.l.b16 %v288
    %v1581 = vunpack.c.l.b16 %v289
    %v1582 = vunpack.c.l.b16 %v290
    %v1583 = vunpack.c.l.b16 %v291
    %v1584 = vunpack.c.l.b16 %v292
    %v1585 = vpack.c.b16 %v1570, %v1569
    %v1586 = vpack.c.b16 %v1572, %v1571
    %v1587 = vpack.c.b16 %v1574, %v1573
    %v1588 = vpack.c.b16 %v1576, %v1575
    %v1589 = vpack.c.b16 %v1578, %v1577
    %v1590 = vpack.c.b16 %v1580, %v1579
    %v1591 = vpack.c.b16 %v1582, %v1581
    %v1592 = vpack.c.b16 %v1584, %v1583
    %1601 = vmatprep.subr.bf16.mxu0 0
    %1602 = vmatpush1.bf16.msra.mxu0 %v1585
    %1603 = vmatprep.subr.bf16.mxu0 0
    %1604 = vmatpush1.bf16.msra.mxu0 %v1586
    %1605 = vmatprep.subr.bf16.mxu0 0
    %1606 = vmatpush1.bf16.msra.mxu0 %v1587
    %1607 = vmatprep.subr.bf16.mxu0 0
    %1608 = vmatpush1.bf16.msra.mxu0 %v1588
    %1609 = vmatprep.subr.bf16.mxu0 0
    %1610 = vmatpush1.bf16.msra.mxu0 %v1589
    %1611 = vmatprep.subr.bf16.mxu0 0
    %1612 = vmatpush1.bf16.msra.mxu0 %v1590
    %1613 = vmatprep.subr.bf16.mxu0 0
    %1614 = vmatpush1.bf16.msra.mxu0 %v1591
    %1615 = vmatprep.subr.bf16.mxu0 0
    %1616 = vmatpush1.bf16.msra.mxu0 %v1592
    %1617 = vmatprep.subr.bf16.mxu0 0
    %1618 = vmatpush1.bf16.msra.mxu0 0
    %1619 = vmatprep.subr.bf16.mxu0 0
    %1620 = vmatpush1.bf16.msra.mxu0 0
    %1621 = vmatprep.subr.bf16.mxu0 0
    %1622 = vmatpush1.bf16.msra.mxu0 0
    %1623 = vmatprep.subr.bf16.mxu0 0
    %1624 = vmatpush1.bf16.msra.mxu0 0
    %1625 = vmatprep.subr.bf16.mxu0 0
    %1626 = vmatpush1.bf16.msra.mxu0 0
    %1627 = vmatprep.subr.bf16.mxu0 0
    %1628 = vmatpush1.bf16.msra.mxu0 0
    %1629 = vmatprep.subr.bf16.mxu0 0
    %1630 = vmatpush1.bf16.msra.mxu0 0
    %1631 = vmatprep.subr.bf16.mxu0 0
    %1632 = vmatpush1.bf16.msra.mxu0 0
    %1633 = vmatprep.mubr.bf16.mxu0 0
    %1634 = vmatmul.mubr.bf16.gmra.mrb[0].mxu0 %v1548
    %v1635 = vpop.f32.mrb[0].mxu0
    %v1636 = vadd.f32 %v1552, %v1635
    %v1637 = vpop.f32.mrb[0].mxu0
    %v1638 = vpop.f32.mrb[0].mxu0
    %v1639 = vadd.f32 %v1552, %v1638
    %v1640 = vpop.f32.mrb[0].mxu0
    %1641 = vdwg.mxu0
    %v1642 = vadd.f32 %v1450, %v1636
    %v1643 = vadd.f32 %v1451, %v1639
    %1644 = vadd.xlane.f32.xlu0 %v1642
    %v1645 = vpop.xlane.xlu0 %1644
    %1646 = vadd.xlane.f32.xlu0 %v1643
    %v1647 = vpop.xlane.xlu0 %1646
    %v1648 = vmul.f32 %v1645, %v839
    %v1649 = vmul.f32 %v1647, %v839
    %v1650 = vsub.f32 %v1642, %v1648
    %v1651 = vsub.f32 %v1643, %v1649
    %v1652 = vmul.f32 %v1650, %v1650
    %v1653 = vmul.f32 %v1651, %v1651
    %1654 = vadd.xlane.f32.xlu0 %v1652
    %v1655 = vpop.xlane.xlu0 %1654
    %1656 = vadd.xlane.f32.xlu0 %v1653
    %v1657 = vpop.xlane.xlu0 %1656
    %v1658 = vmul.f32 %v1655, %v839
    %v1659 = vmul.f32 %v1657, %v839
    %v1660 = vadd.f32 %v1658, 1e-05
    %v1661 = vadd.f32 %v1659, 1e-05
    %v1662 = vrsqrt.pop %v1660
    %v1663 = vrsqrt.pop %v1661
    %v1664 = vmul.f32 %v1650, %v1662
    %v1665 = vmul.f32 %v1651, %v1663
    %v1666 = vlaneseq
    %v1667 = vshrl.u32 %v1666, 7
    %v1668 = vsub.s32 4, %v1667
    %v1669 = vrot.slane %v294, %v1668
    %v1670 = vmul.f32 %v1664, %v1669
    %v1671 = vmul.f32 %v1665, %v1669
    %v1672 = vlaneseq
    %v1673 = vshrl.u32 %v1672, 7
    %v1674 = vsub.s32 7, %v1673
    %v1675 = vrot.slane %v294, %v1674
    %v1676 = vadd.f32 %v1670, %v1675
    %v1677 = vadd.f32 %v1671, %v1675
    %1678 = vst [vmem:[#allocation17] sm:$0xff] %v1676
    %1679 = vst [vmem:[#allocation17 + $0x8] sm:$0xff] %v1677
    // Predicated region
    $region78: #{tpu_custom_call.1} parent=1 // pred_check
      _
    $region79: #{tpu_custom_call.1} parent=1 // pred_check_branch
      %1681 = sbr.rel (0) target = $region81
    $region80: #{tpu_custom_call.1} parent=1 // pred_region
      %s1683 = ssub.s32 256, 256
      %1684 = vsyncadd [#allocation4], %s1683
      %s1685 = sshll.u32 [#allocation17], 4
      %s1686 = int_to_ptr.vmem [resolvable:$true] %s1685
      %1691 = dma.vmem_to_hbm [thread:$0]  %s1686, 256, %s10, [#allocation4], 128, 128, 8
    $region81: #{tpu_custom_call.1} parent=1 // pred_fallthru
      _
    // Predicated region
    $region82: #{tpu_custom_call.1} parent=1 // pred_check
      _
    $region83: #{tpu_custom_call.1} parent=1 // pred_check_branch
      %1693 = sbr.rel (0) target = $region85
    $region84: #{tpu_custom_call.1} parent=1 // pred_region
      %1694 = dma.done [#allocation4], 256
    $region85: #{tpu_custom_call.1} parent=1 // pred_fallthru
      _
    %1695 = vsyncpa [#allocation3], 1
    %1696 = vsyncpa [#allocation6], 1
    %1697 = vsyncpa [#allocation9], 1
    %1698 = vsyncpa [#allocation12], 1
    %1699 = vsyncpa [#allocation15], 1
    %1700 = vsyncpa [#allocation4], 1

// kernel: tpu_custom_call.1
$region0: #{tpu_custom_call.1}
  #allocation0 [shape = 'u32[]', space=smem, size = 0x4, offset = 0x4, fixed_abs, tag = 'smem constant byte address 0x4 - core index']
  #allocation1 [shape = 'u32[144,128]{1,0:T(1,128)}', space=vmem, size = 0x12000, scoped, tag = 'internal scratch']
  %s0 = inlined_call_operand.hbm [shape: f32[2,8,128], index: 0, kind: input, shape index: {}]
  %s1 = inlined_call_operand.hbm [shape: bf16[2,16,128], index: 1, kind: input, shape index: {}]
  %s2 = inlined_call_operand.hbm [shape: bf16[128,384], index: 2, kind: input, shape index: {}]
  %s3 = inlined_call_operand.hbm [shape: bf16[128,128], index: 3, kind: input, shape index: {}]
  %s4 = inlined_call_operand.hbm [shape: bf16[128,128], index: 4, kind: input, shape index: {}]
  %s5 = inlined_call_operand.hbm [shape: bf16[128,256], index: 5, kind: input, shape index: {}]
  %s6 = inlined_call_operand.hbm [shape: bf16[128,128], index: 6, kind: input, shape index: {}]
  %s7 = inlined_call_operand.hbm [shape: bf16[128,128], index: 7, kind: input, shape index: {}]
  %s8 = inlined_call_operand.hbm [shape: bf16[128,128], index: 8, kind: input, shape index: {}]
  %s9 = inlined_call_operand.vmem [shape: f32[16,128], index: 9, kind: input, shape index: {}]
  %s10 = inlined_call_operand.hbm [shape: f32[2,8,128], index: 10, kind: output, shape index: {}]
  %s11 = sld [smem:[#allocation0]]
  $region86: #{tpu_custom_call.1} parent=0
    _
  %s13 = ssub.s32 1, %s11
  %s14 = scalar_select 0, %s13, %s11
  $region1: #{tpu_custom_call.1} parent=0
    #allocation2 [shape = 'u8[8192]{0}', space=vmem, size = 0x2000, scoped, tag = 'input window, operand 0, single buffered']
    #allocation3 [shape = 's32[1]{0}', space=sflag, size = 0x4, scoped, tag = 'scoped memory for tpu_custom_call.1']
    #allocation4 [shape = 's32[1]{0}', space=sflag, size = 0x4, scoped, tag = 'scoped memory for tpu_custom_call.1']
    #allocation5 [shape = 'u8[8192]{0}', space=vmem, size = 0x2000, scoped, tag = 'input window, operand 1, single buffered']
    #allocation6 [shape = 's32[1]{0}', space=sflag, size = 0x4, scoped, tag = 'scoped memory for tpu_custom_call.1']
    #allocation7 [shape = 'u8[98304]{0}', space=vmem, size = 0x18000, scoped, tag = 'input window, operand 2, single buffered']
    #allocation8 [shape = 'u8[32768]{0}', space=vmem, size = 0x8000, scoped, tag = 'input window, operand 3, single buffered']
    #allocation9 [shape = 's32[1]{0}', space=sflag, size = 0x4, scoped, tag = 'scoped memory for tpu_custom_call.1']
    #allocation10 [shape = 'u8[32768]{0}', space=vmem, size = 0x8000, scoped, tag = 'input window, operand 4, single buffered']
    #allocation11 [shape = 'u8[65536]{0}', space=vmem, size = 0x10000, scoped, tag = 'input window, operand 5, single buffered']
    #allocation12 [shape = 's32[1]{0}', space=sflag, size = 0x4, scoped, tag = 'scoped memory for tpu_custom_call.1']
    #allocation13 [shape = 'u8[32768]{0}', space=vmem, size = 0x8000, scoped, tag = 'input window, operand 6, single buffered']
    #allocation14 [shape = 'u8[32768]{0}', space=vmem, size = 0x8000, scoped, tag = 'input window, operand 7, single buffered']
    #allocation15 [shape = 's32[1]{0}', space=sflag, size = 0x4, scoped, tag = 'scoped memory for tpu_custom_call.1']
    #allocation16 [shape = 'u8[32768]{0}', space=vmem, size = 0x8000, scoped, tag = 'input window, operand 8, single buffered']
    #allocation17 [shape = 'u8[8192]{0}', space=vmem, size = 0x2000, scoped, tag = 'output window, operand 0, single buffered']
    %15 = vsyncpa [#allocation3], 0
    %16 = vsyncpa [#allocation6], 0
    %17 = vsyncpa [#allocation9], 0
    %18 = vsyncpa [#allocation12], 0
    %19 = vsyncpa [#allocation15], 0
    %20 = vsyncpa [#allocation4], 0
    // Predicated region
    $region2: #{tpu_custom_call.1} parent=1 // pred_check
      _
    $region3: #{tpu_custom_call.1} parent=1 // pred_check_branch
      %22 = sbr.rel (0) target = $region5
    $region4: #{tpu_custom_call.1} parent=1 // pred_region
      %s24 = ssub.s32 256, 256
      %25 = vsyncadd [#allocation3], %s24
      %s26 = sshll.u32 [#allocation2], 4
      %s27 = int_to_ptr.vmem [resolvable:$true] %s26
      %32 = dma.hbm_to_vmem [thread:$0]  %s0, 256, %s27, [#allocation3], 128, 128, 8
    $region5: #{tpu_custom_call.1} parent=1 // pred_fallthru
      _
    // Predicated region
    $region6: #{tpu_custom_call.1} parent=1 // pred_check
      _
    $region7: #{tpu_custom_call.1} parent=1 // pred_check_branch
      %34 = sbr.rel (0) target = $region9
    $region8: #{tpu_custom_call.1} parent=1 // pred_region
      %s36 = ssub.s32 256, 256
      %37 = vsyncadd [#allocation6], %s36
      %s38 = sshll.u32 [#allocation5], 4
      %s39 = int_to_ptr.vmem [resolvable:$true] %s38
      %44 = dma.hbm_to_vmem [thread:$0]  %s1, 256, %s39, [#allocation6], 64, 64, 4
    $region9: #{tpu_custom_call.1} parent=1 // pred_fallthru
      _
    // Predicated region
    $region10: #{tpu_custom_call.1} parent=1 // pred_check
      _
    $region11: #{tpu_custom_call.1} parent=1 // pred_check_branch
      %46 = sbr.rel (0) target = $region13
    $region12: #{tpu_custom_call.1} parent=1 // pred_region
      %s48 = ssub.s32 3072, 3072
      %49 = vsyncadd [#allocation6], %s48
      %s50 = sshll.u32 [#allocation7], 4
      %s51 = int_to_ptr.vmem [resolvable:$true] %s50
      %56 = dma.hbm_to_vmem [thread:$0]  %s2, 3072, %s51, [#allocation6], 192, 192, 12
    $region13: #{tpu_custom_call.1} parent=1 // pred_fallthru
      _
    // Predicated region
    $region14: #{tpu_custom_call.1} parent=1 // pred_check
      _
    $region15: #{tpu_custom_call.1} parent=1 // pred_check_branch
      %58 = sbr.rel (0) target = $region17
    $region16: #{tpu_custom_call.1} parent=1 // pred_region
      %s60 = ssub.s32 1024, 1024
      %61 = vsyncadd [#allocation9], %s60
      %s62 = sshll.u32 [#allocation8], 4
      %s63 = int_to_ptr.vmem [resolvable:$true] %s62
      %68 = dma.hbm_to_vmem [thread:$0]  %s3, 1024, %s63, [#allocation9], 64, 64, 4
    $region17: #{tpu_custom_call.1} parent=1 // pred_fallthru
      _
    // Predicated region
    $region18: #{tpu_custom_call.1} parent=1 // pred_check
      _
    $region19: #{tpu_custom_call.1} parent=1 // pred_check_branch
      %70 = sbr.rel (0) target = $region21
    $region20: #{tpu_custom_call.1} parent=1 // pred_region
      %s72 = ssub.s32 1024, 1024
      %73 = vsyncadd [#allocation9], %s72
      %s74 = sshll.u32 [#allocation10], 4
      %s75 = int_to_ptr.vmem [resolvable:$true] %s74
      %80 = dma.hbm_to_vmem [thread:$0]  %s4, 1024, %s75, [#allocation9], 64, 64, 4
    $region21: #{tpu_custom_call.1} parent=1 // pred_fallthru
      _
    // Predicated region
    $region22: #{tpu_custom_call.1} parent=1 // pred_check
      _
    $region23: #{tpu_custom_call.1} parent=1 // pred_check_branch
      %82 = sbr.rel (0) target = $region25
    $region24: #{tpu_custom_call.1} parent=1 // pred_region
      %s84 = ssub.s32 2048, 2048
      %85 = vsyncadd [#allocation12], %s84
      %s86 = sshll.u32 [#allocation11], 4
      %s87 = int_to_ptr.vmem [resolvable:$true] %s86
      %92 = dma.hbm_to_vmem [thread:$0]  %s5, 2048, %s87, [#allocation12], 128, 128, 8
    $region25: #{tpu_custom_call.1} parent=1 // pred_fallthru
      _
    // Predicated region
    $region26: #{tpu_custom_call.1} parent=1 // pred_check
      _
    $region27: #{tpu_custom_call.1} parent=1 // pred_check_branch
      %94 = sbr.rel (0) target = $region29
    $region28: #{tpu_custom_call.1} parent=1 // pred_region
      %s96 = ssub.s32 1024, 1024
      %97 = vsyncadd [#allocation12], %s96
      %s98 = sshll.u32 [#allocation13], 4
      %s99 = int_to_ptr.vmem [resolvable:$true] %s98
      %104 = dma.hbm_to_vmem [thread:$0]  %s6, 1024, %s99, [#allocation12], 64, 64, 4
    $region29: #{tpu_custom_call.1} parent=1 // pred_fallthru
      _
    // Predicated region
    $region30: #{tpu_custom_call.1} parent=1 // pred_check
      _
    $region31: #{tpu_custom_call.1} parent=1 // pred_check_branch
      %106 = sbr.rel (0) target = $region33
    $region32: #{tpu_custom_call.1} parent=1 // pred_region
      %s108 = ssub.s32 1024, 1024
      %109 = vsyncadd [#allocation15], %s108
      %s110 = sshll.u32 [#allocation14], 4
      %s111 = int_to_ptr.vmem [resolvable:$true] %s110
      %116 = dma.hbm_to_vmem [thread:$0]  %s7, 1024, %s111, [#allocation15], 64, 64, 4
    $region33: #{tpu_custom_call.1} parent=1 // pred_fallthru
      _
    // Predicated region
    $region34: #{tpu_custom_call.1} parent=1 // pred_check
      _
    $region35: #{tpu_custom_call.1} parent=1 // pred_check_branch
      %118 = sbr.rel (0) target = $region37
    $region36: #{tpu_custom_call.1} parent=1 // pred_region
      %s120 = ssub.s32 1024, 1024
      %121 = vsyncadd [#allocation15], %s120
      %s122 = sshll.u32 [#allocation16], 4
      %s123 = int_to_ptr.vmem [resolvable:$true] %s122
      %128 = dma.hbm_to_vmem [thread:$0]  %s8, 1024, %s123, [#allocation15], 64, 64, 4
    $region37: #{tpu_custom_call.1} parent=1 // pred_fallthru
      _
    // Predicated region
    $region38: #{tpu_custom_call.1} parent=1 // pred_check
      _
    $region39: #{tpu_custom_call.1} parent=1 // pred_check_branch
      %130 = sbr.rel (0) target = $region41
    $region40: #{tpu_custom_call.1} parent=1 // pred_region
      _
    $region41: #{tpu_custom_call.1} parent=1 // pred_fallthru
      _
    // Predicated region
    $region42: #{tpu_custom_call.1} parent=1 // pred_check
      _
    $region43: #{tpu_custom_call.1} parent=1 // pred_check_branch
      %132 = sbr.rel (0) target = $region45
    $region44: #{tpu_custom_call.1} parent=1 // pred_region
      %133 = dma.done [#allocation3], 256
    $region45: #{tpu_custom_call.1} parent=1 // pred_fallthru
      _
    // Predicated region
    $region46: #{tpu_custom_call.1} parent=1 // pred_check
      _
    $region47: #{tpu_custom_call.1} parent=1 // pred_check_branch
      %135 = sbr.rel (0) target = $region49
    $region48: #{tpu_custom_call.1} parent=1 // pred_region
      %136 = dma.done [#allocation6], 256
    $region49: #{tpu_custom_call.1} parent=1 // pred_fallthru
      _
    // Predicated region
    $region50: #{tpu_custom_call.1} parent=1 // pred_check
      _
    $region51: #{tpu_custom_call.1} parent=1 // pred_check_branch
      %138 = sbr.rel (0) target = $region53
    $region52: #{tpu_custom_call.1} parent=1 // pred_region
      %139 = dma.done [#allocation6], 3072
    $region53: #{tpu_custom_call.1} parent=1 // pred_fallthru
      _
    // Predicated region
    $region54: #{tpu_custom_call.1} parent=1 // pred_check
      _
    $region55: #{tpu_custom_call.1} parent=1 // pred_check_branch
      %141 = sbr.rel (0) target = $region57
    $region56: #{tpu_custom_call.1} parent=1 // pred_region
      %142 = dma.done [#allocation9], 1024
    $region57: #{tpu_custom_call.1} parent=1 // pred_fallthru
      _
    // Predicated region
    $region58: #{tpu_custom_call.1} parent=1 // pred_check
      _
    $region59: #{tpu_custom_call.1} parent=1 // pred_check_branch
      %144 = sbr.rel (0) target = $region61
    $region60: #{tpu_custom_call.1} parent=1 // pred_region
      %145 = dma.done [#allocation9], 1024
    $region61: #{tpu_custom_call.1} parent=1 // pred_fallthru
      _
    // Predicated region
    $region62: #{tpu_custom_call.1} parent=1 // pred_check
      _
    $region63: #{tpu_custom_call.1} parent=1 // pred_check_branch
      %147 = sbr.rel (0) target = $region65
    $region64: #{tpu_custom_call.1} parent=1 // pred_region
      %148 = dma.done [#allocation12], 2048
    $region65: #{tpu_custom_call.1} parent=1 // pred_fallthru
      _
    // Predicated region
    $region66: #{tpu_custom_call.1} parent=1 // pred_check
      _
    $region67: #{tpu_custom_call.1} parent=1 // pred_check_branch
      %150 = sbr.rel (0) target = $region69
    $region68: #{tpu_custom_call.1} parent=1 // pred_region
      %151 = dma.done [#allocation12], 1024
    $region69: #{tpu_custom_call.1} parent=1 // pred_fallthru
      _
    // Predicated region
    $region70: #{tpu_custom_call.1} parent=1 // pred_check
      _
    $region71: #{tpu_custom_call.1} parent=1 // pred_check_branch
      %153 = sbr.rel (0) target = $region73
    $region72: #{tpu_custom_call.1} parent=1 // pred_region
      %154 = dma.done [#allocation15], 1024
    $region73: #{tpu_custom_call.1} parent=1 // pred_fallthru
      _
    // Predicated region
    $region74: #{tpu_custom_call.1} parent=1 // pred_check
      _
    $region75: #{tpu_custom_call.1} parent=1 // pred_check_branch
      %156 = sbr.rel (0) target = $region77
    $region76: #{tpu_custom_call.1} parent=1 // pred_region
      %157 = dma.done [#allocation15], 1024
    $region77: #{tpu_custom_call.1} parent=1 // pred_fallthru
      _
    %v159 = vld [vmem:[#allocation2] sm:$0xff]
    %v160 = vld [vmem:[#allocation2 + $0x8] sm:$0xff]
    %v161 = vld [vmem:[#allocation5] sm:$0xf]
    %v162 = vld [vmem:[#allocation5 + $0x4] sm:$0xf]
    %v163 = vld [vmem:[#allocation5 + $0x8] sm:$0xf]
    %v164 = vld [vmem:[#allocation5 + $0xc] sm:$0xf]
    %v165 = vld [vmem:[#allocation7] sm:$0xff]
    %v166 = vld [vmem:[#allocation7 + $0x8] sm:$0xf]
    %v167 = vld [vmem:[#allocation7 + $0xc] sm:$0xff]
    %v168 = vld [vmem:[#allocation7 + $0x14] sm:$0xf]
    %v169 = vld [vmem:[#allocation7 + $0x18] sm:$0xff]
    %v170 = vld [vmem:[#allocation7 + $0x20] sm:$0xf]
    %v171 = vld [vmem:[#allocation7 + $0x24] sm:$0xff]
    %v172 = vld [vmem:[#allocation7 + $0x2c] sm:$0xf]
    %v173 = vld [vmem:[#allocation7 + $0x30] sm:$0xff]
    %v174 = vld [vmem:[#allocation7 + $0x38] sm:$0xf]
    %v175 = vld [vmem:[#allocation7 + $0x3c] sm:$0xff]
    %v176 = vld [vmem:[#allocation7 + $0x44] sm:$0xf]
    %v177 = vld [vmem:[#allocation7 + $0x48] sm:$0xff]
    %v178 = vld [vmem:[#allocation7 + $0x50] sm:$0xf]
    %v179 = vld [vmem:[#allocation7 + $0x54] sm:$0xff]
    %v180 = vld [vmem:[#allocation7 + $0x5c] sm:$0xf]
    %v181 = vld [vmem:[#allocation7 + $0x60] sm:$0xff]
    %v182 = vld [vmem:[#allocation7 + $0x68] sm:$0xf]
    %v183 = vld [vmem:[#allocation7 + $0x6c] sm:$0xff]
    %v184 = vld [vmem:[#allocation7 + $0x74] sm:$0xf]
    %v185 = vld [vmem:[#allocation7 + $0x78] sm:$0xff]
    %v186 = vld [vmem:[#allocation7 + $0x80] sm:$0xf]
    %v187 = vld [vmem:[#allocation7 + $0x84] sm:$0xff]
    %v188 = vld [vmem:[#allocation7 + $0x8c] sm:$0xf]
    %v189 = vld [vmem:[#allocation7 + $0x90] sm:$0xff]
    %v190 = vld [vmem:[#allocation7 + $0x98] sm:$0xf]
    %v191 = vld [vmem:[#allocation7 + $0x9c] sm:$0xff]
    %v192 = vld [vmem:[#allocation7 + $0xa4] sm:$0xf]
    %v193 = vld [vmem:[#allocation7 + $0xa8] sm:$0xff]
    %v194 = vld [vmem:[#allocation7 + $0xb0] sm:$0xf]
    %v195 = vld [vmem:[#allocation7 + $0xb4] sm:$0xff]
    %v196 = vld [vmem:[#allocation7 + $0xbc] sm:$0xf]
    %v197 = vld [vmem:[#allocation8] sm:$0xf]
    %v198 = vld [vmem:[#allocation8 + $0x4] sm:$0xf]
    %v199 = vld [vmem:[#allocation8 + $0x8] sm:$0xf]
    %v200 = vld [vmem:[#allocation8 + $0xc] sm:$0xf]
    %v201 = vld [vmem:[#allocation8 + $0x10] sm:$0xf]
    %v202 = vld [vmem:[#allocation8 + $0x14] sm:$0xf]
    %v203 = vld [vmem:[#allocation8 + $0x18] sm:$0xf]
    %v204 = vld [vmem:[#allocation8 + $0x1c] sm:$0xf]
    %v205 = vld [vmem:[#allocation8 + $0x20] sm:$0xf]
    %v206 = vld [vmem:[#allocation8 + $0x24] sm:$0xf]
    %v207 = vld [vmem:[#allocation8 + $0x28] sm:$0xf]
    %v208 = vld [vmem:[#allocation8 + $0x2c] sm:$0xf]
    %v209 = vld [vmem:[#allocation8 + $0x30] sm:$0xf]
    %v210 = vld [vmem:[#allocation8 + $0x34] sm:$0xf]
    %v211 = vld [vmem:[#allocation8 + $0x38] sm:$0xf]
    %v212 = vld [vmem:[#allocation8 + $0x3c] sm:$0xf]
    %v213 = vld [vmem:[#allocation10] sm:$0xf]
    %v214 = vld [vmem:[#allocation10 + $0x4] sm:$0xf]
    %v215 = vld [vmem:[#allocation10 + $0x8] sm:$0xf]
    %v216 = vld [vmem:[#allocation10 + $0xc] sm:$0xf]
    %v217 = vld [vmem:[#allocation10 + $0x10] sm:$0xf]
    %v218 = vld [vmem:[#allocation10 + $0x14] sm:$0xf]
    %v219 = vld [vmem:[#allocation10 + $0x18] sm:$0xf]
    %v220 = vld [vmem:[#allocation10 + $0x1c] sm:$0xf]
    %v221 = vld [vmem:[#allocation10 + $0x20] sm:$0xf]
    %v222 = vld [vmem:[#allocation10 + $0x24] sm:$0xf]
    %v223 = vld [vmem:[#allocation10 + $0x28] sm:$0xf]
    %v224 = vld [vmem:[#allocation10 + $0x2c] sm:$0xf]
    %v225 = vld [vmem:[#allocation10 + $0x30] sm:$0xf]
    %v226 = vld [vmem:[#allocation10 + $0x34] sm:$0xf]
    %v227 = vld [vmem:[#allocation10 + $0x38] sm:$0xf]
    %v228 = vld [vmem:[#allocation10 + $0x3c] sm:$0xf]
    %v229 = vld [vmem:[#allocation11] sm:$0xff]
    %v230 = vld [vmem:[#allocation11 + $0x8] sm:$0xff]
    %v231 = vld [vmem:[#allocation11 + $0x10] sm:$0xff]
    %v232 = vld [vmem:[#allocation11 + $0x18] sm:$0xff]
    %v233 = vld [vmem:[#allocation11 + $0x20] sm:$0xff]
    %v234 = vld [vmem:[#allocation11 + $0x28] sm:$0xff]
    %v235 = vld [vmem:[#allocation11 + $0x30] sm:$0xff]
    %v236 = vld [vmem:[#allocation11 + $0x38] sm:$0xff]
    %v237 = vld [vmem:[#allocation11 + $0x40] sm:$0xff]
    %v238 = vld [vmem:[#allocation11 + $0x48] sm:$0xff]
    %v239 = vld [vmem:[#allocation11 + $0x50] sm:$0xff]
    %v240 = vld [vmem:[#allocation11 + $0x58] sm:$0xff]
    %v241 = vld [vmem:[#allocation11 + $0x60] sm:$0xff]
    %v242 = vld [vmem:[#allocation11 + $0x68] sm:$0xff]
    %v243 = vld [vmem:[#allocation11 + $0x70] sm:$0xff]
    %v244 = vld [vmem:[#allocation11 + $0x78] sm:$0xff]
    %v245 = vld [vmem:[#allocation13] sm:$0xf]
    %v246 = vld [vmem:[#allocation13 + $0x4] sm:$0xf]
    %v247 = vld [vmem:[#allocation13 + $0x8] sm:$0xf]
    %v248 = vld [vmem:[#allocation13 + $0xc] sm:$0xf]
    %v249 = vld [vmem:[#allocation13 + $0x10] sm:$0xf]
    %v250 = vld [vmem:[#allocation13 + $0x14] sm:$0xf]
    %v251 = vld [vmem:[#allocation13 + $0x18] sm:$0xf]
    %v252 = vld [vmem:[#allocation13 + $0x1c] sm:$0xf]
    %v253 = vld [vmem:[#allocation13 + $0x20] sm:$0xf]
    %v254 = vld [vmem:[#allocation13 + $0x24] sm:$0xf]
    %v255 = vld [vmem:[#allocation13 + $0x28] sm:$0xf]
    %v256 = vld [vmem:[#allocation13 + $0x2c] sm:$0xf]
    %v257 = vld [vmem:[#allocation13 + $0x30] sm:$0xf]
    %v258 = vld [vmem:[#allocation13 + $0x34] sm:$0xf]
    %v259 = vld [vmem:[#allocation13 + $0x38] sm:$0xf]
    %v260 = vld [vmem:[#allocation13 + $0x3c] sm:$0xf]
    %v261 = vld [vmem:[#allocation14] sm:$0xf]
    %v262 = vld [vmem:[#allocation14 + $0x4] sm:$0xf]
    %v263 = vld [vmem:[#allocation14 + $0x8] sm:$0xf]
    %v264 = vld [vmem:[#allocation14 + $0xc] sm:$0xf]
    %v265 = vld [vmem:[#allocation14 + $0x10] sm:$0xf]
    %v266 = vld [vmem:[#allocation14 + $0x14] sm:$0xf]
    %v267 = vld [vmem:[#allocation14 + $0x18] sm:$0xf]
    %v268 = vld [vmem:[#allocation14 + $0x1c] sm:$0xf]
    %v269 = vld [vmem:[#allocation14 + $0x20] sm:$0xf]
    %v270 = vld [vmem:[#allocation14 + $0x24] sm:$0xf]
    %v271 = vld [vmem:[#allocation14 + $0x28] sm:$0xf]
    %v272 = vld [vmem:[#allocation14 + $0x2c] sm:$0xf]
    %v273 = vld [vmem:[#allocation14 + $0x30] sm:$0xf]
    %v274 = vld [vmem:[#allocation14 + $0x34] sm:$0xf]
    %v275 = vld [vmem:[#allocation14 + $0x38] sm:$0xf]
    %v276 = vld [vmem:[#allocation14 + $0x3c] sm:$0xf]
    %v277 = vld [vmem:[#allocation16] sm:$0xf]
    %v278 = vld [vmem:[#allocation16 + $0x4] sm:$0xf]
    %v279 = vld [vmem:[#allocation16 + $0x8] sm:$0xf]
    %v280 = vld [vmem:[#allocation16 + $0xc] sm:$0xf]
    %v281 = vld [vmem:[#allocation16 + $0x10] sm:$0xf]
    %v282 = vld [vmem:[#allocation16 + $0x14] sm:$0xf]
    %v283 = vld [vmem:[#allocation16 + $0x18] sm:$0xf]
    %v284 = vld [vmem:[#allocation16 + $0x1c] sm:$0xf]
    %v285 = vld [vmem:[#allocation16 + $0x20] sm:$0xf]
    %v286 = vld [vmem:[#allocation16 + $0x24] sm:$0xf]
    %v287 = vld [vmem:[#allocation16 + $0x28] sm:$0xf]
    %v288 = vld [vmem:[#allocation16 + $0x2c] sm:$0xf]
    %v289 = vld [vmem:[#allocation16 + $0x30] sm:$0xf]
    %v290 = vld [vmem:[#allocation16 + $0x34] sm:$0xf]
    %v291 = vld [vmem:[#allocation16 + $0x38] sm:$0xf]
    %v292 = vld [vmem:[#allocation16 + $0x3c] sm:$0xf]
    %v293 = vld [vmem:[%s9] sm:$0xff]
    %v294 = vld [vmem:[%s9 + $0x8] sm:$0xff]
    %v295 = vlaneseq
    %v296 = vshrl.u32 %v295, 7
    %v297 = vlaneseq
    %v298 = vand.u32 %v297, 127
    %vm299 = vcmp.le.s32.totalorder %v298, %v296
    %v300 = vpack.c.bf16 %v160, %v159
    %v333 = vunpack.c.l.b16 %v165
    %v334 = vunpack.c.h.b16 %v165
    %v335 = vunpack.c.l.b16 %v166
    %v336 = vunpack.c.l.b16 %v167
    %v337 = vunpack.c.h.b16 %v167
    %v338 = vunpack.c.l.b16 %v168
    %v339 = vunpack.c.l.b16 %v169
    %v340 = vunpack.c.h.b16 %v169
    %v341 = vunpack.c.l.b16 %v170
    %v342 = vunpack.c.l.b16 %v171
    %v343 = vunpack.c.h.b16 %v171
    %v344 = vunpack.c.l.b16 %v172
    %v345 = vunpack.c.l.b16 %v173
    %v346 = vunpack.c.h.b16 %v173
    %v347 = vunpack.c.l.b16 %v174
    %v348 = vunpack.c.l.b16 %v175
    %v349 = vunpack.c.h.b16 %v175
    %v350 = vunpack.c.l.b16 %v176
    %v351 = vunpack.c.l.b16 %v177
    %v352 = vunpack.c.h.b16 %v177
    %v353 = vunpack.c.l.b16 %v178
    %v354 = vunpack.c.l.b16 %v179
    %v355 = vunpack.c.h.b16 %v179
    %v356 = vunpack.c.l.b16 %v180
    %v357 = vunpack.c.l.b16 %v181
    %v358 = vunpack.c.h.b16 %v181
    %v359 = vunpack.c.l.b16 %v182
    %v360 = vunpack.c.l.b16 %v183
    %v361 = vunpack.c.h.b16 %v183
    %v362 = vunpack.c.l.b16 %v184
    %v363 = vunpack.c.l.b16 %v185
    %v364 = vunpack.c.h.b16 %v185
    %v365 = vunpack.c.l.b16 %v186
    %v366 = vunpack.c.l.b16 %v187
    %v367 = vunpack.c.h.b16 %v187
    %v368 = vunpack.c.l.b16 %v188
    %v369 = vunpack.c.l.b16 %v189
    %v370 = vunpack.c.h.b16 %v189
    %v371 = vunpack.c.l.b16 %v190
    %v372 = vunpack.c.l.b16 %v191
    %v373 = vunpack.c.h.b16 %v191
    %v374 = vunpack.c.l.b16 %v192
    %v375 = vunpack.c.l.b16 %v193
    %v376 = vunpack.c.h.b16 %v193
    %v377 = vunpack.c.l.b16 %v194
    %v378 = vunpack.c.l.b16 %v195
    %v379 = vunpack.c.h.b16 %v195
    %v380 = vunpack.c.l.b16 %v196
    %v381 = vpack.c.b16 %v336, %v333
    %v382 = vpack.c.b16 %v337, %v334
    %v383 = vpack.c.b16 %v338, %v335
    %v384 = vpack.c.b16 %v342, %v339
    %v385 = vpack.c.b16 %v343, %v340
    %v386 = vpack.c.b16 %v344, %v341
    %v387 = vpack.c.b16 %v348, %v345
    %v388 = vpack.c.b16 %v349, %v346
    %v389 = vpack.c.b16 %v350, %v347
    %v390 = vpack.c.b16 %v354, %v351
    %v391 = vpack.c.b16 %v355, %v352
    %v392 = vpack.c.b16 %v356, %v353
    %v393 = vpack.c.b16 %v360, %v357
    %v394 = vpack.c.b16 %v361, %v358
    %v395 = vpack.c.b16 %v362, %v359
    %v396 = vpack.c.b16 %v366, %v363
    %v397 = vpack.c.b16 %v367, %v364
    %v398 = vpack.c.b16 %v368, %v365
    %v399 = vpack.c.b16 %v372, %v369
    %v400 = vpack.c.b16 %v373, %v370
    %v401 = vpack.c.b16 %v374, %v371
    %v402 = vpack.c.b16 %v378, %v375
    %v403 = vpack.c.b16 %v379, %v376
    %v404 = vpack.c.b16 %v380, %v377
    %429 = vmatprep.subr.bf16.mxu0 %v382
    %430 = vmatpush1.bf16.msra.mxu0 %v381
    %431 = vmatprep.subr.bf16.mxu0 %v385
    %432 = vmatpush1.bf16.msra.mxu0 %v384
    %433 = vmatprep.subr.bf16.mxu0 %v388
    %434 = vmatpush1.bf16.msra.mxu0 %v387
    %435 = vmatprep.subr.bf16.mxu0 %v391
    %436 = vmatpush1.bf16.msra.mxu0 %v390
    %437 = vmatprep.subr.bf16.mxu0 %v394
    %438 = vmatpush1.bf16.msra.mxu0 %v393
    %439 = vmatprep.subr.bf16.mxu0 %v397
    %440 = vmatpush1.bf16.msra.mxu0 %v396
    %441 = vmatprep.subr.bf16.mxu0 %v400
    %442 = vmatpush1.bf16.msra.mxu0 %v399
    %443 = vmatprep.subr.bf16.mxu0 %v403
    %444 = vmatpush1.bf16.msra.mxu0 %v402
    %445 = vmatprep.subr.bf16.mxu0 0
    %446 = vmatpush1.bf16.msra.mxu0 0
    %447 = vmatprep.subr.bf16.mxu0 0
    %448 = vmatpush1.bf16.msra.mxu0 0
    %449 = vmatprep.subr.bf16.mxu0 0
    %450 = vmatpush1.bf16.msra.mxu0 0
    %451 = vmatprep.subr.bf16.mxu0 0
    %452 = vmatpush1.bf16.msra.mxu0 0
    %453 = vmatprep.subr.bf16.mxu0 0
    %454 = vmatpush1.bf16.msra.mxu0 0
    %455 = vmatprep.subr.bf16.mxu0 0
    %456 = vmatpush1.bf16.msra.mxu0 0
    %457 = vmatprep.subr.bf16.mxu0 0
    %458 = vmatpush1.bf16.msra.mxu0 0
    %459 = vmatprep.subr.bf16.mxu0 0
    %460 = vmatpush1.bf16.msra.mxu0 0
    %461 = vmatprep.mubr.bf16.mxu0 0
    %462 = vmatmul.mubr.bf16.gmra.mrb[0].mxu0 %v300
    %v463 = vpop.f32.mrb[0].mxu0
    %v464 = vadd.f32 0.0, %v463
    %v465 = vpop.f32.mrb[0].mxu0
    %v466 = vadd.f32 0.0, %v465
    %v467 = vpop.f32.mrb[0].mxu0
    %v468 = vadd.f32 0.0, %v467
    %v469 = vpop.f32.mrb[0].mxu0
    %v470 = vadd.f32 0.0, %v469
    %471 = vdwg.mxu0
    %472 = vmatprep.subr.bf16.mxu0 0
    %473 = vmatpush1.bf16.msra.mxu0 %v383
    %474 = vmatprep.subr.bf16.mxu0 0
    %475 = vmatpush1.bf16.msra.mxu0 %v386
    %476 = vmatprep.subr.bf16.mxu0 0
    %477 = vmatpush1.bf16.msra.mxu0 %v389
    %478 = vmatprep.subr.bf16.mxu0 0
    %479 = vmatpush1.bf16.msra.mxu0 %v392
    %480 = vmatprep.subr.bf16.mxu0 0
    %481 = vmatpush1.bf16.msra.mxu0 %v395
    %482 = vmatprep.subr.bf16.mxu0 0
    %483 = vmatpush1.bf16.msra.mxu0 %v398
    %484 = vmatprep.subr.bf16.mxu0 0
    %485 = vmatpush1.bf16.msra.mxu0 %v401
    %486 = vmatprep.subr.bf16.mxu0 0
    %487 = vmatpush1.bf16.msra.mxu0 %v404
    %488 = vmatprep.subr.bf16.mxu0 0
    %489 = vmatpush1.bf16.msra.mxu0 0
    %490 = vmatprep.subr.bf16.mxu0 0
    %491 = vmatpush1.bf16.msra.mxu0 0
    %492 = vmatprep.subr.bf16.mxu0 0
    %493 = vmatpush1.bf16.msra.mxu0 0
    %494 = vmatprep.subr.bf16.mxu0 0
    %495 = vmatpush1.bf16.msra.mxu0 0
    %496 = vmatprep.subr.bf16.mxu0 0
    %497 = vmatpush1.bf16.msra.mxu0 0
    %498 = vmatprep.subr.bf16.mxu0 0
    %499 = vmatpush1.bf16.msra.mxu0 0
    %500 = vmatprep.subr.bf16.mxu0 0
    %501 = vmatpush1.bf16.msra.mxu0 0
    %502 = vmatprep.subr.bf16.mxu0 0
    %503 = vmatpush1.bf16.msra.mxu0 0
    %504 = vmatprep.mubr.bf16.mxu0 0
    %505 = vmatmul.mubr.bf16.gmra.mrb[0].mxu0 %v300
    %v506 = vpop.f32.mrb[0].mxu0
    %v507 = vadd.f32 0.0, %v506
    %v508 = vpop.f32.mrb[0].mxu0
    %v509 = vpop.f32.mrb[0].mxu0
    %v510 = vadd.f32 0.0, %v509
    %v511 = vpop.f32.mrb[0].mxu0
    %512 = vdwg.mxu0
    %v513 = vlaneseq
    %v514 = vshrl.u32 %v513, 7
    %v515 = vsub.s32 0, %v514
    %v516 = vrot.slane %v293, %v515
    %v517 = vadd.f32 %v464, %v516
    %v518 = vadd.f32 %v468, %v516
    %v519 = vlaneseq
    %v520 = vshrl.u32 %v519, 7
    %v521 = vsub.s32 1, %v520
    %v522 = vrot.slane %v293, %v521
    %v523 = vadd.f32 %v466, %v522
    %v524 = vadd.f32 %v470, %v522
    %v525 = vlaneseq
    %v526 = vshrl.u32 %v525, 7
    %v527 = vsub.s32 2, %v526
    %v528 = vrot.slane %v293, %v527
    %v529 = vadd.f32 %v507, %v528
    %v530 = vadd.f32 %v510, %v528
    %v531 = vpack.c.bf16 %v517, %v517
    %v532 = vpack.c.bf16 %v518, %v518
    %v533 = vpack.c.bf16 %v523, %v523
    %v534 = vpack.c.bf16 %v524, %v524
    %535 = vmatprep.subr.bf16.mxu0 0
    %536 = vmatpush1.bf16.xpose.msra.mxu0 %v533
    %537 = vmatprep.subr.bf16.mxu0 0
    %538 = vmatpush1.bf16.xpose.msra.mxu0 0
    %539 = vmatprep.subr.bf16.mxu0 0
    %540 = vmatpush1.bf16.xpose.msra.mxu0 0
    %541 = vmatprep.subr.bf16.mxu0 0
    %542 = vmatpush1.bf16.xpose.msra.mxu0 0
    %543 = vmatprep.subr.bf16.mxu0 0
    %544 = vmatpush1.bf16.xpose.msra.mxu0 0
    %545 = vmatprep.subr.bf16.mxu0 0
    %546 = vmatpush1.bf16.xpose.msra.mxu0 0
    %547 = vmatprep.subr.bf16.mxu0 0
    %548 = vmatpush1.bf16.xpose.msra.mxu0 0
    %549 = vmatprep.subr.bf16.mxu0 0
    %550 = vmatpush1.bf16.xpose.msra.mxu0 0
    %551 = vmatprep.subr.bf16.mxu0 0
    %552 = vmatpush1.bf16.xpose.msra.mxu0 0
    %553 = vmatprep.subr.bf16.mxu0 0
    %554 = vmatpush1.bf16.xpose.msra.mxu0 0
    %555 = vmatprep.subr.bf16.mxu0 0
    %556 = vmatpush1.bf16.xpose.msra.mxu0 0
    %557 = vmatprep.subr.bf16.mxu0 0
    %558 = vmatpush1.bf16.xpose.msra.mxu0 0
    %559 = vmatprep.subr.bf16.mxu0 0
    %560 = vmatpush1.bf16.xpose.msra.mxu0 0
    %561 = vmatprep.subr.bf16.mxu0 0
    %562 = vmatpush1.bf16.xpose.msra.mxu0 0
    %563 = vmatprep.subr.bf16.mxu0 0
    %564 = vmatpush1.bf16.xpose.msra.mxu0 0
    %565 = vmatprep.subr.bf16.mxu0 0
    %566 = vmatpush1.bf16.xpose.msra.mxu0 0
    %567 = vmatprep.mubr.bf16.mxu0 0
    %568 = vmatmul.mubr.bf16.gmra.mrb[0].mxu0 %v531
    %v569 = vpop.f32.mrb[0].mxu0
    %v570 = vadd.f32 0.0, %v569
    %v571 = vpop.f32.mrb[0].mxu0
    %v572 = vpop.f32.mrb[0].mxu0
    %v573 = vpop.f32.mrb[0].mxu0
    %574 = vdwg.mxu0
    %575 = vmatprep.subr.bf16.mxu0 0
    %576 = vmatpush1.bf16.xpose.msra.mxu0 %v534
    %577 = vmatprep.subr.bf16.mxu0 0
    %578 = vmatpush1.bf16.xpose.msra.mxu0 0
    %579 = vmatprep.subr.bf16.mxu0 0
    %580 = vmatpush1.bf16.xpose.msra.mxu0 0
    %581 = vmatprep.subr.bf16.mxu0 0
    %582 = vmatpush1.bf16.xpose.msra.mxu0 0
    %583 = vmatprep.subr.bf16.mxu0 0
    %584 = vmatpush1.bf16.xpose.msra.mxu0 0
    %585 = vmatprep.subr.bf16.mxu0 0
    %586 = vmatpush1.bf16.xpose.msra.mxu0 0
    %587 = vmatprep.subr.bf16.mxu0 0
    %588 = vmatpush1.bf16.xpose.msra.mxu0 0
    %589 = vmatprep.subr.bf16.mxu0 0
    %590 = vmatpush1.bf16.xpose.msra.mxu0 0
    %591 = vmatprep.subr.bf16.mxu0 0
    %592 = vmatpush1.bf16.xpose.msra.mxu0 0
    %593 = vmatprep.subr.bf16.mxu0 0
    %594 = vmatpush1.bf16.xpose.msra.mxu0 0
    %595 = vmatprep.subr.bf16.mxu0 0
    %596 = vmatpush1.bf16.xpose.msra.mxu0 0
    %597 = vmatprep.subr.bf16.mxu0 0
    %598 = vmatpush1.bf16.xpose.msra.mxu0 0
    %599 = vmatprep.subr.bf16.mxu0 0
    %600 = vmatpush1.bf16.xpose.msra.mxu0 0
    %601 = vmatprep.subr.bf16.mxu0 0
    %602 = vmatpush1.bf16.xpose.msra.mxu0 0
    %603 = vmatprep.subr.bf16.mxu0 0
    %604 = vmatpush1.bf16.xpose.msra.mxu0 0
    %605 = vmatprep.subr.bf16.mxu0 0
    %606 = vmatpush1.bf16.xpose.msra.mxu0 0
    %607 = vmatprep.mubr.bf16.mxu0 0
    %608 = vmatmul.mubr.bf16.gmra.mrb[0].mxu0 %v532
    %v609 = vpop.f32.mrb[0].mxu0
    %v610 = vadd.f32 0.0, %v609
    %v611 = vpop.f32.mrb[0].mxu0
    %v612 = vpop.f32.mrb[0].mxu0
    %v613 = vpop.f32.mrb[0].mxu0
    %614 = vdwg.mxu0
    %v615 = vsel %vm299, 1, 0
    %vm616 = vcmp.eq.s32.totalorder %v615, 1
    %v617 = vsel %vm616, %v570, -1e+30
    %v618 = vsel %vm616, %v610, -1e+30
    %vm619 = vcmask 64512
    %v620 = vsel %vm619, %v617, -inf
    %621 = vmax.xlane.f32.xlu0 %v620
    %v622 = vpop.xlane.xlu0 %621
    %v623 = vsel %vm619, %v618, -inf
    %624 = vmax.xlane.f32.xlu0 %v623
    %v625 = vpop.xlane.xlu0 %624
    %v626 = vsub.f32 %v617, %v622
    %v627 = vsub.f32 %v618, %v625
    %v628 = vmul.f32 %v626, 1.442695
    %v629 = vpow.pop %v628
    %v630 = vmul.f32 %v627, 1.442695
    %v631 = vpow.pop %v630
    %v632 = vsel %vm619, %v629, 0.0
    %633 = vadd.xlane.f32.xlu0 %v632
    %v634 = vpop.xlane.xlu0 %633
    %v635 = vsel %vm619, %v631, 0.0
    %636 = vadd.xlane.f32.xlu0 %v635
    %v637 = vpop.xlane.xlu0 %636
    %v638 = vrcp.pop %v634
    %v639 = vrcp.pop %v637
    %v640 = vmul.f32 %v629, %v638
    %v641 = vmul.f32 %v631, %v639
    %v642 = vpack.c.bf16 %v640, %v640
    %v643 = vpack.c.bf16 %v641, %v641
    %v644 = vpack.c.bf16 %v529, %v529
    %v645 = vpack.c.bf16 %v530, %v530
    %v647 = vsel %vm619, %v642, 0
    %vm649 = vcmask 1043456
    %v651 = vsel %vm649, %v644, 0
    %653 = vmatprep.subr.bf16.mxu0 0
    %654 = vmatpush1.bf16.msra.mxu0 %v651
    %655 = vmatprep.subr.bf16.mxu0 0
    %656 = vmatpush1.bf16.msra.mxu0 0
    %657 = vmatprep.subr.bf16.mxu0 0
    %658 = vmatpush1.bf16.msra.mxu0 0
    %659 = vmatprep.subr.bf16.mxu0 0
    %660 = vmatpush1.bf16.msra.mxu0 0
    %661 = vmatprep.subr.bf16.mxu0 0
    %662 = vmatpush1.bf16.msra.mxu0 0
    %663 = vmatprep.subr.bf16.mxu0 0
    %664 = vmatpush1.bf16.msra.mxu0 0
    %665 = vmatprep.subr.bf16.mxu0 0
    %666 = vmatpush1.bf16.msra.mxu0 0
    %667 = vmatprep.subr.bf16.mxu0 0
    %668 = vmatpush1.bf16.msra.mxu0 0
    %669 = vmatprep.subr.bf16.mxu0 0
    %670 = vmatpush1.bf16.msra.mxu0 0
    %671 = vmatprep.subr.bf16.mxu0 0
    %672 = vmatpush1.bf16.msra.mxu0 0
    %673 = vmatprep.subr.bf16.mxu0 0
    %674 = vmatpush1.bf16.msra.mxu0 0
    %675 = vmatprep.subr.bf16.mxu0 0
    %676 = vmatpush1.bf16.msra.mxu0 0
    %677 = vmatprep.subr.bf16.mxu0 0
    %678 = vmatpush1.bf16.msra.mxu0 0
    %679 = vmatprep.subr.bf16.mxu0 0
    %680 = vmatpush1.bf16.msra.mxu0 0
    %681 = vmatprep.subr.bf16.mxu0 0
    %682 = vmatpush1.bf16.msra.mxu0 0
    %683 = vmatprep.subr.bf16.mxu0 0
    %684 = vmatpush1.bf16.msra.mxu0 0
    %685 = vmatprep.mubr.bf16.mxu0 0
    %686 = vmatmul.mubr.bf16.gmra.mrb[0].mxu0 %v647
    %v687 = vpop.f32.mrb[0].mxu0
    %v688 = vadd.f32 0.0, %v687
    %v689 = vpop.f32.mrb[0].mxu0
    %v690 = vpop.f32.mrb[0].mxu0
    %v691 = vpop.f32.mrb[0].mxu0
    %692 = vdwg.mxu0
    %v694 = vsel %vm619, %v643, 0
    %v697 = vsel %vm649, %v645, 0
    %699 = vmatprep.subr.bf16.mxu0 0
    %700 = vmatpush1.bf16.msra.mxu0 %v697
    %701 = vmatprep.subr.bf16.mxu0 0
    %702 = vmatpush1.bf16.msra.mxu0 0
    %703 = vmatprep.subr.bf16.mxu0 0
    %704 = vmatpush1.bf16.msra.mxu0 0
    %705 = vmatprep.subr.bf16.mxu0 0
    %706 = vmatpush1.bf16.msra.mxu0 0
    %707 = vmatprep.subr.bf16.mxu0 0
    %708 = vmatpush1.bf16.msra.mxu0 0
    %709 = vmatprep.subr.bf16.mxu0 0
    %710 = vmatpush1.bf16.msra.mxu0 0
    %711 = vmatprep.subr.bf16.mxu0 0
    %712 = vmatpush1.bf16.msra.mxu0 0
    %713 = vmatprep.subr.bf16.mxu0 0
    %714 = vmatpush1.bf16.msra.mxu0 0
    %715 = vmatprep.subr.bf16.mxu0 0
    %716 = vmatpush1.bf16.msra.mxu0 0
    %717 = vmatprep.subr.bf16.mxu0 0
    %718 = vmatpush1.bf16.msra.mxu0 0
    %719 = vmatprep.subr.bf16.mxu0 0
    %720 = vmatpush1.bf16.msra.mxu0 0
    %721 = vmatprep.subr.bf16.mxu0 0
    %722 = vmatpush1.bf16.msra.mxu0 0
    %723 = vmatprep.subr.bf16.mxu0 0
    %724 = vmatpush1.bf16.msra.mxu0 0
    %725 = vmatprep.subr.bf16.mxu0 0
    %726 = vmatpush1.bf16.msra.mxu0 0
    %727 = vmatprep.subr.bf16.mxu0 0
    %728 = vmatpush1.bf16.msra.mxu0 0
    %729 = vmatprep.subr.bf16.mxu0 0
    %730 = vmatpush1.bf16.msra.mxu0 0
    %731 = vmatprep.mubr.bf16.mxu0 0
    %732 = vmatmul.mubr.bf16.gmra.mrb[0].mxu0 %v694
    %v733 = vpop.f32.mrb[0].mxu0
    %v734 = vadd.f32 0.0, %v733
    %v735 = vpop.f32.mrb[0].mxu0
    %v736 = vpop.f32.mrb[0].mxu0
    %v737 = vpop.f32.mrb[0].mxu0
    %738 = vdwg.mxu0
    %v739 = vpack.c.bf16 %v734, %v688
    %v740 = vlaneseq
    %v741 = vshrl.u32 %v740, 7
    %v742 = vsub.s32 3, %v741
    %v743 = vrot.slane %v293, %v742
    %v760 = vunpack.c.l.b16 %v197
    %v761 = vunpack.c.l.b16 %v198
    %v762 = vunpack.c.l.b16 %v199
    %v763 = vunpack.c.l.b16 %v200
    %v764 = vunpack.c.l.b16 %v201
    %v765 = vunpack.c.l.b16 %v202
    %v766 = vunpack.c.l.b16 %v203
    %v767 = vunpack.c.l.b16 %v204
    %v768 = vunpack.c.l.b16 %v205
    %v769 = vunpack.c.l.b16 %v206
    %v770 = vunpack.c.l.b16 %v207
    %v771 = vunpack.c.l.b16 %v208
    %v772 = vunpack.c.l.b16 %v209
    %v773 = vunpack.c.l.b16 %v210
    %v774 = vunpack.c.l.b16 %v211
    %v775 = vunpack.c.l.b16 %v212
    %v776 = vpack.c.b16 %v761, %v760
    %v777 = vpack.c.b16 %v763, %v762
    %v778 = vpack.c.b16 %v765, %v764
    %v779 = vpack.c.b16 %v767, %v766
    %v780 = vpack.c.b16 %v769, %v768
    %v781 = vpack.c.b16 %v771, %v770
    %v782 = vpack.c.b16 %v773, %v772
    %v783 = vpack.c.b16 %v775, %v774
    %792 = vmatprep.subr.bf16.mxu0 0
    %793 = vmatpush1.bf16.msra.mxu0 %v776
    %794 = vmatprep.subr.bf16.mxu0 0
    %795 = vmatpush1.bf16.msra.mxu0 %v777
    %796 = vmatprep.subr.bf16.mxu0 0
    %797 = vmatpush1.bf16.msra.mxu0 %v778
    %798 = vmatprep.subr.bf16.mxu0 0
    %799 = vmatpush1.bf16.msra.mxu0 %v779
    %800 = vmatprep.subr.bf16.mxu0 0
    %801 = vmatpush1.bf16.msra.mxu0 %v780
    %802 = vmatprep.subr.bf16.mxu0 0
    %803 = vmatpush1.bf16.msra.mxu0 %v781
    %804 = vmatprep.subr.bf16.mxu0 0
    %805 = vmatpush1.bf16.msra.mxu0 %v782
    %806 = vmatprep.subr.bf16.mxu0 0
    %807 = vmatpush1.bf16.msra.mxu0 %v783
    %808 = vmatprep.subr.bf16.mxu0 0
    %809 = vmatpush1.bf16.msra.mxu0 0
    %810 = vmatprep.subr.bf16.mxu0 0
    %811 = vmatpush1.bf16.msra.mxu0 0
    %812 = vmatprep.subr.bf16.mxu0 0
    %813 = vmatpush1.bf16.msra.mxu0 0
    %814 = vmatprep.subr.bf16.mxu0 0
    %815 = vmatpush1.bf16.msra.mxu0 0
    %816 = vmatprep.subr.bf16.mxu0 0
    %817 = vmatpush1.bf16.msra.mxu0 0
    %818 = vmatprep.subr.bf16.mxu0 0
    %819 = vmatpush1.bf16.msra.mxu0 0
    %820 = vmatprep.subr.bf16.mxu0 0
    %821 = vmatpush1.bf16.msra.mxu0 0
    %822 = vmatprep.subr.bf16.mxu0 0
    %823 = vmatpush1.bf16.msra.mxu0 0
    %824 = vmatprep.mubr.bf16.mxu0 0
    %825 = vmatmul.mubr.bf16.gmra.mrb[0].mxu0 %v739
    %v826 = vpop.f32.mrb[0].mxu0
    %v827 = vadd.f32 %v743, %v826
    %v828 = vpop.f32.mrb[0].mxu0
    %v829 = vpop.f32.mrb[0].mxu0
    %v830 = vadd.f32 %v743, %v829
    %v831 = vpop.f32.mrb[0].mxu0
    %832 = vdwg.mxu0
    %v833 = vadd.f32 %v159, %v827
    %v834 = vadd.f32 %v160, %v830
    %835 = vadd.xlane.f32.xlu0 %v833
    %v836 = vpop.xlane.xlu0 %835
    %837 = vadd.xlane.f32.xlu0 %v834
    %v838 = vpop.xlane.xlu0 %837
    %v839 = vrcp.pop 128.0
    %v840 = vmul.f32 %v836, %v839
    %v841 = vmul.f32 %v838, %v839
    %v842 = vsub.f32 %v833, %v840
    %v843 = vsub.f32 %v834, %v841
    %v844 = vmul.f32 %v842, %v842
    %v845 = vmul.f32 %v843, %v843
    %846 = vadd.xlane.f32.xlu0 %v844
    %v847 = vpop.xlane.xlu0 %846
    %848 = vadd.xlane.f32.xlu0 %v845
    %v849 = vpop.xlane.xlu0 %848
    %v850 = vmul.f32 %v847, %v839
    %v851 = vmul.f32 %v849, %v839
    %v852 = vadd.f32 %v850, 1e-05
    %v853 = vadd.f32 %v851, 1e-05
    %v854 = vrsqrt.pop %v852
    %v855 = vrsqrt.pop %v853
    %v856 = vmul.f32 %v842, %v854
    %v857 = vmul.f32 %v843, %v855
    %v858 = vlaneseq
    %v859 = vshrl.u32 %v858, 7
    %v860 = vsub.s32 2, %v859
    %v861 = vrot.slane %v294, %v860
    %v862 = vmul.f32 %v856, %v861
    %v863 = vmul.f32 %v857, %v861
    %v864 = vlaneseq
    %v865 = vshrl.u32 %v864, 7
    %v866 = vsub.s32 5, %v865
    %v867 = vrot.slane %v294, %v866
    %v868 = vadd.f32 %v862, %v867
    %v869 = vadd.f32 %v863, %v867
    %v870 = vpack.c.bf16 %v869, %v868
    %v871 = vlaneseq
    %v872 = vshrl.u32 %v871, 7
    %v873 = vsub.s32 4, %v872
    %v874 = vrot.slane %v293, %v873
    %v891 = vunpack.c.l.b16 %v213
    %v892 = vunpack.c.l.b16 %v214
    %v893 = vunpack.c.l.b16 %v215
    %v894 = vunpack.c.l.b16 %v216
    %v895 = vunpack.c.l.b16 %v217
    %v896 = vunpack.c.l.b16 %v218
    %v897 = vunpack.c.l.b16 %v219
    %v898 = vunpack.c.l.b16 %v220
    %v899 = vunpack.c.l.b16 %v221
    %v900 = vunpack.c.l.b16 %v222
    %v901 = vunpack.c.l.b16 %v223
    %v902 = vunpack.c.l.b16 %v224
    %v903 = vunpack.c.l.b16 %v225
    %v904 = vunpack.c.l.b16 %v226
    %v905 = vunpack.c.l.b16 %v227
    %v906 = vunpack.c.l.b16 %v228
    %v907 = vpack.c.b16 %v892, %v891
    %v908 = vpack.c.b16 %v894, %v893
    %v909 = vpack.c.b16 %v896, %v895
    %v910 = vpack.c.b16 %v898, %v897
    %v911 = vpack.c.b16 %v900, %v899
    %v912 = vpack.c.b16 %v902, %v901
    %v913 = vpack.c.b16 %v904, %v903
    %v914 = vpack.c.b16 %v906, %v905
    %923 = vmatprep.subr.bf16.mxu0 0
    %924 = vmatpush1.bf16.msra.mxu0 %v907
    %925 = vmatprep.subr.bf16.mxu0 0
    %926 = vmatpush1.bf16.msra.mxu0 %v908
    %927 = vmatprep.subr.bf16.mxu0 0
    %928 = vmatpush1.bf16.msra.mxu0 %v909
    %929 = vmatprep.subr.bf16.mxu0 0
    %930 = vmatpush1.bf16.msra.mxu0 %v910
    %931 = vmatprep.subr.bf16.mxu0 0
    %932 = vmatpush1.bf16.msra.mxu0 %v911
    %933 = vmatprep.subr.bf16.mxu0 0
    %934 = vmatpush1.bf16.msra.mxu0 %v912
    %935 = vmatprep.subr.bf16.mxu0 0
    %936 = vmatpush1.bf16.msra.mxu0 %v913
    %937 = vmatprep.subr.bf16.mxu0 0
    %938 = vmatpush1.bf16.msra.mxu0 %v914
    %939 = vmatprep.subr.bf16.mxu0 0
    %940 = vmatpush1.bf16.msra.mxu0 0
    %941 = vmatprep.subr.bf16.mxu0 0
    %942 = vmatpush1.bf16.msra.mxu0 0
    %943 = vmatprep.subr.bf16.mxu0 0
    %944 = vmatpush1.bf16.msra.mxu0 0
    %945 = vmatprep.subr.bf16.mxu0 0
    %946 = vmatpush1.bf16.msra.mxu0 0
    %947 = vmatprep.subr.bf16.mxu0 0
    %948 = vmatpush1.bf16.msra.mxu0 0
    %949 = vmatprep.subr.bf16.mxu0 0
    %950 = vmatpush1.bf16.msra.mxu0 0
    %951 = vmatprep.subr.bf16.mxu0 0
    %952 = vmatpush1.bf16.msra.mxu0 0
    %953 = vmatprep.subr.bf16.mxu0 0
    %954 = vmatpush1.bf16.msra.mxu0 0
    %955 = vmatprep.mubr.bf16.mxu0 0
    %956 = vmatmul.mubr.bf16.gmra.mrb[0].mxu0 %v870
    %v957 = vpop.f32.mrb[0].mxu0
    %v958 = vadd.f32 %v874, %v957
    %v959 = vpop.f32.mrb[0].mxu0
    %v960 = vpop.f32.mrb[0].mxu0
    %v961 = vadd.f32 %v874, %v960
    %v962 = vpop.f32.mrb[0].mxu0
    %963 = vdwg.mxu0
    %v968 = vunpack.c.l.b16 %v161
    %v969 = vunpack.c.l.b16 %v162
    %v970 = vunpack.c.l.b16 %v163
    %v971 = vunpack.c.l.b16 %v164
    %v972 = vpack.c.b16 %v969, %v968
    %v973 = vpack.c.b16 %v971, %v970
    %v992 = vunpack.c.l.b16 %v229
    %v993 = vunpack.c.h.b16 %v229
    %v994 = vunpack.c.l.b16 %v230
    %v995 = vunpack.c.h.b16 %v230
    %v996 = vunpack.c.l.b16 %v231
    %v997 = vunpack.c.h.b16 %v231
    %v998 = vunpack.c.l.b16 %v232
    %v999 = vunpack.c.h.b16 %v232
    %v1000 = vunpack.c.l.b16 %v233
    %v1001 = vunpack.c.h.b16 %v233
    %v1002 = vunpack.c.l.b16 %v234
    %v1003 = vunpack.c.h.b16 %v234
    %v1004 = vunpack.c.l.b16 %v235
    %v1005 = vunpack.c.h.b16 %v235
    %v1006 = vunpack.c.l.b16 %v236
    %v1007 = vunpack.c.h.b16 %v236
    %v1008 = vunpack.c.l.b16 %v237
    %v1009 = vunpack.c.h.b16 %v237
    %v1010 = vunpack.c.l.b16 %v238
    %v1011 = vunpack.c.h.b16 %v238
    %v1012 = vunpack.c.l.b16 %v239
    %v1013 = vunpack.c.h.b16 %v239
    %v1014 = vunpack.c.l.b16 %v240
    %v1015 = vunpack.c.h.b16 %v240
    %v1016 = vunpack.c.l.b16 %v241
    %v1017 = vunpack.c.h.b16 %v241
    %v1018 = vunpack.c.l.b16 %v242
    %v1019 = vunpack.c.h.b16 %v242
    %v1020 = vunpack.c.l.b16 %v243
    %v1021 = vunpack.c.h.b16 %v243
    %v1022 = vunpack.c.l.b16 %v244
    %v1023 = vunpack.c.h.b16 %v244
    %v1024 = vpack.c.b16 %v994, %v992
    %v1025 = vpack.c.b16 %v995, %v993
    %v1026 = vpack.c.b16 %v998, %v996
    %v1027 = vpack.c.b16 %v999, %v997
    %v1028 = vpack.c.b16 %v1002, %v1000
    %v1029 = vpack.c.b16 %v1003, %v1001
    %v1030 = vpack.c.b16 %v1006, %v1004
    %v1031 = vpack.c.b16 %v1007, %v1005
    %v1032 = vpack.c.b16 %v1010, %v1008
    %v1033 = vpack.c.b16 %v1011, %v1009
    %v1034 = vpack.c.b16 %v1014, %v1012
    %v1035 = vpack.c.b16 %v1015, %v1013
    %v1036 = vpack.c.b16 %v1018, %v1016
    %v1037 = vpack.c.b16 %v1019, %v1017
    %v1038 = vpack.c.b16 %v1022, %v1020
    %v1039 = vpack.c.b16 %v1023, %v1021
    %1056 = vmatprep.subr.bf16.mxu0 %v1025
    %1057 = vmatpush1.bf16.msra.mxu0 %v1024
    %1058 = vmatprep.subr.bf16.mxu0 %v1027
    %1059 = vmatpush1.bf16.msra.mxu0 %v1026
    %1060 = vmatprep.subr.bf16.mxu0 %v1029
    %1061 = vmatpush1.bf16.msra.mxu0 %v1028
    %1062 = vmatprep.subr.bf16.mxu0 %v1031
    %1063 = vmatpush1.bf16.msra.mxu0 %v1030
    %1064 = vmatprep.subr.bf16.mxu0 %v1033
    %1065 = vmatpush1.bf16.msra.mxu0 %v1032
    %1066 = vmatprep.subr.bf16.mxu0 %v1035
    %1067 = vmatpush1.bf16.msra.mxu0 %v1034
    %1068 = vmatprep.subr.bf16.mxu0 %v1037
    %1069 = vmatpush1.bf16.msra.mxu0 %v1036
    %1070 = vmatprep.subr.bf16.mxu0 %v1039
    %1071 = vmatpush1.bf16.msra.mxu0 %v1038
    %1072 = vmatprep.subr.bf16.mxu0 0
    %1073 = vmatpush1.bf16.msra.mxu0 0
    %1074 = vmatprep.subr.bf16.mxu0 0
    %1075 = vmatpush1.bf16.msra.mxu0 0
    %1076 = vmatprep.subr.bf16.mxu0 0
    %1077 = vmatpush1.bf16.msra.mxu0 0
    %1078 = vmatprep.subr.bf16.mxu0 0
    %1079 = vmatpush1.bf16.msra.mxu0 0
    %1080 = vmatprep.subr.bf16.mxu0 0
    %1081 = vmatpush1.bf16.msra.mxu0 0
    %1082 = vmatprep.subr.bf16.mxu0 0
    %1083 = vmatpush1.bf16.msra.mxu0 0
    %1084 = vmatprep.subr.bf16.mxu0 0
    %1085 = vmatpush1.bf16.msra.mxu0 0
    %1086 = vmatprep.subr.bf16.mxu0 0
    %1087 = vmatpush1.bf16.msra.mxu0 0
    %1088 = vmatprep.mubr.bf16.mxu0 0
    %1089 = vmatmul.mubr.bf16.gmra.mrb[0].mxu0 %v972
    %v1090 = vpop.f32.mrb[0].mxu0
    %v1091 = vadd.f32 0.0, %v1090
    %v1092 = vpop.f32.mrb[0].mxu0
    %v1093 = vadd.f32 0.0, %v1092
    %v1094 = vpop.f32.mrb[0].mxu0
    %v1095 = vadd.f32 0.0, %v1094
    %v1096 = vpop.f32.mrb[0].mxu0
    %v1097 = vadd.f32 0.0, %v1096
    %1098 = vmatprep.mubr.bf16.mxu0 0
    %1099 = vmatmul.mubr.bf16.gmra.mrb[0].mxu0 %v973
    %v1100 = vpop.f32.mrb[0].mxu0
    %v1101 = vadd.f32 0.0, %v1100
    %v1102 = vpop.f32.mrb[0].mxu0
    %v1103 = vadd.f32 0.0, %v1102
    %v1104 = vpop.f32.mrb[0].mxu0
    %v1105 = vadd.f32 0.0, %v1104
    %v1106 = vpop.f32.mrb[0].mxu0
    %v1107 = vadd.f32 0.0, %v1106
    %1108 = vdwg.mxu0
    %v1109 = vlaneseq
    %v1110 = vshrl.u32 %v1109, 7
    %v1111 = vsub.s32 5, %v1110
    %v1112 = vrot.slane %v293, %v1111
    %v1113 = vadd.f32 %v1091, %v1112
    %v1114 = vadd.f32 %v1095, %v1112
    %v1115 = vadd.f32 %v1101, %v1112
    %v1116 = vadd.f32 %v1105, %v1112
    %v1117 = vlaneseq
    %v1118 = vshrl.u32 %v1117, 7
    %v1119 = vsub.s32 6, %v1118
    %v1120 = vrot.slane %v293, %v1119
    %v1121 = vadd.f32 %v1093, %v1120
    %v1122 = vadd.f32 %v1097, %v1120
    %v1123 = vadd.f32 %v1103, %v1120
    %v1124 = vadd.f32 %v1107, %v1120
    %v1125 = vpack.c.bf16 %v958, %v958
    %v1126 = vpack.c.bf16 %v961, %v961
    %v1127 = vpack.c.bf16 %v1114, %v1113
    %v1128 = vpack.c.bf16 %v1116, %v1115
    %1129 = vmatprep.subr.bf16.mxu0 0
    %1130 = vmatpush1.bf16.xpose.msra.mxu0 %v1127
    %1131 = vmatprep.subr.bf16.mxu0 0
    %1132 = vmatpush1.bf16.xpose.msra.mxu0 0
    %1133 = vmatprep.subr.bf16.mxu0 0
    %1134 = vmatpush1.bf16.xpose.msra.mxu0 0
    %1135 = vmatprep.subr.bf16.mxu0 0
    %1136 = vmatpush1.bf16.xpose.msra.mxu0 0
    %1137 = vmatprep.subr.bf16.mxu0 0
    %1138 = vmatpush1.bf16.xpose.msra.mxu0 0
    %1139 = vmatprep.subr.bf16.mxu0 0
    %1140 = vmatpush1.bf16.xpose.msra.mxu0 0
    %1141 = vmatprep.subr.bf16.mxu0 0
    %1142 = vmatpush1.bf16.xpose.msra.mxu0 0
    %1143 = vmatprep.subr.bf16.mxu0 0
    %1144 = vmatpush1.bf16.xpose.msra.mxu0 0
    %1145 = vmatprep.subr.bf16.mxu0 0
    %1146 = vmatpush1.bf16.xpose.msra.mxu0 0
    %1147 = vmatprep.subr.bf16.mxu0 0
    %1148 = vmatpush1.bf16.xpose.msra.mxu0 0
    %1149 = vmatprep.subr.bf16.mxu0 0
    %1150 = vmatpush1.bf16.xpose.msra.mxu0 0
    %1151 = vmatprep.subr.bf16.mxu0 0
    %1152 = vmatpush1.bf16.xpose.msra.mxu0 0
    %1153 = vmatprep.subr.bf16.mxu0 0
    %1154 = vmatpush1.bf16.xpose.msra.mxu0 0
    %1155 = vmatprep.subr.bf16.mxu0 0
    %1156 = vmatpush1.bf16.xpose.msra.mxu0 0
    %1157 = vmatprep.subr.bf16.mxu0 0
    %1158 = vmatpush1.bf16.xpose.msra.mxu0 0
    %1159 = vmatprep.subr.bf16.mxu0 0
    %1160 = vmatpush1.bf16.xpose.msra.mxu0 0
    %1161 = vmatprep.mubr.bf16.mxu0 0
    %1162 = vmatmul.mubr.bf16.gmra.mrb[0].mxu0 %v1125
    %v1163 = vpop.f32.mrb[0].mxu0
    %v1164 = vadd.f32 0.0, %v1163
    %v1165 = vpop.f32.mrb[0].mxu0
    %v1166 = vpop.f32.mrb[0].mxu0
    %v1167 = vpop.f32.mrb[0].mxu0
    %1168 = vdwg.mxu0
    %1169 = vmatprep.subr.bf16.mxu0 0
    %1170 = vmatpush1.bf16.xpose.msra.mxu0 %v1128
    %1171 = vmatprep.subr.bf16.mxu0 0
    %1172 = vmatpush1.bf16.xpose.msra.mxu0 0
    %1173 = vmatprep.subr.bf16.mxu0 0
    %1174 = vmatpush1.bf16.xpose.msra.mxu0 0
    %1175 = vmatprep.subr.bf16.mxu0 0
    %1176 = vmatpush1.bf16.xpose.msra.mxu0 0
    %1177 = vmatprep.subr.bf16.mxu0 0
    %1178 = vmatpush1.bf16.xpose.msra.mxu0 0
    %1179 = vmatprep.subr.bf16.mxu0 0
    %1180 = vmatpush1.bf16.xpose.msra.mxu0 0
    %1181 = vmatprep.subr.bf16.mxu0 0
    %1182 = vmatpush1.bf16.xpose.msra.mxu0 0
    %1183 = vmatprep.subr.bf16.mxu0 0
    %1184 = vmatpush1.bf16.xpose.msra.mxu0 0
    %1185 = vmatprep.subr.bf16.mxu0 0
    %1186 = vmatpush1.bf16.xpose.msra.mxu0 0
    %1187 = vmatprep.subr.bf16.mxu0 0
    %1188 = vmatpush1.bf16.xpose.msra.mxu0 0
    %1189 = vmatprep.subr.bf16.mxu0 0
    %1190 = vmatpush1.bf16.xpose.msra.mxu0 0
    %1191 = vmatprep.subr.bf16.mxu0 0
    %1192 = vmatpush1.bf16.xpose.msra.mxu0 0
    %1193 = vmatprep.subr.bf16.mxu0 0
    %1194 = vmatpush1.bf16.xpose.msra.mxu0 0
    %1195 = vmatprep.subr.bf16.mxu0 0
    %1196 = vmatpush1.bf16.xpose.msra.mxu0 0
    %1197 = vmatprep.subr.bf16.mxu0 0
    %1198 = vmatpush1.bf16.xpose.msra.mxu0 0
    %1199 = vmatprep.subr.bf16.mxu0 0
    %1200 = vmatpush1.bf16.xpose.msra.mxu0 0
    %1201 = vmatprep.mubr.bf16.mxu0 0
    %1202 = vmatmul.mubr.bf16.gmra.mrb[0].mxu0 %v1126
    %v1203 = vpop.f32.mrb[0].mxu0
    %v1204 = vadd.f32 0.0, %v1203
    %v1205 = vpop.f32.mrb[0].mxu0
    %v1206 = vpop.f32.mrb[0].mxu0
    %v1207 = vpop.f32.mrb[0].mxu0
    %1208 = vdwg.mxu0
    %vm1209 = vcmask 130048
    %v1210 = vsel %vm1209, %v1164, -inf
    %1211 = vmax.xlane.f32.xlu0 %v1210
    %v1212 = vpop.xlane.xlu0 %1211
    %v1213 = vsel %vm1209, %v1204, -inf
    %1214 = vmax.xlane.f32.xlu0 %v1213
    %v1215 = vpop.xlane.xlu0 %1214
    %v1216 = vsub.f32 %v1164, %v1212
    %v1217 = vsub.f32 %v1204, %v1215
    %v1218 = vmul.f32 %v1216, 1.442695
    %v1219 = vpow.pop %v1218
    %v1220 = vmul.f32 %v1217, 1.442695
    %v1221 = vpow.pop %v1220
    %v1222 = vsel %vm1209, %v1219, 0.0
    %1223 = vadd.xlane.f32.xlu0 %v1222
    %v1224 = vpop.xlane.xlu0 %1223
    %v1225 = vsel %vm1209, %v1221, 0.0
    %1226 = vadd.xlane.f32.xlu0 %v1225
    %v1227 = vpop.xlane.xlu0 %1226
    %v1228 = vrcp.pop %v1224
    %v1229 = vrcp.pop %v1227
    %v1230 = vmul.f32 %v1219, %v1228
    %v1231 = vmul.f32 %v1221, %v1229
    %v1232 = vpack.c.bf16 %v1230, %v1230
    %v1233 = vpack.c.bf16 %v1231, %v1231
    %v1234 = vpack.c.bf16 %v1122, %v1121
    %v1235 = vpack.c.bf16 %v1124, %v1123
    %v1237 = vsel %vm1209, %v1232, 0
    %1239 = vmatprep.subr.bf16.mxu0 0
    %1240 = vmatpush1.bf16.msra.mxu0 %v1234
    %1241 = vmatprep.subr.bf16.mxu0 0
    %1242 = vmatpush1.bf16.msra.mxu0 0
    %1243 = vmatprep.subr.bf16.mxu0 0
    %1244 = vmatpush1.bf16.msra.mxu0 0
    %1245 = vmatprep.subr.bf16.mxu0 0
    %1246 = vmatpush1.bf16.msra.mxu0 0
    %1247 = vmatprep.subr.bf16.mxu0 0
    %1248 = vmatpush1.bf16.msra.mxu0 0
    %1249 = vmatprep.subr.bf16.mxu0 0
    %1250 = vmatpush1.bf16.msra.mxu0 0
    %1251 = vmatprep.subr.bf16.mxu0 0
    %1252 = vmatpush1.bf16.msra.mxu0 0
    %1253 = vmatprep.subr.bf16.mxu0 0
    %1254 = vmatpush1.bf16.msra.mxu0 0
    %1255 = vmatprep.subr.bf16.mxu0 0
    %1256 = vmatpush1.bf16.msra.mxu0 0
    %1257 = vmatprep.subr.bf16.mxu0 0
    %1258 = vmatpush1.bf16.msra.mxu0 0
    %1259 = vmatprep.subr.bf16.mxu0 0
    %1260 = vmatpush1.bf16.msra.mxu0 0
    %1261 = vmatprep.subr.bf16.mxu0 0
    %1262 = vmatpush1.bf16.msra.mxu0 0
    %1263 = vmatprep.subr.bf16.mxu0 0
    %1264 = vmatpush1.bf16.msra.mxu0 0
    %1265 = vmatprep.subr.bf16.mxu0 0
    %1266 = vmatpush1.bf16.msra.mxu0 0
    %1267 = vmatprep.subr.bf16.mxu0 0
    %1268 = vmatpush1.bf16.msra.mxu0 0
    %1269 = vmatprep.subr.bf16.mxu0 0
    %1270 = vmatpush1.bf16.msra.mxu0 0
    %1271 = vmatprep.mubr.bf16.mxu0 0
    %1272 = vmatmul.mubr.bf16.gmra.mrb[0].mxu0 %v1237
    %v1273 = vpop.f32.mrb[0].mxu0
    %v1274 = vadd.f32 0.0, %v1273
    %v1275 = vpop.f32.mrb[0].mxu0
    %v1276 = vpop.f32.mrb[0].mxu0
    %v1277 = vpop.f32.mrb[0].mxu0
    %1278 = vdwg.mxu0
    %v1280 = vsel %vm1209, %v1233, 0
    %1282 = vmatprep.subr.bf16.mxu0 0
    %1283 = vmatpush1.bf16.msra.mxu0 %v1235
    %1284 = vmatprep.subr.bf16.mxu0 0
    %1285 = vmatpush1.bf16.msra.mxu0 0
    %1286 = vmatprep.subr.bf16.mxu0 0
    %1287 = vmatpush1.bf16.msra.mxu0 0
    %1288 = vmatprep.subr.bf16.mxu0 0
    %1289 = vmatpush1.bf16.msra.mxu0 0
    %1290 = vmatprep.subr.bf16.mxu0 0
    %1291 = vmatpush1.bf16.msra.mxu0 0
    %1292 = vmatprep.subr.bf16.mxu0 0
    %1293 = vmatpush1.bf16.msra.mxu0 0
    %1294 = vmatprep.subr.bf16.mxu0 0
    %1295 = vmatpush1.bf16.msra.mxu0 0
    %1296 = vmatprep.subr.bf16.mxu0 0
    %1297 = vmatpush1.bf16.msra.mxu0 0
    %1298 = vmatprep.subr.bf16.mxu0 0
    %1299 = vmatpush1.bf16.msra.mxu0 0
    %1300 = vmatprep.subr.bf16.mxu0 0
    %1301 = vmatpush1.bf16.msra.mxu0 0
    %1302 = vmatprep.subr.bf16.mxu0 0
    %1303 = vmatpush1.bf16.msra.mxu0 0
    %1304 = vmatprep.subr.bf16.mxu0 0
    %1305 = vmatpush1.bf16.msra.mxu0 0
    %1306 = vmatprep.subr.bf16.mxu0 0
    %1307 = vmatpush1.bf16.msra.mxu0 0
    %1308 = vmatprep.subr.bf16.mxu0 0
    %1309 = vmatpush1.bf16.msra.mxu0 0
    %1310 = vmatprep.subr.bf16.mxu0 0
    %1311 = vmatpush1.bf16.msra.mxu0 0
    %1312 = vmatprep.subr.bf16.mxu0 0
    %1313 = vmatpush1.bf16.msra.mxu0 0
    %1314 = vmatprep.mubr.bf16.mxu0 0
    %1315 = vmatmul.mubr.bf16.gmra.mrb[0].mxu0 %v1280
    %v1316 = vpop.f32.mrb[0].mxu0
    %v1317 = vadd.f32 0.0, %v1316
    %v1318 = vpop.f32.mrb[0].mxu0
    %v1319 = vpop.f32.mrb[0].mxu0
    %v1320 = vpop.f32.mrb[0].mxu0
    %1321 = vdwg.mxu0
    %v1322 = vpack.c.bf16 %v1317, %v1274
    %v1323 = vlaneseq
    %v1324 = vshrl.u32 %v1323, 7
    %v1325 = vsub.s32 7, %v1324
    %v1326 = vrot.slane %v293, %v1325
    %v1343 = vunpack.c.l.b16 %v245
    %v1344 = vunpack.c.l.b16 %v246
    %v1345 = vunpack.c.l.b16 %v247
    %v1346 = vunpack.c.l.b16 %v248
    %v1347 = vunpack.c.l.b16 %v249
    %v1348 = vunpack.c.l.b16 %v250
    %v1349 = vunpack.c.l.b16 %v251
    %v1350 = vunpack.c.l.b16 %v252
    %v1351 = vunpack.c.l.b16 %v253
    %v1352 = vunpack.c.l.b16 %v254
    %v1353 = vunpack.c.l.b16 %v255
    %v1354 = vunpack.c.l.b16 %v256
    %v1355 = vunpack.c.l.b16 %v257
    %v1356 = vunpack.c.l.b16 %v258
    %v1357 = vunpack.c.l.b16 %v259
    %v1358 = vunpack.c.l.b16 %v260
    %v1359 = vpack.c.b16 %v1344, %v1343
    %v1360 = vpack.c.b16 %v1346, %v1345
    %v1361 = vpack.c.b16 %v1348, %v1347
    %v1362 = vpack.c.b16 %v1350, %v1349
    %v1363 = vpack.c.b16 %v1352, %v1351
    %v1364 = vpack.c.b16 %v1354, %v1353
    %v1365 = vpack.c.b16 %v1356, %v1355
    %v1366 = vpack.c.b16 %v1358, %v1357
    %1375 = vmatprep.subr.bf16.mxu0 0
    %1376 = vmatpush1.bf16.msra.mxu0 %v1359
    %1377 = vmatprep.subr.bf16.mxu0 0
    %1378 = vmatpush1.bf16.msra.mxu0 %v1360
    %1379 = vmatprep.subr.bf16.mxu0 0
    %1380 = vmatpush1.bf16.msra.mxu0 %v1361
    %1381 = vmatprep.subr.bf16.mxu0 0
    %1382 = vmatpush1.bf16.msra.mxu0 %v1362
    %1383 = vmatprep.subr.bf16.mxu0 0
    %1384 = vmatpush1.bf16.msra.mxu0 %v1363
    %1385 = vmatprep.subr.bf16.mxu0 0
    %1386 = vmatpush1.bf16.msra.mxu0 %v1364
    %1387 = vmatprep.subr.bf16.mxu0 0
    %1388 = vmatpush1.bf16.msra.mxu0 %v1365
    %1389 = vmatprep.subr.bf16.mxu0 0
    %1390 = vmatpush1.bf16.msra.mxu0 %v1366
    %1391 = vmatprep.subr.bf16.mxu0 0
    %1392 = vmatpush1.bf16.msra.mxu0 0
    %1393 = vmatprep.subr.bf16.mxu0 0
    %1394 = vmatpush1.bf16.msra.mxu0 0
    %1395 = vmatprep.subr.bf16.mxu0 0
    %1396 = vmatpush1.bf16.msra.mxu0 0
    %1397 = vmatprep.subr.bf16.mxu0 0
    %1398 = vmatpush1.bf16.msra.mxu0 0
    %1399 = vmatprep.subr.bf16.mxu0 0
    %1400 = vmatpush1.bf16.msra.mxu0 0
    %1401 = vmatprep.subr.bf16.mxu0 0
    %1402 = vmatpush1.bf16.msra.mxu0 0
    %1403 = vmatprep.subr.bf16.mxu0 0
    %1404 = vmatpush1.bf16.msra.mxu0 0
    %1405 = vmatprep.subr.bf16.mxu0 0
    %1406 = vmatpush1.bf16.msra.mxu0 0
    %1407 = vmatprep.mubr.bf16.mxu0 0
    %1408 = vmatmul.mubr.bf16.gmra.mrb[0].mxu0 %v1322
    %v1409 = vpop.f32.mrb[0].mxu0
    %v1410 = vadd.f32 %v1326, %v1409
    %v1411 = vpop.f32.mrb[0].mxu0
    %v1412 = vpop.f32.mrb[0].mxu0
    %v1413 = vadd.f32 %v1326, %v1412
    %v1414 = vpop.f32.mrb[0].mxu0
    %1415 = vdwg.mxu0
    %v1416 = vadd.f32 %v1410, %v868
    %v1417 = vadd.f32 %v1413, %v869
    %1418 = vadd.xlane.f32.xlu0 %v1416
    %v1419 = vpop.xlane.xlu0 %1418
    %1420 = vadd.xlane.f32.xlu0 %v1417
    %v1421 = vpop.xlane.xlu0 %1420
    %v1422 = vmul.f32 %v1419, %v839
    %v1423 = vmul.f32 %v1421, %v839
    %v1424 = vsub.f32 %v1416, %v1422
    %v1425 = vsub.f32 %v1417, %v1423
    %v1426 = vmul.f32 %v1424, %v1424
    %v1427 = vmul.f32 %v1425, %v1425
    %1428 = vadd.xlane.f32.xlu0 %v1426
    %v1429 = vpop.xlane.xlu0 %1428
    %1430 = vadd.xlane.f32.xlu0 %v1427
    %v1431 = vpop.xlane.xlu0 %1430
    %v1432 = vmul.f32 %v1429, %v839
    %v1433 = vmul.f32 %v1431, %v839
    %v1434 = vadd.f32 %v1432, 1e-05
    %v1435 = vadd.f32 %v1433, 1e-05
    %v1436 = vrsqrt.pop %v1434
    %v1437 = vrsqrt.pop %v1435
    %v1438 = vmul.f32 %v1424, %v1436
    %v1439 = vmul.f32 %v1425, %v1437
    %v1440 = vlaneseq
    %v1441 = vshrl.u32 %v1440, 7
    %v1442 = vsub.s32 3, %v1441
    %v1443 = vrot.slane %v294, %v1442
    %v1444 = vmul.f32 %v1438, %v1443
    %v1445 = vmul.f32 %v1439, %v1443
    %v1446 = vlaneseq
    %v1447 = vshrl.u32 %v1446, 7
    %v1448 = vsub.s32 6, %v1447
    %v1449 = vrot.slane %v294, %v1448
    %v1450 = vadd.f32 %v1444, %v1449
    %v1451 = vadd.f32 %v1445, %v1449
    %v1452 = vpack.c.bf16 %v1451, %v1450
    %v1453 = vlaneseq
    %v1454 = vshrl.u32 %v1453, 7
    %v1455 = vsub.s32 0, %v1454
    %v1456 = vrot.slane %v294, %v1455
    %v1473 = vunpack.c.l.b16 %v261
    %v1474 = vunpack.c.l.b16 %v262
    %v1475 = vunpack.c.l.b16 %v263
    %v1476 = vunpack.c.l.b16 %v264
    %v1477 = vunpack.c.l.b16 %v265
    %v1478 = vunpack.c.l.b16 %v266
    %v1479 = vunpack.c.l.b16 %v267
    %v1480 = vunpack.c.l.b16 %v268
    %v1481 = vunpack.c.l.b16 %v269
    %v1482 = vunpack.c.l.b16 %v270
    %v1483 = vunpack.c.l.b16 %v271
    %v1484 = vunpack.c.l.b16 %v272
    %v1485 = vunpack.c.l.b16 %v273
    %v1486 = vunpack.c.l.b16 %v274
    %v1487 = vunpack.c.l.b16 %v275
    %v1488 = vunpack.c.l.b16 %v276
    %v1489 = vpack.c.b16 %v1474, %v1473
    %v1490 = vpack.c.b16 %v1476, %v1475
    %v1491 = vpack.c.b16 %v1478, %v1477
    %v1492 = vpack.c.b16 %v1480, %v1479
    %v1493 = vpack.c.b16 %v1482, %v1481
    %v1494 = vpack.c.b16 %v1484, %v1483
    %v1495 = vpack.c.b16 %v1486, %v1485
    %v1496 = vpack.c.b16 %v1488, %v1487
    %1505 = vmatprep.subr.bf16.mxu0 0
    %1506 = vmatpush1.bf16.msra.mxu0 %v1489
    %1507 = vmatprep.subr.bf16.mxu0 0
    %1508 = vmatpush1.bf16.msra.mxu0 %v1490
    %1509 = vmatprep.subr.bf16.mxu0 0
    %1510 = vmatpush1.bf16.msra.mxu0 %v1491
    %1511 = vmatprep.subr.bf16.mxu0 0
    %1512 = vmatpush1.bf16.msra.mxu0 %v1492
    %1513 = vmatprep.subr.bf16.mxu0 0
    %1514 = vmatpush1.bf16.msra.mxu0 %v1493
    %1515 = vmatprep.subr.bf16.mxu0 0
    %1516 = vmatpush1.bf16.msra.mxu0 %v1494
    %1517 = vmatprep.subr.bf16.mxu0 0
    %1518 = vmatpush1.bf16.msra.mxu0 %v1495
    %1519 = vmatprep.subr.bf16.mxu0 0
    %1520 = vmatpush1.bf16.msra.mxu0 %v1496
    %1521 = vmatprep.subr.bf16.mxu0 0
    %1522 = vmatpush1.bf16.msra.mxu0 0
    %1523 = vmatprep.subr.bf16.mxu0 0
    %1524 = vmatpush1.bf16.msra.mxu0 0
    %1525 = vmatprep.subr.bf16.mxu0 0
    %1526 = vmatpush1.bf16.msra.mxu0 0
    %1527 = vmatprep.subr.bf16.mxu0 0
    %1528 = vmatpush1.bf16.msra.mxu0 0
    %1529 = vmatprep.subr.bf16.mxu0 0
    %1530 = vmatpush1.bf16.msra.mxu0 0
    %1531 = vmatprep.subr.bf16.mxu0 0
    %1532 = vmatpush1.bf16.msra.mxu0 0
    %1533 = vmatprep.subr.bf16.mxu0 0
    %1534 = vmatpush1.bf16.msra.mxu0 0
    %1535 = vmatprep.subr.bf16.mxu0 0
    %1536 = vmatpush1.bf16.msra.mxu0 0
    %1537 = vmatprep.mubr.bf16.mxu0 0
    %1538 = vmatmul.mubr.bf16.gmra.mrb[0].mxu0 %v1452
    %v1539 = vpop.f32.mrb[0].mxu0
    %v1540 = vadd.f32 %v1456, %v1539
    %v1541 = vpop.f32.mrb[0].mxu0
    %v1542 = vpop.f32.mrb[0].mxu0
    %v1543 = vadd.f32 %v1456, %v1542
    %v1544 = vpop.f32.mrb[0].mxu0
    %1545 = vdwg.mxu0
    %v1546 = vmax.f32 %v1540, 0.0
    %v1547 = vmax.f32 %v1543, 0.0
    %v1548 = vpack.c.bf16 %v1547, %v1546
    %v1549 = vlaneseq
    %v1550 = vshrl.u32 %v1549, 7
    %v1551 = vsub.s32 1, %v1550
    %v1552 = vrot.slane %v294, %v1551
    %v1569 = vunpack.c.l.b16 %v277
    %v1570 = vunpack.c.l.b16 %v278
    %v1571 = vunpack.c.l.b16 %v279
    %v1572 = vunpack.c.l.b16 %v280
    %v1573 = vunpack.c.l.b16 %v281
    %v1574 = vunpack.c.l.b16 %v282
    %v1575 = vunpack.c.l.b16 %v283
    %v1576 = vunpack.c.l.b16 %v284
    %v1577 = vunpack.c.l.b16 %v285
    %v1578 = vunpack.c.l.b16 %v286
    %v1579 = vunpack.c.l.b16 %v287
    %v1580 = vunpack.c.l.b16 %v288
    %v1581 = vunpack.c.l.b16 %v289
    %v1582 = vunpack.c.l.b16 %v290
    %v1583 = vunpack.c.l.b16 %v291
    %v1584 = vunpack.c.l.b16 %v292
    %v1585 = vpack.c.b16 %v1570, %v1569
    %v1586 = vpack.c.b16 %v1572, %v1571
    %v1587 = vpack.c.b16 %v1574, %v1573
    %v1588 = vpack.c.b16 %v1576, %v1575
    %v1589 = vpack.c.b16 %v1578, %v1577
    %v1590 = vpack.c.b16 %v1580, %v1579
    %v1591 = vpack.c.b16 %v1582, %v1581
    %v1592 = vpack.c.b16 %v1584, %v1583
    %1601 = vmatprep.subr.bf16.mxu0 0
    %1602 = vmatpush1.bf16.msra.mxu0 %v1585
    %1603 = vmatprep.subr.bf16.mxu0 0
    %1604 = vmatpush1.bf16.msra.mxu0 %v1586
    %1605 = vmatprep.subr.bf16.mxu0 0
    %1606 = vmatpush1.bf16.msra.mxu0 %v1587
    %1607 = vmatprep.subr.bf16.mxu0 0
    %1608 = vmatpush1.bf16.msra.mxu0 %v1588
    %1609 = vmatprep.subr.bf16.mxu0 0
    %1610 = vmatpush1.bf16.msra.mxu0 %v1589
    %1611 = vmatprep.subr.bf16.mxu0 0
    %1612 = vmatpush1.bf16.msra.mxu0 %v1590
    %1613 = vmatprep.subr.bf16.mxu0 0
    %1614 = vmatpush1.bf16.msra.mxu0 %v1591
    %1615 = vmatprep.subr.bf16.mxu0 0
    %1616 = vmatpush1.bf16.msra.mxu0 %v1592
    %1617 = vmatprep.subr.bf16.mxu0 0
    %1618 = vmatpush1.bf16.msra.mxu0 0
    %1619 = vmatprep.subr.bf16.mxu0 0
    %1620 = vmatpush1.bf16.msra.mxu0 0
    %1621 = vmatprep.subr.bf16.mxu0 0
    %1622 = vmatpush1.bf16.msra.mxu0 0
    %1623 = vmatprep.subr.bf16.mxu0 0
    %1624 = vmatpush1.bf16.msra.mxu0 0
    %1625 = vmatprep.subr.bf16.mxu0 0
    %1626 = vmatpush1.bf16.msra.mxu0 0
    %1627 = vmatprep.subr.bf16.mxu0 0
    %1628 = vmatpush1.bf16.msra.mxu0 0
    %1629 = vmatprep.subr.bf16.mxu0 0
    %1630 = vmatpush1.bf16.msra.mxu0 0
    %1631 = vmatprep.subr.bf16.mxu0 0
    %1632 = vmatpush1.bf16.msra.mxu0 0
    %1633 = vmatprep.mubr.bf16.mxu0 0
    %1634 = vmatmul.mubr.bf16.gmra.mrb[0].mxu0 %v1548
    %v1635 = vpop.f32.mrb[0].mxu0
    %v1636 = vadd.f32 %v1552, %v1635
    %v1637 = vpop.f32.mrb[0].mxu0
    %v1638 = vpop.f32.mrb[0].mxu0
    %v1639 = vadd.f32 %v1552, %v1638
    %v1640 = vpop.f32.mrb[0].mxu0
    %1641 = vdwg.mxu0
    %v1642 = vadd.f32 %v1450, %v1636
    %v1643 = vadd.f32 %v1451, %v1639
    %1644 = vadd.xlane.f32.xlu0 %v1642
    %v1645 = vpop.xlane.xlu0 %1644
    %1646 = vadd.xlane.f32.xlu0 %v1643
    %v1647 = vpop.xlane.xlu0 %1646
    %v1648 = vmul.f32 %v1645, %v839
    %v1649 = vmul.f32 %v1647, %v839
    %v1650 = vsub.f32 %v1642, %v1648
    %v1651 = vsub.f32 %v1643, %v1649
    %v1652 = vmul.f32 %v1650, %v1650
    %v1653 = vmul.f32 %v1651, %v1651
    %1654 = vadd.xlane.f32.xlu0 %v1652
    %v1655 = vpop.xlane.xlu0 %1654
    %1656 = vadd.xlane.f32.xlu0 %v1653
    %v1657 = vpop.xlane.xlu0 %1656
    %v1658 = vmul.f32 %v1655, %v839
    %v1659 = vmul.f32 %v1657, %v839
    %v1660 = vadd.f32 %v1658, 1e-05
    %v1661 = vadd.f32 %v1659, 1e-05
    %v1662 = vrsqrt.pop %v1660
    %v1663 = vrsqrt.pop %v1661
    %v1664 = vmul.f32 %v1650, %v1662
    %v1665 = vmul.f32 %v1651, %v1663
    %v1666 = vlaneseq
    %v1667 = vshrl.u32 %v1666, 7
    %v1668 = vsub.s32 4, %v1667
    %v1669 = vrot.slane %v294, %v1668
    %v1670 = vmul.f32 %v1664, %v1669
    %v1671 = vmul.f32 %v1665, %v1669
    %v1672 = vlaneseq
    %v1673 = vshrl.u32 %v1672, 7
    %v1674 = vsub.s32 7, %v1673
    %v1675 = vrot.slane %v294, %v1674
    %v1676 = vadd.f32 %v1670, %v1675
    %v1677 = vadd.f32 %v1671, %v1675
    %1678 = vst [vmem:[#allocation17] sm:$0xff] %v1676
    %1679 = vst [vmem:[#allocation17 + $0x8] sm:$0xff] %v1677
    // Predicated region
    $region78: #{tpu_custom_call.1} parent=1 // pred_check
      _
    $region79: #{tpu_custom_call.1} parent=1 // pred_check_branch
      %1681 = sbr.rel (0) target = $region81
    $region80: #{tpu_custom_call.1} parent=1 // pred_region
      %s1683 = ssub.s32 256, 256
      %1684 = vsyncadd [#allocation4], %s1683
      %s1685 = sshll.u32 [#allocation17], 4
      %s1686 = int_to_ptr.vmem [resolvable:$true] %s1685
      %1691 = dma.vmem_to_hbm [thread:$0]  %s1686, 256, %s10, [#allocation4], 128, 128, 8
    $region81: #{tpu_custom_call.1} parent=1 // pred_fallthru
      _
    // Predicated region
    $region82: #{tpu_custom_call.1} parent=1 // pred_check
      _
    $region83: #{tpu_custom_call.1} parent=1 // pred_check_branch
      %1693 = sbr.rel (0) target = $region85
    $region84: #{tpu_custom_call.1} parent=1 // pred_region
      %1694 = dma.done [#allocation4], 256
    $region85: #{tpu_custom_call.1} parent=1 // pred_fallthru
      _
    %1695 = vsyncpa [#allocation3], 1
    %1696 = vsyncpa [#allocation6], 1
    %1697 = vsyncpa [#allocation9], 1
    %1698 = vsyncpa [#allocation12], 1
    %1699 = vsyncpa [#allocation15], 1
    %1700 = vsyncpa [#allocation4], 1

</llo_original>
